<compile_context>
chip_gen: v7x
topology: tpu7x:2x2x1
jax: 0.10.0
libtpu: 0.0.40
codegen_flags: <defaults>
</compile_context>

<pallas_src>
import functools
import math

import jax
import jax.numpy as jnp
import numpy as np
from jax.experimental import pallas as pl
from jax.experimental.pallas import tpu as pltpu

LN_EPS = 1e-5                         # torch.nn.LayerNorm default eps
_SQRT_2_OVER_PI = math.sqrt(2.0 / math.pi)


def _layernorm(x, gamma, beta):
    # x: (m, d); gamma/beta: (1, d). Biased variance, like torch.nn.LayerNorm. f32 math.
    mu = jnp.mean(x, axis=-1, keepdims=True)
    var = jnp.mean((x - mu) ** 2, axis=-1, keepdims=True)
    return (x - mu) * jax.lax.rsqrt(var + LN_EPS) * gamma + beta


# ---------------------------------------------------------------------------
# Fused encoder kernel.
# grid = (batch // B_BLK, depth): one block of B_BLK batch elements per step, looping over layers
# on the inner ("arbitrary") axis with the activation resident in VMEM scratch.
# Each step computes:   x += Attn(LN1(x));   x += FFN(LN2(x))
# ---------------------------------------------------------------------------
def encoder_kernel(x_ref, wqkv_ref, wo_ref, w1_ref, w2_ref, vecs_ref, pe_ref,
                   o_ref, acc_ref, *, heads):
    layer = pl.program_id(1)
    b_blk, n, dim = x_ref.shape
    dh = dim // heads
    hid = w1_ref.shape[1]
    m = b_blk * n
    bf16 = jnp.bfloat16
    f32 = jnp.float32

    @pl.when(layer == 0)
    def _():
        # Load this batch block's activation once; it stays resident across all layers.
        acc_ref[...] = x_ref[...].reshape(m, dim)

    x = acc_ref[...]                                  # (m, dim) f32 carried across layers

    # Packed per-layer vectors: one DMA'd (8, pmax) block, sliced here (static slices).
    ln1_g = vecs_ref[0:1, :dim]
    ln1_b = vecs_ref[1:2, :dim]
    bo = vecs_ref[2:3, :dim]
    ln2_g = vecs_ref[3:4, :dim]
    ln2_b = vecs_ref[4:5, :dim]
    b1 = vecs_ref[5:6, :hid]
    b2 = vecs_ref[6:7, :dim]

    # ---------------- attention sublayer:  x + Wo( softmax(Q K^T + pe) V ) + bo --------------
    xn = _layernorm(x, ln1_g, ln1_b)
    # Fused QKV projection: one 2-D bf16 matmul, f32 accumulation.  1/sqrt(dh) is already folded
    # into the Q columns of Wqkv by the wrapper.
    qkv = jnp.dot(xn.astype(bf16), wqkv_ref[...],
                  preferred_element_type=f32)          # (m, 3*dim)
    pe = pe_ref[...]                                   # (n, n) shared positional bias

    ctx_rows = []
    for bb in range(b_blk):                            # static unroll over the batch block
        rows = slice(bb * n, (bb + 1) * n)
        head_ctx = []
        for h in range(heads):                         # static unroll over heads (lane slices)
            c0 = h * dh
            qh = qkv[rows, c0:c0 + dh].astype(bf16)                    # (n, dh)
            kh = qkv[rows, dim + c0:dim + c0 + dh].astype(bf16)        # (n, dh)
            vh = qkv[rows, 2 * dim + c0:2 * dim + c0 + dh].astype(bf16)
            # scores = q @ k^T  (contract over dh on both operands -> no in-kernel transpose)
            s = jax.lax.dot_general(qh, kh, (((1,), (1,)), ((), ())),
                                    preferred_element_type=f32)        # (n, n) f32
            s = s + pe
            s = s - jnp.max(s, axis=-1, keepdims=True)
            e = jnp.exp(s)
            p = e * pl.reciprocal(jnp.sum(e, axis=-1, keepdims=True), approx=True)
            head_ctx.append(jnp.dot(p.astype(bf16), vh,
                                    preferred_element_type=f32))       # (n, dh)
        ctx_rows.append(jnp.concatenate(head_ctx, axis=-1))            # (n, dim) lane concat
    ctx = jnp.concatenate(ctx_rows, axis=0)                            # (m, dim)

    # Single 2-D output projection (head sum happens inside the MXU contraction).
    x = x + jnp.dot(ctx.astype(bf16), wo_ref[...],
                    preferred_element_type=f32) + bo                   # residual (dropout = id)

    # ---------------- feed-forward sublayer:  x + W2( GELU(W1 LN2(x) + b1) ) + b2 ------------
    xn2 = _layernorm(x, ln2_g, ln2_b)
    h1 = jnp.dot(xn2.astype(bf16), w1_ref[...], preferred_element_type=f32) + b1
    # tanh-approx GELU (EUP) -- swap back to exact erf if bit-closer parity is required.
    h1 = 0.5 * h1 * (1.0 + jnp.tanh(_SQRT_2_OVER_PI * (h1 + 0.044715 * h1 * h1 * h1)))
    x = x + jnp.dot(h1.astype(bf16), w2_ref[...], preferred_element_type=f32) + b2

    acc_ref[...] = x                                   # carry to next layer (VMEM-resident)

    @pl.when(layer == pl.num_programs(1) - 1)
    def _():
        o_ref[...] = x.reshape(b_blk, n, dim).astype(o_ref.dtype)   # one writeback per block


def transformer_encoder(x, layers, heads, b_blk=None):
    """Runs the whole TransformerEncoder in one fused pallas_call."""
    b, n, dim = x.shape
    depth = len(layers)
    dh = dim // heads
    hid = layers[0]["w1"].shape[1]
    scale = dh ** -0.5
    pmax = max(dim, hid)

    if b_blk is None:
        # Largest block <= 4 that still leaves >= 2 steps on the parallel axis (megacore).
        b_blk = b
        for cand in (4, 3, 2, 1):
            if b % cand == 0 and b // cand >= 2:
                b_blk = cand
                break
    assert b % b_blk == 0, "batch must be divisible by the batch block"

    stack = lambda name: jnp.stack([p[name] for p in layers], axis=0)

    # Fused QKV weight (scale folded into Q columns); all matmul weights stored as bf16.
    wqkv = jnp.concatenate([stack("wq") * scale, stack("wk"), stack("wv")],
                           axis=-1).astype(jnp.bfloat16)            # (depth, dim, 3*dim)
    wo = stack("wo").astype(jnp.bfloat16)                           # (depth, dim, dim)
    w1 = stack("w1").astype(jnp.bfloat16)                           # (depth, dim, hid)
    w2 = stack("w2").astype(jnp.bfloat16)                           # (depth, hid, dim)

    # Pack the 7 small per-layer vectors into one (depth, 8, pmax) f32 block (1 DMA vs 7).
    def vec_row(name, width):
        v = jnp.concatenate([p[name] for p in layers], axis=0)      # (depth, width)
        return jnp.pad(v, ((0, 0), (0, pmax - width)))
    vecs = jnp.stack([
        vec_row("ln1_g", dim), vec_row("ln1_b", dim), vec_row("bo", dim),
        vec_row("ln2_g", dim), vec_row("ln2_b", dim), vec_row("b1", hid),
        vec_row("b2", dim), jnp.zeros((depth, pmax), jnp.float32),
    ], axis=1)                                                      # (depth, 8, pmax)

    pe = stack("pe_n")                                              # (depth, n, n)

    batch_map = lambda ib, il: (ib, 0, 0)      # activation blocks follow the batch axis only
    d3 = lambda ib, il: (il, 0, 0)             # depth-stacked params follow the layer axis

    in_specs = [
        pl.BlockSpec((b_blk, n, dim), batch_map),        # x
        pl.BlockSpec((None, dim, 3 * dim), d3),          # Wqkv (bf16, scaled Q)
        pl.BlockSpec((None, dim, dim), d3),              # Wo   (bf16)
        pl.BlockSpec((None, dim, hid), d3),              # W1   (bf16)
        pl.BlockSpec((None, hid, dim), d3),              # W2   (bf16)
        pl.BlockSpec((None, 8, pmax), d3),               # packed small vectors (f32)
        pl.BlockSpec((None, n, n), d3),                  # pe[:n, :n] (f32)
    ]

    # Explicit scoped-VMEM budget derived from the double-buffered block footprint + scratch.
    blk_bytes = (
        2 * b_blk * n * dim * 4            # x in block + out block (f32)
        + dim * 3 * dim * 2                # wqkv (bf16)
        + dim * dim * 2                    # wo
        + dim * hid * 2                    # w1
        + hid * dim * 2                    # w2
        + 8 * pmax * 4                     # packed vectors
        + n * n * 4                        # pe
    )
    scratch_bytes = b_blk * n * dim * 4
    vmem_limit = int(min(100 << 20, max(32 << 20, 3 * blk_bytes + scratch_bytes + (8 << 20))))

    return pl.pallas_call(
        functools.partial(encoder_kernel, heads=heads),
        out_shape=jax.ShapeDtypeStruct((b, n, dim), x.dtype),
        grid=(b // b_blk, depth),
        in_specs=in_specs,
        out_specs=pl.BlockSpec((b_blk, n, dim), batch_map),
        scratch_shapes=[pltpu.VMEM((b_blk * n, dim), jnp.float32)],
        compiler_params=pltpu.CompilerParams(
            # Batch-block axis -> parallel (both v7x TensorCores); depth carries VMEM state.
            dimension_semantics=("parallel", "arbitrary"),
            vmem_limit_bytes=vmem_limit,
        ),
    )(x, wqkv, wo, w1, w2, vecs, pe)


# ---------------------------------------------------------------------------
# Pure-JAX reference (mirrors the PyTorch forward, f32 / exact erf GELU)
# ---------------------------------------------------------------------------
def reference(x, layers, heads):
    def ln(x, g, b):
        mu = jnp.mean(x, axis=-1, keepdims=True)
        var = jnp.mean((x - mu) ** 2, axis=-1, keepdims=True)
        return (x - mu) * jax.lax.rsqrt(var + LN_EPS) * g + b

    for p in layers:
        b, n, dim = x.shape
        dh = dim // heads
        scale = dh ** -0.5
        xn = ln(x, p["ln1_g"], p["ln1_b"])
        q = (xn @ p["wq"]).reshape(b, n, heads, dh).transpose(0, 2, 1, 3)
        k = (xn @ p["wk"]).reshape(b, n, heads, dh).transpose(0, 2, 1, 3)
        v = (xn @ p["wv"]).reshape(b, n, heads, dh).transpose(0, 2, 1, 3)
        dots = jnp.einsum("bhid,bhjd->bhij", q, k) * scale + p["pe_n"]
        attn = jax.nn.softmax(dots, axis=-1)
        out = jnp.einsum("bhij,bhjd->bhid", attn, v)
        out = out.transpose(0, 2, 1, 3).reshape(b, n, dim)
        x = x + out @ p["wo"] + p["bo"]

        xn = ln(x, p["ln2_g"], p["ln2_b"])
        h = xn @ p["w1"] + p["b1"]
        h = 0.5 * h * (1.0 + jax.lax.erf(h / math.sqrt(2.0)))
        x = x + h @ p["w2"] + p["b2"]
    return x


def init_params(key, dim, depth, mlp_dim, n):
    layers = []
    for _ in range(depth):
        key, *ks = jax.random.split(key, 12)
        s = 0.1
        nrm = lambda k, shape, sc=s: jax.random.normal(k, shape, jnp.float32) * sc
        p = {
            "ln1_g": jnp.ones((1, dim), jnp.float32),
            "ln1_b": jnp.zeros((1, dim), jnp.float32),
            "wq": nrm(ks[0], (dim, dim)),
            "wk": nrm(ks[1], (dim, dim)),
            "wv": nrm(ks[2], (dim, dim)),
            "wo": nrm(ks[3], (dim, dim)),
            "bo": nrm(ks[4], (1, dim)),
            # pe is a (480, 480) parameter in the module; only pe[:n, :n] is used.
            "pe_n": jax.random.normal(ks[5], (480, 480), jnp.float32)[:n, :n],
            "ln2_g": jnp.ones((1, dim), jnp.float32),
            "ln2_b": jnp.zeros((1, dim), jnp.float32),
            "w1": nrm(ks[6], (dim, mlp_dim)),
            "b1": nrm(ks[7], (1, mlp_dim)),
            "w2": nrm(ks[8], (mlp_dim, dim)),
            "b2": nrm(ks[9], (1, dim)),
        }
        layers.append(p)
    return layers


if __name__ == "__main__":
    # batch=4 so that B_BLK=2 demonstrates batch blocking while keeping 2 parallel grid steps.
    B, N, DIM, HEADS, MLP_DIM, DEPTH = 4, 16, 32, 8, 64, 2

    key = jax.random.PRNGKey(0)
    kx, kp = jax.random.split(key)
    x = jax.random.normal(kx, (B, N, DIM), jnp.float32)
    layers = init_params(kp, DIM, DEPTH, MLP_DIM, N)

    out = jax.block_until_ready(transformer_encoder(x, layers, HEADS, b_blk=2))
    ref = jax.block_until_ready(reference(x, layers, HEADS))

    # Tolerance accounts for intentional perf choices vs the f32 reference: bf16 matmul operands
    # (f32 accumulation), tanh-approx GELU, and the approximate EUP reciprocal in softmax.
    np.testing.assert_allclose(np.asarray(out), np.asarray(ref), rtol=2e-2, atol=2e-2)

    print("KERNEL_OK")
</pallas_src>

<mosaic_0001>
module attributes {stable_mosaic.version = 11 : i64} {
  func.func @encoder_kernel(%arg0: i32, %arg1: i32, %arg2: memref<2x16x32xf32, #tpu.memory_space<vmem>>, %arg3: memref<1x32x96xbf16, #tpu.memory_space<vmem>>, %arg4: memref<1x32x32xbf16, #tpu.memory_space<vmem>>, %arg5: memref<1x32x64xbf16, #tpu.memory_space<vmem>>, %arg6: memref<1x64x32xbf16, #tpu.memory_space<vmem>>, %arg7: memref<1x8x64xf32, #tpu.memory_space<vmem>>, %arg8: memref<1x16x16xf32, #tpu.memory_space<vmem>>, %arg9: memref<2x16x32xf32, #tpu.memory_space<vmem>>, %arg10: memref<32x32xf32, #tpu.memory_space<vmem>>) attributes {dimension_semantics = [#tpu.dimension_semantics<parallel>, #tpu.dimension_semantics<arbitrary>], iteration_bounds = array<i64: 2, 2>, scalar_prefetch = 0 : i64, scratch_operands = 1 : i64, tpu.core_type = #tpu.core_type<tc>, window_params = [{transform_indices = @transform_0, window_bounds = array<i64: 2, 16, 32>}, {transform_indices = @transform_1, window_bounds = array<i64: 1, 32, 96>}, {transform_indices = @transform_2, window_bounds = array<i64: 1, 32, 32>}, {transform_indices = @transform_3, window_bounds = array<i64: 1, 32, 64>}, {transform_indices = @transform_4, window_bounds = array<i64: 1, 64, 32>}, {transform_indices = @transform_5, window_bounds = array<i64: 1, 8, 64>}, {transform_indices = @transform_6, window_bounds = array<i64: 1, 16, 16>}, {transform_indices = @transform_7, window_bounds = array<i64: 2, 16, 32>}]} {
    %c0_i32 = arith.constant 0 : i32
    %0 = arith.cmpi eq, %arg1, %c0_i32 : i32
    %1 = arith.extui %0 : i1 to i32
    %c0_i32_0 = arith.constant 0 : i32
    %2 = arith.cmpi ne, %1, %c0_i32_0 : i32
    scf.if %2 {
      %c0_116 = arith.constant 0 : index
      %c0_117 = arith.constant 0 : index
      %c0_118 = arith.constant 0 : index
      %428 = vector.load %arg2[%c0_116, %c0_117, %c0_118] : memref<2x16x32xf32, #tpu.memory_space<vmem>>, vector<2x16x32xf32>
      %429 = vector.shape_cast %428 : vector<2x16x32xf32> to vector<32x32xf32>
      %c0_119 = arith.constant 0 : index
      %c0_120 = arith.constant 0 : index
      %430 = vector.load %arg10[%c0_119, %c0_120] : memref<32x32xf32, #tpu.memory_space<vmem>>, vector<32x32xf32>
      tpu.vector_store %arg10[%c0_119, %c0_120], %429 {strides = array<i32>} : memref<32x32xf32, #tpu.memory_space<vmem>>, vector<32x32xf32>,
    } else {
    }
    %c0 = arith.constant 0 : index
    %c0_1 = arith.constant 0 : index
    %3 = vector.load %arg10[%c0, %c0_1] : memref<32x32xf32, #tpu.memory_space<vmem>>, vector<32x32xf32>
    %c0_2 = arith.constant 0 : index
    %c0_3 = arith.constant 0 : index
    %c0_4 = arith.constant 0 : index
    %4 = vector.load %arg7[%c0_2, %c0_3, %c0_4] : memref<1x8x64xf32, #tpu.memory_space<vmem>>, vector<1x1x32xf32>
    %5 = vector.shape_cast %4 : vector<1x1x32xf32> to vector<1x32xf32>
    %c0_5 = arith.constant 0 : index
    %c1 = arith.constant 1 : index
    %c0_6 = arith.constant 0 : index
    %6 = vector.load %arg7[%c0_5, %c1, %c0_6] : memref<1x8x64xf32, #tpu.memory_space<vmem>>, vector<1x1x32xf32>
    %7 = vector.shape_cast %6 : vector<1x1x32xf32> to vector<1x32xf32>
    %c0_7 = arith.constant 0 : index
    %c2 = arith.constant 2 : index
    %c0_8 = arith.constant 0 : index
    %8 = vector.load %arg7[%c0_7, %c2, %c0_8] : memref<1x8x64xf32, #tpu.memory_space<vmem>>, vector<1x1x32xf32>
    %9 = vector.shape_cast %8 : vector<1x1x32xf32> to vector<1x32xf32>
    %c0_9 = arith.constant 0 : index
    %c3 = arith.constant 3 : index
    %c0_10 = arith.constant 0 : index
    %10 = vector.load %arg7[%c0_9, %c3, %c0_10] : memref<1x8x64xf32, #tpu.memory_space<vmem>>, vector<1x1x32xf32>
    %11 = vector.shape_cast %10 : vector<1x1x32xf32> to vector<1x32xf32>
    %c0_11 = arith.constant 0 : index
    %c4 = arith.constant 4 : index
    %c0_12 = arith.constant 0 : index
    %12 = vector.load %arg7[%c0_11, %c4, %c0_12] : memref<1x8x64xf32, #tpu.memory_space<vmem>>, vector<1x1x32xf32>
    %13 = vector.shape_cast %12 : vector<1x1x32xf32> to vector<1x32xf32>
    %c0_13 = arith.constant 0 : index
    %c5 = arith.constant 5 : index
    %c0_14 = arith.constant 0 : index
    %14 = vector.load %arg7[%c0_13, %c5, %c0_14] : memref<1x8x64xf32, #tpu.memory_space<vmem>>, vector<1x1x64xf32>
    %15 = vector.shape_cast %14 : vector<1x1x64xf32> to vector<1x64xf32>
    %c0_15 = arith.constant 0 : index
    %c6 = arith.constant 6 : index
    %c0_16 = arith.constant 0 : index
    %16 = vector.load %arg7[%c0_15, %c6, %c0_16] : memref<1x8x64xf32, #tpu.memory_space<vmem>>, vector<1x1x32xf32>
    %17 = vector.shape_cast %16 : vector<1x1x32xf32> to vector<1x32xf32>
    %cst = arith.constant dense<0.000000e+00> : vector<32xf32>
    %18 = vector.multi_reduction <add>, %3, %cst [1] : vector<32x32xf32> to vector<32xf32>
    %19 = vector.shape_cast %18 : vector<32xf32> to vector<32x1xf32>
    %cst_17 = arith.constant 3.200000e+01 : f32
    %20 = vector.broadcast %cst_17 : f32 to vector<32x1xf32>
    %21 = arith.divf %19, %20 : vector<32x1xf32>
    %22 = vector.broadcast %21 : vector<32x1xf32> to vector<32x32xf32>
    %23 = arith.subf %3, %22 : vector<32x32xf32>
    %24 = arith.mulf %23, %23 : vector<32x32xf32>
    %cst_18 = arith.constant dense<0.000000e+00> : vector<32xf32>
    %25 = vector.multi_reduction <add>, %24, %cst_18 [1] : vector<32x32xf32> to vector<32xf32>
    %26 = vector.shape_cast %25 : vector<32xf32> to vector<32x1xf32>
    %cst_19 = arith.constant 3.200000e+01 : f32
    %27 = vector.broadcast %cst_19 : f32 to vector<32x1xf32>
    %28 = arith.divf %26, %27 : vector<32x1xf32>
    %29 = vector.broadcast %21 : vector<32x1xf32> to vector<32x32xf32>
    %30 = arith.subf %3, %29 : vector<32x32xf32>
    %cst_20 = arith.constant 9.99999974E-6 : f32
    %31 = vector.broadcast %cst_20 : f32 to vector<32x1xf32>
    %32 = arith.addf %28, %31 : vector<32x1xf32>
    %33 = math.rsqrt %32 : vector<32x1xf32>
    %34 = vector.broadcast %33 : vector<32x1xf32> to vector<32x32xf32>
    %35 = arith.mulf %30, %34 : vector<32x32xf32>
    %36 = vector.broadcast %5 : vector<1x32xf32> to vector<32x32xf32>
    %37 = arith.mulf %35, %36 : vector<32x32xf32>
    %38 = vector.broadcast %7 : vector<1x32xf32> to vector<32x32xf32>
    %39 = arith.addf %37, %38 : vector<32x32xf32>
    %40 = arith.truncf %39 : vector<32x32xf32> to vector<32x32xbf16>
    %c0_21 = arith.constant 0 : index
    %c0_22 = arith.constant 0 : index
    %c0_23 = arith.constant 0 : index
    %41 = vector.load %arg3[%c0_21, %c0_22, %c0_23] : memref<1x32x96xbf16, #tpu.memory_space<vmem>>, vector<1x32x96xbf16>
    %42 = vector.shape_cast %41 : vector<1x32x96xbf16> to vector<32x96xbf16>
    %cst_24 = arith.constant dense<0.000000e+00> : vector<32x96xf32>
    %43 = tpu.matmul %40, %42, %cst_24 {dimension_numbers = #tpu.dot_dimension_numbers<[1], [0], [0], [1], [0, 0, 1, 1], [], []>} : vector<32x32xbf16>, vector<32x96xbf16>, vector<32x96xf32> -> vector<32x96xf32>
    %c0_25 = arith.constant 0 : index
    %c0_26 = arith.constant 0 : index
    %c0_27 = arith.constant 0 : index
    %44 = vector.load %arg8[%c0_25, %c0_26, %c0_27] : memref<1x16x16xf32, #tpu.memory_space<vmem>>, vector<1x16x16xf32>
    %45 = vector.shape_cast %44 : vector<1x16x16xf32> to vector<16x16xf32>
    %46 = vector.extract_strided_slice %43 {offsets = [0, 0], sizes = [16, 4], strides = [1, 1]} : vector<32x96xf32> to vector<16x4xf32>
    %47 = arith.truncf %46 : vector<16x4xf32> to vector<16x4xbf16>
    %48 = vector.extract_strided_slice %43 {offsets = [0, 32], sizes = [16, 4], strides = [1, 1]} : vector<32x96xf32> to vector<16x4xf32>
    %49 = arith.truncf %48 : vector<16x4xf32> to vector<16x4xbf16>
    %50 = vector.extract_strided_slice %43 {offsets = [0, 64], sizes = [16, 4], strides = [1, 1]} : vector<32x96xf32> to vector<16x4xf32>
    %51 = arith.truncf %50 : vector<16x4xf32> to vector<16x4xbf16>
    %cst_28 = arith.constant dense<0.000000e+00> : vector<16x16xf32>
    %52 = tpu.matmul %47, %49, %cst_28 {dimension_numbers = #tpu.dot_dimension_numbers<[1], [1], [0], [0], [0, 0, 1, 0], [], []>} : vector<16x4xbf16>, vector<16x4xbf16>, vector<16x16xf32> -> vector<16x16xf32>
    %53 = arith.addf %52, %45 : vector<16x16xf32>
    %cst_29 = arith.constant dense<0xFF800000> : vector<16xf32>
    %54 = vector.multi_reduction <maximumf>, %53, %cst_29 [1] : vector<16x16xf32> to vector<16xf32>
    %55 = vector.shape_cast %54 : vector<16xf32> to vector<16x1xf32>
    %56 = vector.broadcast %55 : vector<16x1xf32> to vector<16x16xf32>
    %57 = arith.subf %53, %56 : vector<16x16xf32>
    %58 = math.exp %57 : vector<16x16xf32>
    %cst_30 = arith.constant dense<0.000000e+00> : vector<16xf32>
    %59 = vector.multi_reduction <add>, %58, %cst_30 [1] : vector<16x16xf32> to vector<16xf32>
    %60 = vector.shape_cast %59 : vector<16xf32> to vector<16x1xf32>
    %61 = tpu.reciprocal %60 {approx = true} : vector<16x1xf32> -> vector<16x1xf32>
    %62 = vector.broadcast %61 : vector<16x1xf32> to vector<16x16xf32>
    %63 = arith.mulf %58, %62 : vector<16x16xf32>
    %64 = arith.truncf %63 : vector<16x16xf32> to vector<16x16xbf16>
    %cst_31 = arith.constant dense<0.000000e+00> : vector<16x4xf32>
    %65 = tpu.matmul %64, %51, %cst_31 {dimension_numbers = #tpu.dot_dimension_numbers<[1], [0], [0], [1], [0, 0, 1, 1], [], []>} : vector<16x16xbf16>, vector<16x4xbf16>, vector<16x4xf32> -> vector<16x4xf32>
    %66 = vector.extract_strided_slice %43 {offsets = [0, 4], sizes = [16, 4], strides = [1, 1]} : vector<32x96xf32> to vector<16x4xf32>
    %67 = arith.truncf %66 : vector<16x4xf32> to vector<16x4xbf16>
    %68 = vector.extract_strided_slice %43 {offsets = [0, 36], sizes = [16, 4], strides = [1, 1]} : vector<32x96xf32> to vector<16x4xf32>
    %69 = arith.truncf %68 : vector<16x4xf32> to vector<16x4xbf16>
    %70 = vector.extract_strided_slice %43 {offsets = [0, 68], sizes = [16, 4], strides = [1, 1]} : vector<32x96xf32> to vector<16x4xf32>
    %71 = arith.truncf %70 : vector<16x4xf32> to vector<16x4xbf16>
    %cst_32 = arith.constant dense<0.000000e+00> : vector<16x16xf32>
    %72 = tpu.matmul %67, %69, %cst_32 {dimension_numbers = #tpu.dot_dimension_numbers<[1], [1], [0], [0], [0, 0, 1, 0], [], []>} : vector<16x4xbf16>, vector<16x4xbf16>, vector<16x16xf32> -> vector<16x16xf32>
    %73 = arith.addf %72, %45 : vector<16x16xf32>
    %cst_33 = arith.constant dense<0xFF800000> : vector<16xf32>
    %74 = vector.multi_reduction <maximumf>, %73, %cst_33 [1] : vector<16x16xf32> to vector<16xf32>
    %75 = vector.shape_cast %74 : vector<16xf32> to vector<16x1xf32>
    %76 = vector.broadcast %75 : vector<16x1xf32> to vector<16x16xf32>
    %77 = arith.subf %73, %76 : vector<16x16xf32>
    %78 = math.exp %77 : vector<16x16xf32>
    %cst_34 = arith.constant dense<0.000000e+00> : vector<16xf32>
    %79 = vector.multi_reduction <add>, %78, %cst_34 [1] : vector<16x16xf32> to vector<16xf32>
    %80 = vector.shape_cast %79 : vector<16xf32> to vector<16x1xf32>
    %81 = tpu.reciprocal %80 {approx = true} : vector<16x1xf32> -> vector<16x1xf32>
    %82 = vector.broadcast %81 : vector<16x1xf32> to vector<16x16xf32>
    %83 = arith.mulf %78, %82 : vector<16x16xf32>
    %84 = arith.truncf %83 : vector<16x16xf32> to vector<16x16xbf16>
    %cst_35 = arith.constant dense<0.000000e+00> : vector<16x4xf32>
    %85 = tpu.matmul %84, %71, %cst_35 {dimension_numbers = #tpu.dot_dimension_numbers<[1], [0], [0], [1], [0, 0, 1, 1], [], []>} : vector<16x16xbf16>, vector<16x4xbf16>, vector<16x4xf32> -> vector<16x4xf32>
    %86 = vector.extract_strided_slice %43 {offsets = [0, 8], sizes = [16, 4], strides = [1, 1]} : vector<32x96xf32> to vector<16x4xf32>
    %87 = arith.truncf %86 : vector<16x4xf32> to vector<16x4xbf16>
    %88 = vector.extract_strided_slice %43 {offsets = [0, 40], sizes = [16, 4], strides = [1, 1]} : vector<32x96xf32> to vector<16x4xf32>
    %89 = arith.truncf %88 : vector<16x4xf32> to vector<16x4xbf16>
    %90 = vector.extract_strided_slice %43 {offsets = [0, 72], sizes = [16, 4], strides = [1, 1]} : vector<32x96xf32> to vector<16x4xf32>
    %91 = arith.truncf %90 : vector<16x4xf32> to vector<16x4xbf16>
    %cst_36 = arith.constant dense<0.000000e+00> : vector<16x16xf32>
    %92 = tpu.matmul %87, %89, %cst_36 {dimension_numbers = #tpu.dot_dimension_numbers<[1], [1], [0], [0], [0, 0, 1, 0], [], []>} : vector<16x4xbf16>, vector<16x4xbf16>, vector<16x16xf32> -> vector<16x16xf32>
    %93 = arith.addf %92, %45 : vector<16x16xf32>
    %cst_37 = arith.constant dense<0xFF800000> : vector<16xf32>
    %94 = vector.multi_reduction <maximumf>, %93, %cst_37 [1] : vector<16x16xf32> to vector<16xf32>
    %95 = vector.shape_cast %94 : vector<16xf32> to vector<16x1xf32>
    %96 = vector.broadcast %95 : vector<16x1xf32> to vector<16x16xf32>
    %97 = arith.subf %93, %96 : vector<16x16xf32>
    %98 = math.exp %97 : vector<16x16xf32>
    %cst_38 = arith.constant dense<0.000000e+00> : vector<16xf32>
    %99 = vector.multi_reduction <add>, %98, %cst_38 [1] : vector<16x16xf32> to vector<16xf32>
    %100 = vector.shape_cast %99 : vector<16xf32> to vector<16x1xf32>
    %101 = tpu.reciprocal %100 {approx = true} : vector<16x1xf32> -> vector<16x1xf32>
    %102 = vector.broadcast %101 : vector<16x1xf32> to vector<16x16xf32>
    %103 = arith.mulf %98, %102 : vector<16x16xf32>
    %104 = arith.truncf %103 : vector<16x16xf32> to vector<16x16xbf16>
    %cst_39 = arith.constant dense<0.000000e+00> : vector<16x4xf32>
    %105 = tpu.matmul %104, %91, %cst_39 {dimension_numbers = #tpu.dot_dimension_numbers<[1], [0], [0], [1], [0, 0, 1, 1], [], []>} : vector<16x16xbf16>, vector<16x4xbf16>, vector<16x4xf32> -> vector<16x4xf32>
    %106 = vector.extract_strided_slice %43 {offsets = [0, 12], sizes = [16, 4], strides = [1, 1]} : vector<32x96xf32> to vector<16x4xf32>
    %107 = arith.truncf %106 : vector<16x4xf32> to vector<16x4xbf16>
    %108 = vector.extract_strided_slice %43 {offsets = [0, 44], sizes = [16, 4], strides = [1, 1]} : vector<32x96xf32> to vector<16x4xf32>
    %109 = arith.truncf %108 : vector<16x4xf32> to vector<16x4xbf16>
    %110 = vector.extract_strided_slice %43 {offsets = [0, 76], sizes = [16, 4], strides = [1, 1]} : vector<32x96xf32> to vector<16x4xf32>
    %111 = arith.truncf %110 : vector<16x4xf32> to vector<16x4xbf16>
    %cst_40 = arith.constant dense<0.000000e+00> : vector<16x16xf32>
    %112 = tpu.matmul %107, %109, %cst_40 {dimension_numbers = #tpu.dot_dimension_numbers<[1], [1], [0], [0], [0, 0, 1, 0], [], []>} : vector<16x4xbf16>, vector<16x4xbf16>, vector<16x16xf32> -> vector<16x16xf32>
    %113 = arith.addf %112, %45 : vector<16x16xf32>
    %cst_41 = arith.constant dense<0xFF800000> : vector<16xf32>
    %114 = vector.multi_reduction <maximumf>, %113, %cst_41 [1] : vector<16x16xf32> to vector<16xf32>
    %115 = vector.shape_cast %114 : vector<16xf32> to vector<16x1xf32>
    %116 = vector.broadcast %115 : vector<16x1xf32> to vector<16x16xf32>
    %117 = arith.subf %113, %116 : vector<16x16xf32>
    %118 = math.exp %117 : vector<16x16xf32>
    %cst_42 = arith.constant dense<0.000000e+00> : vector<16xf32>
    %119 = vector.multi_reduction <add>, %118, %cst_42 [1] : vector<16x16xf32> to vector<16xf32>
    %120 = vector.shape_cast %119 : vector<16xf32> to vector<16x1xf32>
    %121 = tpu.reciprocal %120 {approx = true} : vector<16x1xf32> -> vector<16x1xf32>
    %122 = vector.broadcast %121 : vector<16x1xf32> to vector<16x16xf32>
    %123 = arith.mulf %118, %122 : vector<16x16xf32>
    %124 = arith.truncf %123 : vector<16x16xf32> to vector<16x16xbf16>
    %cst_43 = arith.constant dense<0.000000e+00> : vector<16x4xf32>
    %125 = tpu.matmul %124, %111, %cst_43 {dimension_numbers = #tpu.dot_dimension_numbers<[1], [0], [0], [1], [0, 0, 1, 1], [], []>} : vector<16x16xbf16>, vector<16x4xbf16>, vector<16x4xf32> -> vector<16x4xf32>
    %126 = vector.extract_strided_slice %43 {offsets = [0, 16], sizes = [16, 4], strides = [1, 1]} : vector<32x96xf32> to vector<16x4xf32>
    %127 = arith.truncf %126 : vector<16x4xf32> to vector<16x4xbf16>
    %128 = vector.extract_strided_slice %43 {offsets = [0, 48], sizes = [16, 4], strides = [1, 1]} : vector<32x96xf32> to vector<16x4xf32>
    %129 = arith.truncf %128 : vector<16x4xf32> to vector<16x4xbf16>
    %130 = vector.extract_strided_slice %43 {offsets = [0, 80], sizes = [16, 4], strides = [1, 1]} : vector<32x96xf32> to vector<16x4xf32>
    %131 = arith.truncf %130 : vector<16x4xf32> to vector<16x4xbf16>
    %cst_44 = arith.constant dense<0.000000e+00> : vector<16x16xf32>
    %132 = tpu.matmul %127, %129, %cst_44 {dimension_numbers = #tpu.dot_dimension_numbers<[1], [1], [0], [0], [0, 0, 1, 0], [], []>} : vector<16x4xbf16>, vector<16x4xbf16>, vector<16x16xf32> -> vector<16x16xf32>
    %133 = arith.addf %132, %45 : vector<16x16xf32>
    %cst_45 = arith.constant dense<0xFF800000> : vector<16xf32>
    %134 = vector.multi_reduction <maximumf>, %133, %cst_45 [1] : vector<16x16xf32> to vector<16xf32>
    %135 = vector.shape_cast %134 : vector<16xf32> to vector<16x1xf32>
    %136 = vector.broadcast %135 : vector<16x1xf32> to vector<16x16xf32>
    %137 = arith.subf %133, %136 : vector<16x16xf32>
    %138 = math.exp %137 : vector<16x16xf32>
    %cst_46 = arith.constant dense<0.000000e+00> : vector<16xf32>
    %139 = vector.multi_reduction <add>, %138, %cst_46 [1] : vector<16x16xf32> to vector<16xf32>
    %140 = vector.shape_cast %139 : vector<16xf32> to vector<16x1xf32>
    %141 = tpu.reciprocal %140 {approx = true} : vector<16x1xf32> -> vector<16x1xf32>
    %142 = vector.broadcast %141 : vector<16x1xf32> to vector<16x16xf32>
    %143 = arith.mulf %138, %142 : vector<16x16xf32>
    %144 = arith.truncf %143 : vector<16x16xf32> to vector<16x16xbf16>
    %cst_47 = arith.constant dense<0.000000e+00> : vector<16x4xf32>
    %145 = tpu.matmul %144, %131, %cst_47 {dimension_numbers = #tpu.dot_dimension_numbers<[1], [0], [0], [1], [0, 0, 1, 1], [], []>} : vector<16x16xbf16>, vector<16x4xbf16>, vector<16x4xf32> -> vector<16x4xf32>
    %146 = vector.extract_strided_slice %43 {offsets = [0, 20], sizes = [16, 4], strides = [1, 1]} : vector<32x96xf32> to vector<16x4xf32>
    %147 = arith.truncf %146 : vector<16x4xf32> to vector<16x4xbf16>
    %148 = vector.extract_strided_slice %43 {offsets = [0, 52], sizes = [16, 4], strides = [1, 1]} : vector<32x96xf32> to vector<16x4xf32>
    %149 = arith.truncf %148 : vector<16x4xf32> to vector<16x4xbf16>
    %150 = vector.extract_strided_slice %43 {offsets = [0, 84], sizes = [16, 4], strides = [1, 1]} : vector<32x96xf32> to vector<16x4xf32>
    %151 = arith.truncf %150 : vector<16x4xf32> to vector<16x4xbf16>
    %cst_48 = arith.constant dense<0.000000e+00> : vector<16x16xf32>
    %152 = tpu.matmul %147, %149, %cst_48 {dimension_numbers = #tpu.dot_dimension_numbers<[1], [1], [0], [0], [0, 0, 1, 0], [], []>} : vector<16x4xbf16>, vector<16x4xbf16>, vector<16x16xf32> -> vector<16x16xf32>
    %153 = arith.addf %152, %45 : vector<16x16xf32>
    %cst_49 = arith.constant dense<0xFF800000> : vector<16xf32>
    %154 = vector.multi_reduction <maximumf>, %153, %cst_49 [1] : vector<16x16xf32> to vector<16xf32>
    %155 = vector.shape_cast %154 : vector<16xf32> to vector<16x1xf32>
    %156 = vector.broadcast %155 : vector<16x1xf32> to vector<16x16xf32>
    %157 = arith.subf %153, %156 : vector<16x16xf32>
    %158 = math.exp %157 : vector<16x16xf32>
    %cst_50 = arith.constant dense<0.000000e+00> : vector<16xf32>
    %159 = vector.multi_reduction <add>, %158, %cst_50 [1] : vector<16x16xf32> to vector<16xf32>
    %160 = vector.shape_cast %159 : vector<16xf32> to vector<16x1xf32>
    %161 = tpu.reciprocal %160 {approx = true} : vector<16x1xf32> -> vector<16x1xf32>
    %162 = vector.broadcast %161 : vector<16x1xf32> to vector<16x16xf32>
    %163 = arith.mulf %158, %162 : vector<16x16xf32>
    %164 = arith.truncf %163 : vector<16x16xf32> to vector<16x16xbf16>
    %cst_51 = arith.constant dense<0.000000e+00> : vector<16x4xf32>
    %165 = tpu.matmul %164, %151, %cst_51 {dimension_numbers = #tpu.dot_dimension_numbers<[1], [0], [0], [1], [0, 0, 1, 1], [], []>} : vector<16x16xbf16>, vector<16x4xbf16>, vector<16x4xf32> -> vector<16x4xf32>
    %166 = vector.extract_strided_slice %43 {offsets = [0, 24], sizes = [16, 4], strides = [1, 1]} : vector<32x96xf32> to vector<16x4xf32>
    %167 = arith.truncf %166 : vector<16x4xf32> to vector<16x4xbf16>
    %168 = vector.extract_strided_slice %43 {offsets = [0, 56], sizes = [16, 4], strides = [1, 1]} : vector<32x96xf32> to vector<16x4xf32>
    %169 = arith.truncf %168 : vector<16x4xf32> to vector<16x4xbf16>
    %170 = vector.extract_strided_slice %43 {offsets = [0, 88], sizes = [16, 4], strides = [1, 1]} : vector<32x96xf32> to vector<16x4xf32>
    %171 = arith.truncf %170 : vector<16x4xf32> to vector<16x4xbf16>
    %cst_52 = arith.constant dense<0.000000e+00> : vector<16x16xf32>
    %172 = tpu.matmul %167, %169, %cst_52 {dimension_numbers = #tpu.dot_dimension_numbers<[1], [1], [0], [0], [0, 0, 1, 0], [], []>} : vector<16x4xbf16>, vector<16x4xbf16>, vector<16x16xf32> -> vector<16x16xf32>
    %173 = arith.addf %172, %45 : vector<16x16xf32>
    %cst_53 = arith.constant dense<0xFF800000> : vector<16xf32>
    %174 = vector.multi_reduction <maximumf>, %173, %cst_53 [1] : vector<16x16xf32> to vector<16xf32>
    %175 = vector.shape_cast %174 : vector<16xf32> to vector<16x1xf32>
    %176 = vector.broadcast %175 : vector<16x1xf32> to vector<16x16xf32>
    %177 = arith.subf %173, %176 : vector<16x16xf32>
    %178 = math.exp %177 : vector<16x16xf32>
    %cst_54 = arith.constant dense<0.000000e+00> : vector<16xf32>
    %179 = vector.multi_reduction <add>, %178, %cst_54 [1] : vector<16x16xf32> to vector<16xf32>
    %180 = vector.shape_cast %179 : vector<16xf32> to vector<16x1xf32>
    %181 = tpu.reciprocal %180 {approx = true} : vector<16x1xf32> -> vector<16x1xf32>
    %182 = vector.broadcast %181 : vector<16x1xf32> to vector<16x16xf32>
    %183 = arith.mulf %178, %182 : vector<16x16xf32>
    %184 = arith.truncf %183 : vector<16x16xf32> to vector<16x16xbf16>
    %cst_55 = arith.constant dense<0.000000e+00> : vector<16x4xf32>
    %185 = tpu.matmul %184, %171, %cst_55 {dimension_numbers = #tpu.dot_dimension_numbers<[1], [0], [0], [1], [0, 0, 1, 1], [], []>} : vector<16x16xbf16>, vector<16x4xbf16>, vector<16x4xf32> -> vector<16x4xf32>
    %186 = vector.extract_strided_slice %43 {offsets = [0, 28], sizes = [16, 4], strides = [1, 1]} : vector<32x96xf32> to vector<16x4xf32>
    %187 = arith.truncf %186 : vector<16x4xf32> to vector<16x4xbf16>
    %188 = vector.extract_strided_slice %43 {offsets = [0, 60], sizes = [16, 4], strides = [1, 1]} : vector<32x96xf32> to vector<16x4xf32>
    %189 = arith.truncf %188 : vector<16x4xf32> to vector<16x4xbf16>
    %190 = vector.extract_strided_slice %43 {offsets = [0, 92], sizes = [16, 4], strides = [1, 1]} : vector<32x96xf32> to vector<16x4xf32>
    %191 = arith.truncf %190 : vector<16x4xf32> to vector<16x4xbf16>
    %cst_56 = arith.constant dense<0.000000e+00> : vector<16x16xf32>
    %192 = tpu.matmul %187, %189, %cst_56 {dimension_numbers = #tpu.dot_dimension_numbers<[1], [1], [0], [0], [0, 0, 1, 0], [], []>} : vector<16x4xbf16>, vector<16x4xbf16>, vector<16x16xf32> -> vector<16x16xf32>
    %193 = arith.addf %192, %45 : vector<16x16xf32>
    %cst_57 = arith.constant dense<0xFF800000> : vector<16xf32>
    %194 = vector.multi_reduction <maximumf>, %193, %cst_57 [1] : vector<16x16xf32> to vector<16xf32>
    %195 = vector.shape_cast %194 : vector<16xf32> to vector<16x1xf32>
    %196 = vector.broadcast %195 : vector<16x1xf32> to vector<16x16xf32>
    %197 = arith.subf %193, %196 : vector<16x16xf32>
    %198 = math.exp %197 : vector<16x16xf32>
    %cst_58 = arith.constant dense<0.000000e+00> : vector<16xf32>
    %199 = vector.multi_reduction <add>, %198, %cst_58 [1] : vector<16x16xf32> to vector<16xf32>
    %200 = vector.shape_cast %199 : vector<16xf32> to vector<16x1xf32>
    %201 = tpu.reciprocal %200 {approx = true} : vector<16x1xf32> -> vector<16x1xf32>
    %202 = vector.broadcast %201 : vector<16x1xf32> to vector<16x16xf32>
    %203 = arith.mulf %198, %202 : vector<16x16xf32>
    %204 = arith.truncf %203 : vector<16x16xf32> to vector<16x16xbf16>
    %cst_59 = arith.constant dense<0.000000e+00> : vector<16x4xf32>
    %205 = tpu.matmul %204, %191, %cst_59 {dimension_numbers = #tpu.dot_dimension_numbers<[1], [0], [0], [1], [0, 0, 1, 1], [], []>} : vector<16x16xbf16>, vector<16x4xbf16>, vector<16x4xf32> -> vector<16x4xf32>
    %206 = tpu.concatenate %65, %85, %105, %125, %145, %165, %185, %205 in 1 : vector<16x4xf32>, vector<16x4xf32>, vector<16x4xf32>, vector<16x4xf32>, vector<16x4xf32>, vector<16x4xf32>, vector<16x4xf32>, vector<16x4xf32> -> vector<16x32xf32>
    %207 = vector.extract_strided_slice %43 {offsets = [16, 0], sizes = [16, 4], strides = [1, 1]} : vector<32x96xf32> to vector<16x4xf32>
    %208 = arith.truncf %207 : vector<16x4xf32> to vector<16x4xbf16>
    %209 = vector.extract_strided_slice %43 {offsets = [16, 32], sizes = [16, 4], strides = [1, 1]} : vector<32x96xf32> to vector<16x4xf32>
    %210 = arith.truncf %209 : vector<16x4xf32> to vector<16x4xbf16>
    %211 = vector.extract_strided_slice %43 {offsets = [16, 64], sizes = [16, 4], strides = [1, 1]} : vector<32x96xf32> to vector<16x4xf32>
    %212 = arith.truncf %211 : vector<16x4xf32> to vector<16x4xbf16>
    %cst_60 = arith.constant dense<0.000000e+00> : vector<16x16xf32>
    %213 = tpu.matmul %208, %210, %cst_60 {dimension_numbers = #tpu.dot_dimension_numbers<[1], [1], [0], [0], [0, 0, 1, 0], [], []>} : vector<16x4xbf16>, vector<16x4xbf16>, vector<16x16xf32> -> vector<16x16xf32>
    %214 = arith.addf %213, %45 : vector<16x16xf32>
    %cst_61 = arith.constant dense<0xFF800000> : vector<16xf32>
    %215 = vector.multi_reduction <maximumf>, %214, %cst_61 [1] : vector<16x16xf32> to vector<16xf32>
    %216 = vector.shape_cast %215 : vector<16xf32> to vector<16x1xf32>
    %217 = vector.broadcast %216 : vector<16x1xf32> to vector<16x16xf32>
    %218 = arith.subf %214, %217 : vector<16x16xf32>
    %219 = math.exp %218 : vector<16x16xf32>
    %cst_62 = arith.constant dense<0.000000e+00> : vector<16xf32>
    %220 = vector.multi_reduction <add>, %219, %cst_62 [1] : vector<16x16xf32> to vector<16xf32>
    %221 = vector.shape_cast %220 : vector<16xf32> to vector<16x1xf32>
    %222 = tpu.reciprocal %221 {approx = true} : vector<16x1xf32> -> vector<16x1xf32>
    %223 = vector.broadcast %222 : vector<16x1xf32> to vector<16x16xf32>
    %224 = arith.mulf %219, %223 : vector<16x16xf32>
    %225 = arith.truncf %224 : vector<16x16xf32> to vector<16x16xbf16>
    %cst_63 = arith.constant dense<0.000000e+00> : vector<16x4xf32>
    %226 = tpu.matmul %225, %212, %cst_63 {dimension_numbers = #tpu.dot_dimension_numbers<[1], [0], [0], [1], [0, 0, 1, 1], [], []>} : vector<16x16xbf16>, vector<16x4xbf16>, vector<16x4xf32> -> vector<16x4xf32>
    %227 = vector.extract_strided_slice %43 {offsets = [16, 4], sizes = [16, 4], strides = [1, 1]} : vector<32x96xf32> to vector<16x4xf32>
    %228 = arith.truncf %227 : vector<16x4xf32> to vector<16x4xbf16>
    %229 = vector.extract_strided_slice %43 {offsets = [16, 36], sizes = [16, 4], strides = [1, 1]} : vector<32x96xf32> to vector<16x4xf32>
    %230 = arith.truncf %229 : vector<16x4xf32> to vector<16x4xbf16>
    %231 = vector.extract_strided_slice %43 {offsets = [16, 68], sizes = [16, 4], strides = [1, 1]} : vector<32x96xf32> to vector<16x4xf32>
    %232 = arith.truncf %231 : vector<16x4xf32> to vector<16x4xbf16>
    %cst_64 = arith.constant dense<0.000000e+00> : vector<16x16xf32>
    %233 = tpu.matmul %228, %230, %cst_64 {dimension_numbers = #tpu.dot_dimension_numbers<[1], [1], [0], [0], [0, 0, 1, 0], [], []>} : vector<16x4xbf16>, vector<16x4xbf16>, vector<16x16xf32> -> vector<16x16xf32>
    %234 = arith.addf %233, %45 : vector<16x16xf32>
    %cst_65 = arith.constant dense<0xFF800000> : vector<16xf32>
    %235 = vector.multi_reduction <maximumf>, %234, %cst_65 [1] : vector<16x16xf32> to vector<16xf32>
    %236 = vector.shape_cast %235 : vector<16xf32> to vector<16x1xf32>
    %237 = vector.broadcast %236 : vector<16x1xf32> to vector<16x16xf32>
    %238 = arith.subf %234, %237 : vector<16x16xf32>
    %239 = math.exp %238 : vector<16x16xf32>
    %cst_66 = arith.constant dense<0.000000e+00> : vector<16xf32>
    %240 = vector.multi_reduction <add>, %239, %cst_66 [1] : vector<16x16xf32> to vector<16xf32>
    %241 = vector.shape_cast %240 : vector<16xf32> to vector<16x1xf32>
    %242 = tpu.reciprocal %241 {approx = true} : vector<16x1xf32> -> vector<16x1xf32>
    %243 = vector.broadcast %242 : vector<16x1xf32> to vector<16x16xf32>
    %244 = arith.mulf %239, %243 : vector<16x16xf32>
    %245 = arith.truncf %244 : vector<16x16xf32> to vector<16x16xbf16>
    %cst_67 = arith.constant dense<0.000000e+00> : vector<16x4xf32>
    %246 = tpu.matmul %245, %232, %cst_67 {dimension_numbers = #tpu.dot_dimension_numbers<[1], [0], [0], [1], [0, 0, 1, 1], [], []>} : vector<16x16xbf16>, vector<16x4xbf16>, vector<16x4xf32> -> vector<16x4xf32>
    %247 = vector.extract_strided_slice %43 {offsets = [16, 8], sizes = [16, 4], strides = [1, 1]} : vector<32x96xf32> to vector<16x4xf32>
    %248 = arith.truncf %247 : vector<16x4xf32> to vector<16x4xbf16>
    %249 = vector.extract_strided_slice %43 {offsets = [16, 40], sizes = [16, 4], strides = [1, 1]} : vector<32x96xf32> to vector<16x4xf32>
    %250 = arith.truncf %249 : vector<16x4xf32> to vector<16x4xbf16>
    %251 = vector.extract_strided_slice %43 {offsets = [16, 72], sizes = [16, 4], strides = [1, 1]} : vector<32x96xf32> to vector<16x4xf32>
    %252 = arith.truncf %251 : vector<16x4xf32> to vector<16x4xbf16>
    %cst_68 = arith.constant dense<0.000000e+00> : vector<16x16xf32>
    %253 = tpu.matmul %248, %250, %cst_68 {dimension_numbers = #tpu.dot_dimension_numbers<[1], [1], [0], [0], [0, 0, 1, 0], [], []>} : vector<16x4xbf16>, vector<16x4xbf16>, vector<16x16xf32> -> vector<16x16xf32>
    %254 = arith.addf %253, %45 : vector<16x16xf32>
    %cst_69 = arith.constant dense<0xFF800000> : vector<16xf32>
    %255 = vector.multi_reduction <maximumf>, %254, %cst_69 [1] : vector<16x16xf32> to vector<16xf32>
    %256 = vector.shape_cast %255 : vector<16xf32> to vector<16x1xf32>
    %257 = vector.broadcast %256 : vector<16x1xf32> to vector<16x16xf32>
    %258 = arith.subf %254, %257 : vector<16x16xf32>
    %259 = math.exp %258 : vector<16x16xf32>
    %cst_70 = arith.constant dense<0.000000e+00> : vector<16xf32>
    %260 = vector.multi_reduction <add>, %259, %cst_70 [1] : vector<16x16xf32> to vector<16xf32>
    %261 = vector.shape_cast %260 : vector<16xf32> to vector<16x1xf32>
    %262 = tpu.reciprocal %261 {approx = true} : vector<16x1xf32> -> vector<16x1xf32>
    %263 = vector.broadcast %262 : vector<16x1xf32> to vector<16x16xf32>
    %264 = arith.mulf %259, %263 : vector<16x16xf32>
    %265 = arith.truncf %264 : vector<16x16xf32> to vector<16x16xbf16>
    %cst_71 = arith.constant dense<0.000000e+00> : vector<16x4xf32>
    %266 = tpu.matmul %265, %252, %cst_71 {dimension_numbers = #tpu.dot_dimension_numbers<[1], [0], [0], [1], [0, 0, 1, 1], [], []>} : vector<16x16xbf16>, vector<16x4xbf16>, vector<16x4xf32> -> vector<16x4xf32>
    %267 = vector.extract_strided_slice %43 {offsets = [16, 12], sizes = [16, 4], strides = [1, 1]} : vector<32x96xf32> to vector<16x4xf32>
    %268 = arith.truncf %267 : vector<16x4xf32> to vector<16x4xbf16>
    %269 = vector.extract_strided_slice %43 {offsets = [16, 44], sizes = [16, 4], strides = [1, 1]} : vector<32x96xf32> to vector<16x4xf32>
    %270 = arith.truncf %269 : vector<16x4xf32> to vector<16x4xbf16>
    %271 = vector.extract_strided_slice %43 {offsets = [16, 76], sizes = [16, 4], strides = [1, 1]} : vector<32x96xf32> to vector<16x4xf32>
    %272 = arith.truncf %271 : vector<16x4xf32> to vector<16x4xbf16>
    %cst_72 = arith.constant dense<0.000000e+00> : vector<16x16xf32>
    %273 = tpu.matmul %268, %270, %cst_72 {dimension_numbers = #tpu.dot_dimension_numbers<[1], [1], [0], [0], [0, 0, 1, 0], [], []>} : vector<16x4xbf16>, vector<16x4xbf16>, vector<16x16xf32> -> vector<16x16xf32>
    %274 = arith.addf %273, %45 : vector<16x16xf32>
    %cst_73 = arith.constant dense<0xFF800000> : vector<16xf32>
    %275 = vector.multi_reduction <maximumf>, %274, %cst_73 [1] : vector<16x16xf32> to vector<16xf32>
    %276 = vector.shape_cast %275 : vector<16xf32> to vector<16x1xf32>
    %277 = vector.broadcast %276 : vector<16x1xf32> to vector<16x16xf32>
    %278 = arith.subf %274, %277 : vector<16x16xf32>
    %279 = math.exp %278 : vector<16x16xf32>
    %cst_74 = arith.constant dense<0.000000e+00> : vector<16xf32>
    %280 = vector.multi_reduction <add>, %279, %cst_74 [1] : vector<16x16xf32> to vector<16xf32>
    %281 = vector.shape_cast %280 : vector<16xf32> to vector<16x1xf32>
    %282 = tpu.reciprocal %281 {approx = true} : vector<16x1xf32> -> vector<16x1xf32>
    %283 = vector.broadcast %282 : vector<16x1xf32> to vector<16x16xf32>
    %284 = arith.mulf %279, %283 : vector<16x16xf32>
    %285 = arith.truncf %284 : vector<16x16xf32> to vector<16x16xbf16>
    %cst_75 = arith.constant dense<0.000000e+00> : vector<16x4xf32>
    %286 = tpu.matmul %285, %272, %cst_75 {dimension_numbers = #tpu.dot_dimension_numbers<[1], [0], [0], [1], [0, 0, 1, 1], [], []>} : vector<16x16xbf16>, vector<16x4xbf16>, vector<16x4xf32> -> vector<16x4xf32>
    %287 = vector.extract_strided_slice %43 {offsets = [16, 16], sizes = [16, 4], strides = [1, 1]} : vector<32x96xf32> to vector<16x4xf32>
    %288 = arith.truncf %287 : vector<16x4xf32> to vector<16x4xbf16>
    %289 = vector.extract_strided_slice %43 {offsets = [16, 48], sizes = [16, 4], strides = [1, 1]} : vector<32x96xf32> to vector<16x4xf32>
    %290 = arith.truncf %289 : vector<16x4xf32> to vector<16x4xbf16>
    %291 = vector.extract_strided_slice %43 {offsets = [16, 80], sizes = [16, 4], strides = [1, 1]} : vector<32x96xf32> to vector<16x4xf32>
    %292 = arith.truncf %291 : vector<16x4xf32> to vector<16x4xbf16>
    %cst_76 = arith.constant dense<0.000000e+00> : vector<16x16xf32>
    %293 = tpu.matmul %288, %290, %cst_76 {dimension_numbers = #tpu.dot_dimension_numbers<[1], [1], [0], [0], [0, 0, 1, 0], [], []>} : vector<16x4xbf16>, vector<16x4xbf16>, vector<16x16xf32> -> vector<16x16xf32>
    %294 = arith.addf %293, %45 : vector<16x16xf32>
    %cst_77 = arith.constant dense<0xFF800000> : vector<16xf32>
    %295 = vector.multi_reduction <maximumf>, %294, %cst_77 [1] : vector<16x16xf32> to vector<16xf32>
    %296 = vector.shape_cast %295 : vector<16xf32> to vector<16x1xf32>
    %297 = vector.broadcast %296 : vector<16x1xf32> to vector<16x16xf32>
    %298 = arith.subf %294, %297 : vector<16x16xf32>
    %299 = math.exp %298 : vector<16x16xf32>
    %cst_78 = arith.constant dense<0.000000e+00> : vector<16xf32>
    %300 = vector.multi_reduction <add>, %299, %cst_78 [1] : vector<16x16xf32> to vector<16xf32>
    %301 = vector.shape_cast %300 : vector<16xf32> to vector<16x1xf32>
    %302 = tpu.reciprocal %301 {approx = true} : vector<16x1xf32> -> vector<16x1xf32>
    %303 = vector.broadcast %302 : vector<16x1xf32> to vector<16x16xf32>
    %304 = arith.mulf %299, %303 : vector<16x16xf32>
    %305 = arith.truncf %304 : vector<16x16xf32> to vector<16x16xbf16>
    %cst_79 = arith.constant dense<0.000000e+00> : vector<16x4xf32>
    %306 = tpu.matmul %305, %292, %cst_79 {dimension_numbers = #tpu.dot_dimension_numbers<[1], [0], [0], [1], [0, 0, 1, 1], [], []>} : vector<16x16xbf16>, vector<16x4xbf16>, vector<16x4xf32> -> vector<16x4xf32>
    %307 = vector.extract_strided_slice %43 {offsets = [16, 20], sizes = [16, 4], strides = [1, 1]} : vector<32x96xf32> to vector<16x4xf32>
    %308 = arith.truncf %307 : vector<16x4xf32> to vector<16x4xbf16>
    %309 = vector.extract_strided_slice %43 {offsets = [16, 52], sizes = [16, 4], strides = [1, 1]} : vector<32x96xf32> to vector<16x4xf32>
    %310 = arith.truncf %309 : vector<16x4xf32> to vector<16x4xbf16>
    %311 = vector.extract_strided_slice %43 {offsets = [16, 84], sizes = [16, 4], strides = [1, 1]} : vector<32x96xf32> to vector<16x4xf32>
    %312 = arith.truncf %311 : vector<16x4xf32> to vector<16x4xbf16>
    %cst_80 = arith.constant dense<0.000000e+00> : vector<16x16xf32>
    %313 = tpu.matmul %308, %310, %cst_80 {dimension_numbers = #tpu.dot_dimension_numbers<[1], [1], [0], [0], [0, 0, 1, 0], [], []>} : vector<16x4xbf16>, vector<16x4xbf16>, vector<16x16xf32> -> vector<16x16xf32>
    %314 = arith.addf %313, %45 : vector<16x16xf32>
    %cst_81 = arith.constant dense<0xFF800000> : vector<16xf32>
    %315 = vector.multi_reduction <maximumf>, %314, %cst_81 [1] : vector<16x16xf32> to vector<16xf32>
    %316 = vector.shape_cast %315 : vector<16xf32> to vector<16x1xf32>
    %317 = vector.broadcast %316 : vector<16x1xf32> to vector<16x16xf32>
    %318 = arith.subf %314, %317 : vector<16x16xf32>
    %319 = math.exp %318 : vector<16x16xf32>
    %cst_82 = arith.constant dense<0.000000e+00> : vector<16xf32>
    %320 = vector.multi_reduction <add>, %319, %cst_82 [1] : vector<16x16xf32> to vector<16xf32>
    %321 = vector.shape_cast %320 : vector<16xf32> to vector<16x1xf32>
    %322 = tpu.reciprocal %321 {approx = true} : vector<16x1xf32> -> vector<16x1xf32>
    %323 = vector.broadcast %322 : vector<16x1xf32> to vector<16x16xf32>
    %324 = arith.mulf %319, %323 : vector<16x16xf32>
    %325 = arith.truncf %324 : vector<16x16xf32> to vector<16x16xbf16>
    %cst_83 = arith.constant dense<0.000000e+00> : vector<16x4xf32>
    %326 = tpu.matmul %325, %312, %cst_83 {dimension_numbers = #tpu.dot_dimension_numbers<[1], [0], [0], [1], [0, 0, 1, 1], [], []>} : vector<16x16xbf16>, vector<16x4xbf16>, vector<16x4xf32> -> vector<16x4xf32>
    %327 = vector.extract_strided_slice %43 {offsets = [16, 24], sizes = [16, 4], strides = [1, 1]} : vector<32x96xf32> to vector<16x4xf32>
    %328 = arith.truncf %327 : vector<16x4xf32> to vector<16x4xbf16>
    %329 = vector.extract_strided_slice %43 {offsets = [16, 56], sizes = [16, 4], strides = [1, 1]} : vector<32x96xf32> to vector<16x4xf32>
    %330 = arith.truncf %329 : vector<16x4xf32> to vector<16x4xbf16>
    %331 = vector.extract_strided_slice %43 {offsets = [16, 88], sizes = [16, 4], strides = [1, 1]} : vector<32x96xf32> to vector<16x4xf32>
    %332 = arith.truncf %331 : vector<16x4xf32> to vector<16x4xbf16>
    %cst_84 = arith.constant dense<0.000000e+00> : vector<16x16xf32>
    %333 = tpu.matmul %328, %330, %cst_84 {dimension_numbers = #tpu.dot_dimension_numbers<[1], [1], [0], [0], [0, 0, 1, 0], [], []>} : vector<16x4xbf16>, vector<16x4xbf16>, vector<16x16xf32> -> vector<16x16xf32>
    %334 = arith.addf %333, %45 : vector<16x16xf32>
    %cst_85 = arith.constant dense<0xFF800000> : vector<16xf32>
    %335 = vector.multi_reduction <maximumf>, %334, %cst_85 [1] : vector<16x16xf32> to vector<16xf32>
    %336 = vector.shape_cast %335 : vector<16xf32> to vector<16x1xf32>
    %337 = vector.broadcast %336 : vector<16x1xf32> to vector<16x16xf32>
    %338 = arith.subf %334, %337 : vector<16x16xf32>
    %339 = math.exp %338 : vector<16x16xf32>
    %cst_86 = arith.constant dense<0.000000e+00> : vector<16xf32>
    %340 = vector.multi_reduction <add>, %339, %cst_86 [1] : vector<16x16xf32> to vector<16xf32>
    %341 = vector.shape_cast %340 : vector<16xf32> to vector<16x1xf32>
    %342 = tpu.reciprocal %341 {approx = true} : vector<16x1xf32> -> vector<16x1xf32>
    %343 = vector.broadcast %342 : vector<16x1xf32> to vector<16x16xf32>
    %344 = arith.mulf %339, %343 : vector<16x16xf32>
    %345 = arith.truncf %344 : vector<16x16xf32> to vector<16x16xbf16>
    %cst_87 = arith.constant dense<0.000000e+00> : vector<16x4xf32>
    %346 = tpu.matmul %345, %332, %cst_87 {dimension_numbers = #tpu.dot_dimension_numbers<[1], [0], [0], [1], [0, 0, 1, 1], [], []>} : vector<16x16xbf16>, vector<16x4xbf16>, vector<16x4xf32> -> vector<16x4xf32>
    %347 = vector.extract_strided_slice %43 {offsets = [16, 28], sizes = [16, 4], strides = [1, 1]} : vector<32x96xf32> to vector<16x4xf32>
    %348 = arith.truncf %347 : vector<16x4xf32> to vector<16x4xbf16>
    %349 = vector.extract_strided_slice %43 {offsets = [16, 60], sizes = [16, 4], strides = [1, 1]} : vector<32x96xf32> to vector<16x4xf32>
    %350 = arith.truncf %349 : vector<16x4xf32> to vector<16x4xbf16>
    %351 = vector.extract_strided_slice %43 {offsets = [16, 92], sizes = [16, 4], strides = [1, 1]} : vector<32x96xf32> to vector<16x4xf32>
    %352 = arith.truncf %351 : vector<16x4xf32> to vector<16x4xbf16>
    %cst_88 = arith.constant dense<0.000000e+00> : vector<16x16xf32>
    %353 = tpu.matmul %348, %350, %cst_88 {dimension_numbers = #tpu.dot_dimension_numbers<[1], [1], [0], [0], [0, 0, 1, 0], [], []>} : vector<16x4xbf16>, vector<16x4xbf16>, vector<16x16xf32> -> vector<16x16xf32>
    %354 = arith.addf %353, %45 : vector<16x16xf32>
    %cst_89 = arith.constant dense<0xFF800000> : vector<16xf32>
    %355 = vector.multi_reduction <maximumf>, %354, %cst_89 [1] : vector<16x16xf32> to vector<16xf32>
    %356 = vector.shape_cast %355 : vector<16xf32> to vector<16x1xf32>
    %357 = vector.broadcast %356 : vector<16x1xf32> to vector<16x16xf32>
    %358 = arith.subf %354, %357 : vector<16x16xf32>
    %359 = math.exp %358 : vector<16x16xf32>
    %cst_90 = arith.constant dense<0.000000e+00> : vector<16xf32>
    %360 = vector.multi_reduction <add>, %359, %cst_90 [1] : vector<16x16xf32> to vector<16xf32>
    %361 = vector.shape_cast %360 : vector<16xf32> to vector<16x1xf32>
    %362 = tpu.reciprocal %361 {approx = true} : vector<16x1xf32> -> vector<16x1xf32>
    %363 = vector.broadcast %362 : vector<16x1xf32> to vector<16x16xf32>
    %364 = arith.mulf %359, %363 : vector<16x16xf32>
    %365 = arith.truncf %364 : vector<16x16xf32> to vector<16x16xbf16>
    %cst_91 = arith.constant dense<0.000000e+00> : vector<16x4xf32>
    %366 = tpu.matmul %365, %352, %cst_91 {dimension_numbers = #tpu.dot_dimension_numbers<[1], [0], [0], [1], [0, 0, 1, 1], [], []>} : vector<16x16xbf16>, vector<16x4xbf16>, vector<16x4xf32> -> vector<16x4xf32>
    %367 = tpu.concatenate %226, %246, %266, %286, %306, %326, %346, %366 in 1 : vector<16x4xf32>, vector<16x4xf32>, vector<16x4xf32>, vector<16x4xf32>, vector<16x4xf32>, vector<16x4xf32>, vector<16x4xf32>, vector<16x4xf32> -> vector<16x32xf32>
    %368 = tpu.concatenate %206, %367 in 0 : vector<16x32xf32>, vector<16x32xf32> -> vector<32x32xf32>
    %369 = arith.truncf %368 : vector<32x32xf32> to vector<32x32xbf16>
    %c0_92 = arith.constant 0 : index
    %c0_93 = arith.constant 0 : index
    %c0_94 = arith.constant 0 : index
    %370 = vector.load %arg4[%c0_92, %c0_93, %c0_94] : memref<1x32x32xbf16, #tpu.memory_space<vmem>>, vector<1x32x32xbf16>
    %371 = vector.shape_cast %370 : vector<1x32x32xbf16> to vector<32x32xbf16>
    %cst_95 = arith.constant dense<0.000000e+00> : vector<32x32xf32>
    %372 = tpu.matmul %369, %371, %cst_95 {dimension_numbers = #tpu.dot_dimension_numbers<[1], [0], [0], [1], [0, 0, 1, 1], [], []>} : vector<32x32xbf16>, vector<32x32xbf16>, vector<32x32xf32> -> vector<32x32xf32>
    %373 = arith.addf %3, %372 : vector<32x32xf32>
    %374 = vector.broadcast %9 : vector<1x32xf32> to vector<32x32xf32>
    %375 = arith.addf %373, %374 : vector<32x32xf32>
    %cst_96 = arith.constant dense<0.000000e+00> : vector<32xf32>
    %376 = vector.multi_reduction <add>, %375, %cst_96 [1] : vector<32x32xf32> to vector<32xf32>
    %377 = vector.shape_cast %376 : vector<32xf32> to vector<32x1xf32>
    %cst_97 = arith.constant 3.200000e+01 : f32
    %378 = vector.broadcast %cst_97 : f32 to vector<32x1xf32>
    %379 = arith.divf %377, %378 : vector<32x1xf32>
    %380 = vector.broadcast %379 : vector<32x1xf32> to vector<32x32xf32>
    %381 = arith.subf %375, %380 : vector<32x32xf32>
    %382 = arith.mulf %381, %381 : vector<32x32xf32>
    %cst_98 = arith.constant dense<0.000000e+00> : vector<32xf32>
    %383 = vector.multi_reduction <add>, %382, %cst_98 [1] : vector<32x32xf32> to vector<32xf32>
    %384 = vector.shape_cast %383 : vector<32xf32> to vector<32x1xf32>
    %cst_99 = arith.constant 3.200000e+01 : f32
    %385 = vector.broadcast %cst_99 : f32 to vector<32x1xf32>
    %386 = arith.divf %384, %385 : vector<32x1xf32>
    %387 = vector.broadcast %379 : vector<32x1xf32> to vector<32x32xf32>
    %388 = arith.subf %375, %387 : vector<32x32xf32>
    %cst_100 = arith.constant 9.99999974E-6 : f32
    %389 = vector.broadcast %cst_100 : f32 to vector<32x1xf32>
    %390 = arith.addf %386, %389 : vector<32x1xf32>
    %391 = math.rsqrt %390 : vector<32x1xf32>
    %392 = vector.broadcast %391 : vector<32x1xf32> to vector<32x32xf32>
    %393 = arith.mulf %388, %392 : vector<32x32xf32>
    %394 = vector.broadcast %11 : vector<1x32xf32> to vector<32x32xf32>
    %395 = arith.mulf %393, %394 : vector<32x32xf32>
    %396 = vector.broadcast %13 : vector<1x32xf32> to vector<32x32xf32>
    %397 = arith.addf %395, %396 : vector<32x32xf32>
    %398 = arith.truncf %397 : vector<32x32xf32> to vector<32x32xbf16>
    %c0_101 = arith.constant 0 : index
    %c0_102 = arith.constant 0 : index
    %c0_103 = arith.constant 0 : index
    %399 = vector.load %arg5[%c0_101, %c0_102, %c0_103] : memref<1x32x64xbf16, #tpu.memory_space<vmem>>, vector<1x32x64xbf16>
    %400 = vector.shape_cast %399 : vector<1x32x64xbf16> to vector<32x64xbf16>
    %cst_104 = arith.constant dense<0.000000e+00> : vector<32x64xf32>
    %401 = tpu.matmul %398, %400, %cst_104 {dimension_numbers = #tpu.dot_dimension_numbers<[1], [0], [0], [1], [0, 0, 1, 1], [], []>} : vector<32x32xbf16>, vector<32x64xbf16>, vector<32x64xf32> -> vector<32x64xf32>
    %402 = vector.broadcast %15 : vector<1x64xf32> to vector<32x64xf32>
    %403 = arith.addf %401, %402 : vector<32x64xf32>
    %cst_105 = arith.constant 5.000000e-01 : f32
    %404 = vector.broadcast %cst_105 : f32 to vector<32x64xf32>
    %405 = arith.mulf %404, %403 : vector<32x64xf32>
    %cst_106 = arith.constant 4.471500e-02 : f32
    %406 = vector.broadcast %cst_106 : f32 to vector<32x64xf32>
    %407 = arith.mulf %406, %403 : vector<32x64xf32>
    %408 = arith.mulf %407, %403 : vector<32x64xf32>
    %409 = arith.mulf %408, %403 : vector<32x64xf32>
    %410 = arith.addf %403, %409 : vector<32x64xf32>
    %cst_107 = arith.constant 0.797884583 : f32
    %411 = vector.broadcast %cst_107 : f32 to vector<32x64xf32>
    %412 = arith.mulf %411, %410 : vector<32x64xf32>
    %413 = math.tanh %412 : vector<32x64xf32>
    %cst_108 = arith.constant 1.000000e+00 : f32
    %414 = vector.broadcast %cst_108 : f32 to vector<32x64xf32>
    %415 = arith.addf %414, %413 : vector<32x64xf32>
    %416 = arith.mulf %405, %415 : vector<32x64xf32>
    %417 = arith.truncf %416 : vector<32x64xf32> to vector<32x64xbf16>
    %c0_109 = arith.constant 0 : index
    %c0_110 = arith.constant 0 : index
    %c0_111 = arith.constant 0 : index
    %418 = vector.load %arg6[%c0_109, %c0_110, %c0_111] : memref<1x64x32xbf16, #tpu.memory_space<vmem>>, vector<1x64x32xbf16>
    %419 = vector.shape_cast %418 : vector<1x64x32xbf16> to vector<64x32xbf16>
    %cst_112 = arith.constant dense<0.000000e+00> : vector<32x32xf32>
    %420 = tpu.matmul %417, %419, %cst_112 {dimension_numbers = #tpu.dot_dimension_numbers<[1], [0], [0], [1], [0, 0, 1, 1], [], []>} : vector<32x64xbf16>, vector<64x32xbf16>, vector<32x32xf32> -> vector<32x32xf32>
    %421 = arith.addf %375, %420 : vector<32x32xf32>
    %422 = vector.broadcast %17 : vector<1x32xf32> to vector<32x32xf32>
    %423 = arith.addf %421, %422 : vector<32x32xf32>
    %c0_113 = arith.constant 0 : index
    %c0_114 = arith.constant 0 : index
    %424 = vector.load %arg10[%c0_113, %c0_114] : memref<32x32xf32, #tpu.memory_space<vmem>>, vector<32x32xf32>
    tpu.vector_store %arg10[%c0_113, %c0_114], %423 {strides = array<i32>} : memref<32x32xf32, #tpu.memory_space<vmem>>, vector<32x32xf32>,
    %c1_i32 = arith.constant 1 : i32
    %425 = arith.cmpi eq, %arg1, %c1_i32 : i32
    %426 = arith.extui %425 : i1 to i32
    %c0_i32_115 = arith.constant 0 : i32
    %427 = arith.cmpi ne, %426, %c0_i32_115 : i32
    scf.if %427 {
      %428 = vector.shape_cast %423 : vector<32x32xf32> to vector<2x16x32xf32>
      %c0_116 = arith.constant 0 : index
      %c0_117 = arith.constant 0 : index
      %c0_118 = arith.constant 0 : index
      %429 = vector.load %arg9[%c0_116, %c0_117, %c0_118] : memref<2x16x32xf32, #tpu.memory_space<vmem>>, vector<2x16x32xf32>
      tpu.vector_store %arg9[%c0_116, %c0_117, %c0_118], %428 {strides = array<i32>} : memref<2x16x32xf32, #tpu.memory_space<vmem>>, vector<2x16x32xf32>,
    } else {
    }
    return
  }
  func.func @transform_0(%arg0: i32, %arg1: i32) -> (i32, i32, i32) {
    %c0_i32 = arith.constant 0 : i32
    %c0_i32_0 = arith.constant 0 : i32
    %c0_i32_1 = arith.constant 0 : i32
    return %arg0, %c0_i32, %c0_i32_0 : i32, i32, i32
  }
  func.func @transform_1(%arg0: i32, %arg1: i32) -> (i32, i32, i32) {
    %c0_i32 = arith.constant 0 : i32
    %c0_i32_0 = arith.constant 0 : i32
    %c0_i32_1 = arith.constant 0 : i32
    return %arg1, %c0_i32, %c0_i32_0 : i32, i32, i32
  }
  func.func @transform_2(%arg0: i32, %arg1: i32) -> (i32, i32, i32) {
    %c0_i32 = arith.constant 0 : i32
    %c0_i32_0 = arith.constant 0 : i32
    %c0_i32_1 = arith.constant 0 : i32
    return %arg1, %c0_i32, %c0_i32_0 : i32, i32, i32
  }
  func.func @transform_3(%arg0: i32, %arg1: i32) -> (i32, i32, i32) {
    %c0_i32 = arith.constant 0 : i32
    %c0_i32_0 = arith.constant 0 : i32
    %c0_i32_1 = arith.constant 0 : i32
    return %arg1, %c0_i32, %c0_i32_0 : i32, i32, i32
  }
  func.func @transform_4(%arg0: i32, %arg1: i32) -> (i32, i32, i32) {
    %c0_i32 = arith.constant 0 : i32
    %c0_i32_0 = arith.constant 0 : i32
    %c0_i32_1 = arith.constant 0 : i32
    return %arg1, %c0_i32, %c0_i32_0 : i32, i32, i32
  }
  func.func @transform_5(%arg0: i32, %arg1: i32) -> (i32, i32, i32) {
    %c0_i32 = arith.constant 0 : i32
    %c0_i32_0 = arith.constant 0 : i32
    %c0_i32_1 = arith.constant 0 : i32
    return %arg1, %c0_i32, %c0_i32_0 : i32, i32, i32
  }
  func.func @transform_6(%arg0: i32, %arg1: i32) -> (i32, i32, i32) {
    %c0_i32 = arith.constant 0 : i32
    %c0_i32_0 = arith.constant 0 : i32
    %c0_i32_1 = arith.constant 0 : i32
    return %arg1, %c0_i32, %c0_i32_0 : i32, i32, i32
  }
  func.func @transform_7(%arg0: i32, %arg1: i32) -> (i32, i32, i32) {
    %c0_i32 = arith.constant 0 : i32
    %c0_i32_0 = arith.constant 0 : i32
    %c0_i32_1 = arith.constant 0 : i32
    return %arg0, %c0_i32, %c0_i32_0 : i32, i32, i32
  }
}

</mosaic_0001>

<llo_original>
// kernel: tpu_custom_call.1
$region0: #{tpu_custom_call.1}
  #allocation0 [shape = 'u32[]', space=smem, size = 0x4, offset = 0x4, fixed_abs, tag = 'smem constant byte address 0x4 - core index']
  #allocation1 [shape = 'u32[144,128]{1,0:T(1,128)}', space=vmem, size = 0x12000, scoped, tag = 'internal scratch']
  #allocation2 [shape = 'f32[32,32]{1,0:T(8,128)}', space=vmem, size = 0x4000, scoped, tag = 'scratch operand']
  %s0 = inlined_call_operand.vmem [shape: f32[4,16,32], index: 0, kind: input, shape index: {}]
  %s1 = inlined_call_operand.vmem [shape: bf16[2,32,96], index: 1, kind: input, shape index: {}]
  %s2 = inlined_call_operand.hbm [shape: bf16[2,32,32], index: 2, kind: input, shape index: {}]
  %s3 = inlined_call_operand.hbm [shape: bf16[2,32,64], index: 3, kind: input, shape index: {}]
  %s4 = inlined_call_operand.vmem [shape: bf16[2,64,32], index: 4, kind: input, shape index: {}]
  %s5 = inlined_call_operand.vmem [shape: f32[2,8,64], index: 5, kind: input, shape index: {}]
  %s6 = inlined_call_operand.hbm [shape: f32[2,16,16], index: 6, kind: input, shape index: {}]
  %s7 = inlined_call_operand.hbm [shape: f32[4,16,32], index: 7, kind: output, shape index: {}]
  %s8 = sld [smem:[#allocation0]]
  $region81: #{tpu_custom_call.1} parent=0
    _
  %s10 = ssub.s32 1, %s8
  %s11 = scalar_select 0, %s10, %s8
  $region1: #{tpu_custom_call.1} parent=0
    #allocation3 [shape = 'u8[16384]{0}', space=vmem, size = 0x4000, scoped, tag = 'input window, operand 2']
    #allocation4 [shape = 's32[2]{0}', space=sflag, size = 0x8, scoped, tag = 'scoped memory for tpu_custom_call.1']
    #allocation5 [shape = 's32[2]{0}', space=sflag, size = 0x8, scoped, tag = 'scoped memory for tpu_custom_call.1']
    #allocation6 [shape = 'u8[16384]{0}', space=vmem, size = 0x4000, scoped, tag = 'input window, operand 3']
    #allocation7 [shape = 's32[2]{0}', space=sflag, size = 0x8, scoped, tag = 'scoped memory for tpu_custom_call.1']
    #allocation8 [shape = 'u8[16384]{0}', space=vmem, size = 0x4000, scoped, tag = 'input window, operand 6']
    #allocation9 [shape = 'u8[32768]{0}', space=vmem, size = 0x8000, scoped, tag = 'output window, operand 0']
    %12 = vsyncpa [#allocation4], 0
    %s13 = scalar_lea.sflag [#allocation4], 1
    %14 = vsyncpa %s13, 0
    %15 = vsyncpa [#allocation7], 0
    %s16 = scalar_lea.sflag [#allocation7], 1
    %17 = vsyncpa %s16, 0
    %18 = vsyncpa [#allocation5], 0
    %s19 = scalar_lea.sflag [#allocation5], 1
    %20 = vsyncpa %s19, 0
    loop: start=0, step=1, limit=6
    $region2: #{tpu_custom_call.1} parent=1 // loop_pre_header
      _
    $region3: #{tpu_custom_call.1} parent=1 // loop_header
      %s22 = sphi 0, %s26
      %p23 = scmp.ge.s32.totalorder %s22, 6
      %s29 = sphi 0, %s41
      %s30 = sphi 0, %s37
      %s31 = sphi 0, %s29
      %s32 = sphi 0, %s30
      %s33 = sphi 0, %s31
      %s34 = sphi 0, %s32
      %s44 = sphi 0, %s46
      %s47 = sphi 0, %s44
      %s48 = sphi 0, %s47
      %s64 = sphi 0, %s48
      %s70 = sphi 0, %s72
      %s73 = sphi 0, %s70
      %s74 = sphi 0, %s73
      %s90 = sphi 0, %s74
      %s96 = sphi 0, %s98
      %s99 = sphi 0, %s96
      %s100 = sphi 0, %s99
      %s116 = sphi 0, %s100
      %s122 = sphi 0, %s124
      %s125 = sphi 0, %s122
      %s126 = sphi 0, %s125
      %s142 = sphi 0, %s126
      %s148 = sphi 0, %s150
      %s151 = sphi 0, %s148
      %s152 = sphi 0, %s151
      %s168 = sphi 0, %s152
      %s174 = sphi 0, %s176
      %s177 = sphi 0, %s174
      %s178 = sphi 0, %s177
      %s194 = sphi 0, %s178
      %s200 = sphi 0, %s202
      %s203 = sphi 0, %s200
      %s204 = sphi 0, %s203
      %s220 = sphi 0, %s204
      %s226 = sphi 0, %s228
      %s229 = sphi 0, %s226
      %s230 = sphi 0, %s229
      %s246 = sphi 0, %s230
    $region4: #{tpu_custom_call.1} parent=1 // loop_header_branch
      %25 = sbr.rel (%p23) target = $region8
    $region5: #{tpu_custom_call.1} parent=1 // loop_body
      %s27 = ssub.s32 %s22, 1
      %s28 = ssub.s32 %s22, 2
      %s35 = sadd.s32 1, %s30
      %p36 = scmp.ge.s32.totalorder %s35, 2
      %s37 = scalar_select %p36, 0, %s35
      %s38 = sadd.s32 1, %s29
      %s39 = scalar_select %p36, %s38, %s29
      %p40 = scmp.ge.s32.totalorder %s39, 2
      %s41 = scalar_select %p40, 0, %s39
      %s42 = ssub.s32 %s29, %s41
      %p43 = scmp.eq.s32.totalorder %s42, 0
      %s45 = sadd.s32 %s44, 1
      %s46 = scalar_select %p43, %s44, %s45
      %p49 = pneg %p43
      %p50 = scmp.eq.s32.totalorder %s22, 3
      %p51 = por %p49, %p50
      %p52 = scmp.ne.s32.totalorder %s44, %s47
      %p53 = scmp.eq.s32.totalorder %s22, 0
      %p54 = por %p52, %p53
      %p55 = scmp.ne.s32.totalorder %s44, %s47
      %p56 = scmp.eq.s32.totalorder %s27, 3
      %p57 = por %p55, %p56
      %p58 = scmp.ne.s32.totalorder %s47, %s48
      %p59 = scmp.eq.s32.totalorder %s27, 0
      %p60 = por %p58, %p59
      %p61 = scmp.ne.s32.totalorder %s47, %s48
      %p62 = scmp.eq.s32.totalorder %s28, 3
      %p63 = por %p61, %p62
      %p65 = scmp.ne.s32.totalorder %s48, %s64
      %p66 = scmp.eq.s32.totalorder %s28, 0
      %p67 = por %p65, %p66
      %s68 = ssub.s32 %s30, %s37
      %p69 = scmp.eq.s32.totalorder %s68, 0
      %s71 = sadd.s32 %s70, 1
      %s72 = scalar_select %p69, %s70, %s71
      %p75 = pneg %p69
      %p76 = scmp.eq.s32.totalorder %s22, 3
      %p77 = por %p75, %p76
      %p78 = scmp.ne.s32.totalorder %s70, %s73
      %p79 = scmp.eq.s32.totalorder %s22, 0
      %p80 = por %p78, %p79
      %p81 = scmp.ne.s32.totalorder %s70, %s73
      %p82 = scmp.eq.s32.totalorder %s27, 3
      %p83 = por %p81, %p82
      %p84 = scmp.ne.s32.totalorder %s73, %s74
      %p85 = scmp.eq.s32.totalorder %s27, 0
      %p86 = por %p84, %p85
      %p87 = scmp.ne.s32.totalorder %s73, %s74
      %p88 = scmp.eq.s32.totalorder %s28, 3
      %p89 = por %p87, %p88
      %p91 = scmp.ne.s32.totalorder %s74, %s90
      %p92 = scmp.eq.s32.totalorder %s28, 0
      %p93 = por %p91, %p92
      %s94 = ssub.s32 %s30, %s37
      %p95 = scmp.eq.s32.totalorder %s94, 0
      %s97 = sadd.s32 %s96, 1
      %s98 = scalar_select %p95, %s96, %s97
      %p101 = pneg %p95
      %p102 = scmp.eq.s32.totalorder %s22, 3
      %p103 = por %p101, %p102
      %p104 = scmp.ne.s32.totalorder %s96, %s99
      %p105 = scmp.eq.s32.totalorder %s22, 0
      %p106 = por %p104, %p105
      %p107 = scmp.ne.s32.totalorder %s96, %s99
      %p108 = scmp.eq.s32.totalorder %s27, 3
      %p109 = por %p107, %p108
      %p110 = scmp.ne.s32.totalorder %s99, %s100
      %p111 = scmp.eq.s32.totalorder %s27, 0
      %p112 = por %p110, %p111
      %p113 = scmp.ne.s32.totalorder %s99, %s100
      %p114 = scmp.eq.s32.totalorder %s28, 3
      %p115 = por %p113, %p114
      %p117 = scmp.ne.s32.totalorder %s100, %s116
      %p118 = scmp.eq.s32.totalorder %s28, 0
      %p119 = por %p117, %p118
      %s120 = ssub.s32 %s30, %s37
      %p121 = scmp.eq.s32.totalorder %s120, 0
      %s123 = sadd.s32 %s122, 1
      %s124 = scalar_select %p121, %s122, %s123
      %p127 = pneg %p121
      %p128 = scmp.eq.s32.totalorder %s22, 3
      %p129 = por %p127, %p128
      %p130 = scmp.ne.s32.totalorder %s122, %s125
      %p131 = scmp.eq.s32.totalorder %s22, 0
      %p132 = por %p130, %p131
      %p133 = scmp.ne.s32.totalorder %s122, %s125
      %p134 = scmp.eq.s32.totalorder %s27, 3
      %p135 = por %p133, %p134
      %p136 = scmp.ne.s32.totalorder %s125, %s126
      %p137 = scmp.eq.s32.totalorder %s27, 0
      %p138 = por %p136, %p137
      %p139 = scmp.ne.s32.totalorder %s125, %s126
      %p140 = scmp.eq.s32.totalorder %s28, 3
      %p141 = por %p139, %p140
      %p143 = scmp.ne.s32.totalorder %s126, %s142
      %p144 = scmp.eq.s32.totalorder %s28, 0
      %p145 = por %p143, %p144
      %s146 = ssub.s32 %s30, %s37
      %p147 = scmp.eq.s32.totalorder %s146, 0
      %s149 = sadd.s32 %s148, 1
      %s150 = scalar_select %p147, %s148, %s149
      %p153 = pneg %p147
      %p154 = scmp.eq.s32.totalorder %s22, 3
      %p155 = por %p153, %p154
      %p156 = scmp.ne.s32.totalorder %s148, %s151
      %p157 = scmp.eq.s32.totalorder %s22, 0
      %p158 = por %p156, %p157
      %p159 = scmp.ne.s32.totalorder %s148, %s151
      %p160 = scmp.eq.s32.totalorder %s27, 3
      %p161 = por %p159, %p160
      %p162 = scmp.ne.s32.totalorder %s151, %s152
      %p163 = scmp.eq.s32.totalorder %s27, 0
      %p164 = por %p162, %p163
      %p165 = scmp.ne.s32.totalorder %s151, %s152
      %p166 = scmp.eq.s32.totalorder %s28, 3
      %p167 = por %p165, %p166
      %p169 = scmp.ne.s32.totalorder %s152, %s168
      %p170 = scmp.eq.s32.totalorder %s28, 0
      %p171 = por %p169, %p170
      %s172 = ssub.s32 %s30, %s37
      %p173 = scmp.eq.s32.totalorder %s172, 0
      %s175 = sadd.s32 %s174, 1
      %s176 = scalar_select %p173, %s174, %s175
      %p179 = pneg %p173
      %p180 = scmp.eq.s32.totalorder %s22, 3
      %p181 = por %p179, %p180
      %p182 = scmp.ne.s32.totalorder %s174, %s177
      %p183 = scmp.eq.s32.totalorder %s22, 0
      %p184 = por %p182, %p183
      %p185 = scmp.ne.s32.totalorder %s174, %s177
      %p186 = scmp.eq.s32.totalorder %s27, 3
      %p187 = por %p185, %p186
      %p188 = scmp.ne.s32.totalorder %s177, %s178
      %p189 = scmp.eq.s32.totalorder %s27, 0
      %p190 = por %p188, %p189
      %p191 = scmp.ne.s32.totalorder %s177, %s178
      %p192 = scmp.eq.s32.totalorder %s28, 3
      %p193 = por %p191, %p192
      %p195 = scmp.ne.s32.totalorder %s178, %s194
      %p196 = scmp.eq.s32.totalorder %s28, 0
      %p197 = por %p195, %p196
      %s198 = ssub.s32 %s30, %s37
      %p199 = scmp.eq.s32.totalorder %s198, 0
      %s201 = sadd.s32 %s200, 1
      %s202 = scalar_select %p199, %s200, %s201
      %p205 = pneg %p199
      %p206 = scmp.eq.s32.totalorder %s22, 3
      %p207 = por %p205, %p206
      %p208 = scmp.ne.s32.totalorder %s200, %s203
      %p209 = scmp.eq.s32.totalorder %s22, 0
      %p210 = por %p208, %p209
      %p211 = scmp.ne.s32.totalorder %s200, %s203
      %p212 = scmp.eq.s32.totalorder %s27, 3
      %p213 = por %p211, %p212
      %p214 = scmp.ne.s32.totalorder %s203, %s204
      %p215 = scmp.eq.s32.totalorder %s27, 0
      %p216 = por %p214, %p215
      %p217 = scmp.ne.s32.totalorder %s203, %s204
      %p218 = scmp.eq.s32.totalorder %s28, 3
      %p219 = por %p217, %p218
      %p221 = scmp.ne.s32.totalorder %s204, %s220
      %p222 = scmp.eq.s32.totalorder %s28, 0
      %p223 = por %p221, %p222
      %s224 = ssub.s32 %s29, %s41
      %p225 = scmp.eq.s32.totalorder %s224, 0
      %s227 = sadd.s32 %s226, 1
      %s228 = scalar_select %p225, %s226, %s227
      %p231 = pneg %p225
      %p232 = scmp.eq.s32.totalorder %s22, 3
      %p233 = por %p231, %p232
      %p234 = scmp.ne.s32.totalorder %s226, %s229
      %p235 = scmp.eq.s32.totalorder %s22, 0
      %p236 = por %p234, %p235
      %p237 = scmp.ne.s32.totalorder %s226, %s229
      %p238 = scmp.eq.s32.totalorder %s27, 3
      %p239 = por %p237, %p238
      %p240 = scmp.ne.s32.totalorder %s229, %s230
      %p241 = scmp.eq.s32.totalorder %s27, 0
      %p242 = por %p240, %p241
      %p243 = scmp.ne.s32.totalorder %s229, %s230
      %p244 = scmp.eq.s32.totalorder %s28, 3
      %p245 = por %p243, %p244
      %p247 = scmp.ne.s32.totalorder %s230, %s246
      %p248 = scmp.eq.s32.totalorder %s28, 0
      %p249 = por %p247, %p248
      %p250 = scmp.le.s32.totalorder 1, %s22
      %p251 = scmp.lt.s32.totalorder %s22, 5
      %p252 = pnand %p250, %p251
      %p253 = pneg %p252
      // Predicated region
      $region9: #{tpu_custom_call.1} parent=5 // pred_check
        _
      $region10: #{tpu_custom_call.1} parent=5 // pred_check_branch
        %255 = sbr.rel (%p252) target = $region12
      $region11: #{tpu_custom_call.1} parent=5 // pred_region
        %s256 = ssub.s32 %s22, 1
      $region12: #{tpu_custom_call.1} parent=5 // pred_fallthru
        _
      %p257 = scmp.lt.s32.totalorder %s22, 4
      // Predicated region
      $region13: #{tpu_custom_call.1} parent=5 // pred_check
        %p258 = pneg %p257
      $region14: #{tpu_custom_call.1} parent=5 // pred_check_branch
        %260 = sbr.rel (%p258) target = $region16
      $region15: #{tpu_custom_call.1} parent=5 // pred_region
        // Predicated region
        $region17: #{tpu_custom_call.1} parent=15 // pred_check
          %p261 = pneg %p54
        $region18: #{tpu_custom_call.1} parent=15 // pred_check_branch
          %263 = sbr.rel (%p261) target = $region20
        $region19: #{tpu_custom_call.1} parent=15 // pred_region
          %s264 = smul.u32 2, %s29
          %p265 = scmp.lt.s32.totalorder %s264, 3
          %s266 = scalar_select %p265, %s264, 3
          %s267 = smul.addr %s266, 2
          %s268 = smul.addr %s267, 8
          %s269 = scalar_lea.vmem %s0, %s268
          %s270 = smul.u32 2, %s29
        $region20: #{tpu_custom_call.1} parent=15 // pred_fallthru
          _
        // Predicated region
        $region21: #{tpu_custom_call.1} parent=15 // pred_check
          %p271 = pneg %p80
        $region22: #{tpu_custom_call.1} parent=15 // pred_check_branch
          %273 = sbr.rel (%p271) target = $region24
        $region23: #{tpu_custom_call.1} parent=15 // pred_region
          %p274 = scmp.lt.s32.totalorder %s30, 1
          %s275 = scalar_select %p274, %s30, 1
          %s276 = smul.addr %s275, 4
          %s277 = smul.addr %s276, 4
          %s278 = scalar_lea.vmem %s1, %s277
        $region24: #{tpu_custom_call.1} parent=15 // pred_fallthru
          _
        // Predicated region
        $region25: #{tpu_custom_call.1} parent=15 // pred_check
          %p279 = pneg %p106
        $region26: #{tpu_custom_call.1} parent=15 // pred_check_branch
          %281 = sbr.rel (%p279) target = $region28
        $region27: #{tpu_custom_call.1} parent=15 // pred_region
          %s282 = sand.u32 %s96, 1
          %s283 = scalar_lea.sflag [#allocation4], %s282
          %s284 = sand.u32 %s96, 1
          %s285 = smul.addr %s284, 16
          %s286 = scalar_lea.vmem [#allocation3], %s285
          %s288 = ssub.s32 256, 256
          %289 = vsyncadd %s283, %s288
          %s290 = smul.addr %s30, 4
          %s291 = smul.addr %s290, 64
          %s292 = scalar_lea.hbm %s2, %s291
          %s293 = sshll.u32 %s286, 4
          %s294 = int_to_ptr.vmem [resolvable:$true] %s293
          %299 = dma.hbm_to_vmem [thread:$0]  %s292, 256, %s294, %s283, 64, 64, 4
        $region28: #{tpu_custom_call.1} parent=15 // pred_fallthru
          _
        // Predicated region
        $region29: #{tpu_custom_call.1} parent=15 // pred_check
          %p300 = pneg %p132
        $region30: #{tpu_custom_call.1} parent=15 // pred_check_branch
          %302 = sbr.rel (%p300) target = $region32
        $region31: #{tpu_custom_call.1} parent=15 // pred_region
          %s303 = sand.u32 %s22, 1
          %s304 = scalar_lea.sflag [#allocation7], %s303
          %s305 = sand.u32 %s122, 1
          %s306 = smul.addr %s305, 16
          %s307 = scalar_lea.vmem [#allocation6], %s306
          %s309 = ssub.s32 256, 256
          %310 = vsyncadd %s304, %s309
          %s311 = smul.addr %s30, 4
          %s312 = smul.addr %s311, 64
          %s313 = scalar_lea.hbm %s3, %s312
          %s314 = sshll.u32 %s307, 4
          %s315 = int_to_ptr.vmem [resolvable:$true] %s314
          %320 = dma.hbm_to_vmem [thread:$0]  %s313, 256, %s315, %s304, 64, 64, 4
        $region32: #{tpu_custom_call.1} parent=15 // pred_fallthru
          _
        // Predicated region
        $region33: #{tpu_custom_call.1} parent=15 // pred_check
          %p321 = pneg %p158
        $region34: #{tpu_custom_call.1} parent=15 // pred_check_branch
          %323 = sbr.rel (%p321) target = $region36
        $region35: #{tpu_custom_call.1} parent=15 // pred_region
          %p324 = scmp.lt.s32.totalorder %s30, 1
          %s325 = scalar_select %p324, %s30, 1
          %s326 = smul.addr %s325, 8
          %s327 = smul.addr %s326, 4
          %s328 = scalar_lea.vmem %s4, %s327
        $region36: #{tpu_custom_call.1} parent=15 // pred_fallthru
          _
        // Predicated region
        $region37: #{tpu_custom_call.1} parent=15 // pred_check
          %p329 = pneg %p184
        $region38: #{tpu_custom_call.1} parent=15 // pred_check_branch
          %331 = sbr.rel (%p329) target = $region40
        $region39: #{tpu_custom_call.1} parent=15 // pred_region
          %p332 = scmp.lt.s32.totalorder %s30, 1
          %s333 = scalar_select %p332, %s30, 1
          %s334 = smul.addr %s333, 8
          %s335 = scalar_lea.vmem %s5, %s334
        $region40: #{tpu_custom_call.1} parent=15 // pred_fallthru
          _
        // Predicated region
        $region41: #{tpu_custom_call.1} parent=15 // pred_check
          %p336 = pneg %p210
        $region42: #{tpu_custom_call.1} parent=15 // pred_check_branch
          %338 = sbr.rel (%p336) target = $region44
        $region43: #{tpu_custom_call.1} parent=15 // pred_region
          %s339 = sand.u32 %s22, 1
          %s340 = scalar_lea.sflag [#allocation7], %s339
          %s341 = sand.u32 %s200, 1
          %s342 = smul.addr %s341, 16
          %s343 = scalar_lea.vmem [#allocation8], %s342
          %s345 = ssub.s32 256, 256
          %346 = vsyncadd %s340, %s345
          %s347 = smul.addr %s30, 2
          %s348 = smul.addr %s347, 128
          %s349 = scalar_lea.hbm %s6, %s348
          %s350 = sshll.u32 %s343, 4
          %s351 = int_to_ptr.vmem [resolvable:$true] %s350
          %356 = dma.hbm_to_vmem [thread:$0]  %s349, 256, %s351, %s340, 128, 128, 8
        $region44: #{tpu_custom_call.1} parent=15 // pred_fallthru
          _
      $region16: #{tpu_custom_call.1} parent=5 // pred_fallthru
        _
      %p357 = scmp.le.s32.totalorder 1, %s22
      %p358 = scmp.lt.s32.totalorder %s22, 5
      %p359 = pnand %p357, %p358
      %p360 = pneg %p359
      // Predicated region
      $region45: #{tpu_custom_call.1} parent=5 // pred_check
        _
      $region46: #{tpu_custom_call.1} parent=5 // pred_check_branch
        %362 = sbr.rel (%p359) target = $region48
      $region47: #{tpu_custom_call.1} parent=5 // pred_region
        %s363 = ssub.s32 %s22, 1
        %s364 = sand.u32 %s99, 1
        %s365 = scalar_lea.sflag [#allocation4], %s364
        %s366 = sand.u32 %s99, 1
        %s367 = smul.addr %s366, 16
        %s368 = scalar_lea.vmem [#allocation3], %s367
        // Predicated region
        $region49: #{tpu_custom_call.1} parent=47 // pred_check
          %p369 = pneg %p112
        $region50: #{tpu_custom_call.1} parent=47 // pred_check_branch
          %371 = sbr.rel (%p369) target = $region52
        $region51: #{tpu_custom_call.1} parent=47 // pred_region
          %372 = dma.done %s365, 256
        $region52: #{tpu_custom_call.1} parent=47 // pred_fallthru
          _
        %s373 = sand.u32 %s27, 1
        %s374 = scalar_lea.sflag [#allocation7], %s373
        %s375 = sand.u32 %s125, 1
        %s376 = smul.addr %s375, 16
        %s377 = scalar_lea.vmem [#allocation6], %s376
        // Predicated region
        $region53: #{tpu_custom_call.1} parent=47 // pred_check
          %p378 = pneg %p138
        $region54: #{tpu_custom_call.1} parent=47 // pred_check_branch
          %380 = sbr.rel (%p378) target = $region56
        $region55: #{tpu_custom_call.1} parent=47 // pred_region
          %381 = dma.done %s374, 256
        $region56: #{tpu_custom_call.1} parent=47 // pred_fallthru
          _
        %s382 = sand.u32 %s27, 1
        %s383 = scalar_lea.sflag [#allocation7], %s382
        %s384 = sand.u32 %s203, 1
        %s385 = smul.addr %s384, 16
        %s386 = scalar_lea.vmem [#allocation8], %s385
        // Predicated region
        $region57: #{tpu_custom_call.1} parent=47 // pred_check
          %p387 = pneg %p216
        $region58: #{tpu_custom_call.1} parent=47 // pred_check_branch
          %389 = sbr.rel (%p387) target = $region60
        $region59: #{tpu_custom_call.1} parent=47 // pred_region
          %390 = dma.done %s383, 256
        $region60: #{tpu_custom_call.1} parent=47 // pred_fallthru
          _
        %s391 = smul.u32 2, %s31
        %p392 = scmp.lt.s32.totalorder %s391, 3
        %s393 = scalar_select %p392, %s391, 3
        %s394 = smul.addr %s393, 2
        %s395 = smul.addr %s394, 8
        %s396 = scalar_lea.vmem %s0, %s395
        %p397 = pneg %p60
        %p398 = pneg %p57
        %p399 = scmp.lt.s32.totalorder %s32, 1
        %s400 = scalar_select %p399, %s32, 1
        %s401 = smul.addr %s400, 4
        %s402 = smul.addr %s401, 4
        %s403 = scalar_lea.vmem %s1, %s402
        %p404 = pneg %p86
        %p405 = pneg %p83
        %s406 = sand.u32 %s99, 1
        %s407 = scalar_lea.sflag [#allocation4], %s406
        %s408 = sand.u32 %s99, 1
        %s409 = smul.addr %s408, 16
        %s410 = scalar_lea.vmem [#allocation3], %s409
        %p411 = pneg %p112
        %p412 = pneg %p109
        %s413 = sand.u32 %s27, 1
        %s414 = scalar_lea.sflag [#allocation7], %s413
        %s415 = sand.u32 %s125, 1
        %s416 = smul.addr %s415, 16
        %s417 = scalar_lea.vmem [#allocation6], %s416
        %p418 = pneg %p138
        %p419 = pneg %p135
        %p420 = scmp.lt.s32.totalorder %s32, 1
        %s421 = scalar_select %p420, %s32, 1
        %s422 = smul.addr %s421, 8
        %s423 = smul.addr %s422, 4
        %s424 = scalar_lea.vmem %s4, %s423
        %p425 = pneg %p164
        %p426 = pneg %p161
        %p427 = scmp.lt.s32.totalorder %s32, 1
        %s428 = scalar_select %p427, %s32, 1
        %s429 = smul.addr %s428, 8
        %s430 = scalar_lea.vmem %s5, %s429
        %p431 = pneg %p190
        %p432 = pneg %p187
        %s433 = sand.u32 %s27, 1
        %s434 = scalar_lea.sflag [#allocation7], %s433
        %s435 = sand.u32 %s203, 1
        %s436 = smul.addr %s435, 16
        %s437 = scalar_lea.vmem [#allocation8], %s436
        %p438 = pneg %p216
        %p439 = pneg %p213
        %p440 = pneg %p242
        %p441 = pneg %p239
        %s442 = sand.u32 %s229, 1
        %s443 = scalar_lea.sflag [#allocation5], %s442
        %s444 = sand.u32 %s229, 1
        %s445 = smul.addr %s444, 32
        %s446 = scalar_lea.vmem [#allocation9], %s445
        %s447 = smul.u32 2, %s31
        %p448 = scmp.lt.s32.totalorder %s447, 3
        %s449 = scalar_select %p448, %s447, 3
        %s450 = smul.addr %s449, 2
        %s451 = smul.addr %s450, 8
        %s452 = scalar_lea.vmem %s0, %s451
        %s453 = smul.u32 2, %s31
        %p454 = scmp.lt.s32.totalorder %s32, 1
        %s455 = scalar_select %p454, %s32, 1
        %s456 = smul.addr %s455, 4
        %s457 = smul.addr %s456, 4
        %s458 = scalar_lea.vmem %s1, %s457
        %p459 = scmp.lt.s32.totalorder %s32, 1
        %s460 = scalar_select %p459, %s32, 1
        %s461 = smul.addr %s460, 8
        %s462 = smul.addr %s461, 4
        %s463 = scalar_lea.vmem %s4, %s462
        %p464 = scmp.lt.s32.totalorder %s32, 1
        %s465 = scalar_select %p464, %s32, 1
        %s466 = smul.addr %s465, 8
        %s467 = scalar_lea.vmem %s5, %s466
        %s468 = smul.u32 2, %s31
        %p470 = scmp.eq.s32.totalorder %s32, 0
        // Predicated region
        $region61: #{tpu_custom_call.1} parent=47 // pred_check
          %p471 = pneg %p470
        $region62: #{tpu_custom_call.1} parent=47 // pred_check_branch
          %473 = sbr.rel (%p471) target = $region64
        $region63: #{tpu_custom_call.1} parent=47 // pred_region
          %v474 = vld [vmem:[%s452] sm:$0xff]
          %v475 = vld [vmem:[%s452 + $0x8] sm:$0xff]
          %v476 = vld [vmem:[%s452 + $0x10] sm:$0xff]
          %v477 = vld [vmem:[%s452 + $0x18] sm:$0xff]
          %vm478 = vcmask 261120
          %479 = vst.msk [vmem:[#allocation2] sm:$0xff] %vm478, %v474
          %480 = vst.msk [vmem:[#allocation2 + $0x8] sm:$0xff] %vm478, %v475
          %481 = vst.msk [vmem:[#allocation2 + $0x10] sm:$0xff] %vm478, %v476
          %482 = vst.msk [vmem:[#allocation2 + $0x18] sm:$0xff] %vm478, %v477
        $region64: #{tpu_custom_call.1} parent=47 // pred_fallthru
          _
        %v483 = vld [vmem:[#allocation2] sm:$0xff]
        %v484 = vld [vmem:[#allocation2 + $0x8] sm:$0xff]
        %v485 = vld [vmem:[#allocation2 + $0x10] sm:$0xff]
        %v486 = vld [vmem:[#allocation2 + $0x18] sm:$0xff]
        %v487 = vld [vmem:[%s467] sm:$0x1]
        %v488 = vld [vmem:[%s467 + $0x1] sm:$0x1]
        %v489 = vld [vmem:[%s467 + $0x2] sm:$0x1]
        %v490 = vld [vmem:[%s467 + $0x3] sm:$0x1]
        %v491 = vld [vmem:[%s467 + $0x4] sm:$0x1]
        %v492 = vld [vmem:[%s467 + $0x5] sm:$0x1]
        %v493 = vld [vmem:[%s467 + $0x6] sm:$0x1]
        %vm494 = vcmask 261120
        %v495 = vsel %vm494, %v483, 0.0
        %496 = vadd.xlane.f32.xlu0 %v495
        %v497 = vpop.xlane.xlu0 %496
        %v498 = vsel %vm494, %v484, 0.0
        %499 = vadd.xlane.f32.xlu0 %v498
        %v500 = vpop.xlane.xlu0 %499
        %v501 = vsel %vm494, %v485, 0.0
        %502 = vadd.xlane.f32.xlu0 %v501
        %v503 = vpop.xlane.xlu0 %502
        %v504 = vsel %vm494, %v486, 0.0
        %505 = vadd.xlane.f32.xlu0 %v504
        %v506 = vpop.xlane.xlu0 %505
        %v507 = vrcp.pop 32.0
        %v508 = vmul.f32 %v497, %v507
        %v509 = vmul.f32 %v500, %v507
        %v510 = vmul.f32 %v503, %v507
        %v511 = vmul.f32 %v506, %v507
        %v512 = vsub.f32 %v483, %v508
        %v513 = vsub.f32 %v484, %v509
        %v514 = vsub.f32 %v485, %v510
        %v515 = vsub.f32 %v486, %v511
        %v516 = vmul.f32 %v512, %v512
        %v517 = vmul.f32 %v513, %v513
        %v518 = vmul.f32 %v514, %v514
        %v519 = vmul.f32 %v515, %v515
        %v520 = vsel %vm494, %v516, 0.0
        %521 = vadd.xlane.f32.xlu0 %v520
        %v522 = vpop.xlane.xlu0 %521
        %v523 = vsel %vm494, %v517, 0.0
        %524 = vadd.xlane.f32.xlu0 %v523
        %v525 = vpop.xlane.xlu0 %524
        %v526 = vsel %vm494, %v518, 0.0
        %527 = vadd.xlane.f32.xlu0 %v526
        %v528 = vpop.xlane.xlu0 %527
        %v529 = vsel %vm494, %v519, 0.0
        %530 = vadd.xlane.f32.xlu0 %v529
        %v531 = vpop.xlane.xlu0 %530
        %v532 = vmul.f32 %v522, %v507
        %v533 = vmul.f32 %v525, %v507
        %v534 = vmul.f32 %v528, %v507
        %v535 = vmul.f32 %v531, %v507
        %v536 = vadd.f32 %v532, 1e-05
        %v537 = vadd.f32 %v533, 1e-05
        %v538 = vadd.f32 %v534, 1e-05
        %v539 = vadd.f32 %v535, 1e-05
        %v540 = vrsqrt.pop %v536
        %v541 = vrsqrt.pop %v537
        %v542 = vrsqrt.pop %v538
        %v543 = vrsqrt.pop %v539
        %v544 = vmul.f32 %v512, %v540
        %v545 = vmul.f32 %v513, %v541
        %v546 = vmul.f32 %v514, %v542
        %v547 = vmul.f32 %v515, %v543
        %v548 = vlaneseq
        %v549 = vshrl.u32 %v548, 7
        %v550 = vsub.s32 0, %v549
        %v551 = vrot.slane %v487, %v550
        %v552 = vmul.f32 %v544, %v551
        %v553 = vmul.f32 %v545, %v551
        %v554 = vmul.f32 %v546, %v551
        %v555 = vmul.f32 %v547, %v551
        %v556 = vlaneseq
        %v557 = vshrl.u32 %v556, 7
        %v558 = vsub.s32 0, %v557
        %v559 = vrot.slane %v488, %v558
        %v560 = vadd.f32 %v552, %v559
        %v561 = vadd.f32 %v553, %v559
        %v562 = vadd.f32 %v554, %v559
        %v563 = vadd.f32 %v555, %v559
        %v564 = vpack.c.bf16 %v561, %v560
        %v565 = vpack.c.bf16 %v563, %v562
        %v566 = vld [vmem:[%s458] sm:$0xf]
        %v567 = vld [vmem:[%s458 + $0x4] sm:$0xf]
        %v568 = vld [vmem:[%s458 + $0x8] sm:$0xf]
        %v569 = vld [vmem:[%s458 + $0xc] sm:$0xf]
        %v574 = vunpack.c.l.b16 %v566
        %v575 = vunpack.c.l.b16 %v567
        %v576 = vunpack.c.l.b16 %v568
        %v577 = vunpack.c.l.b16 %v569
        %v578 = vpack.c.b16 %v575, %v574
        %v579 = vpack.c.b16 %v577, %v576
        %v583 = vsel %vm494, %v564, 0
        %v586 = vsel %vm494, %v565, 0
        %588 = vmatprep.subr.bf16.mxu0 0
        %589 = vmatpush1.bf16.msra.mxu0 %v578
        %590 = vmatprep.subr.bf16.mxu0 0
        %591 = vmatpush1.bf16.msra.mxu0 %v579
        %592 = vmatprep.subr.bf16.mxu0 0
        %593 = vmatpush1.bf16.msra.mxu0 0
        %594 = vmatprep.subr.bf16.mxu0 0
        %595 = vmatpush1.bf16.msra.mxu0 0
        %596 = vmatprep.subr.bf16.mxu0 0
        %597 = vmatpush1.bf16.msra.mxu0 0
        %598 = vmatprep.subr.bf16.mxu0 0
        %599 = vmatpush1.bf16.msra.mxu0 0
        %600 = vmatprep.subr.bf16.mxu0 0
        %601 = vmatpush1.bf16.msra.mxu0 0
        %602 = vmatprep.subr.bf16.mxu0 0
        %603 = vmatpush1.bf16.msra.mxu0 0
        %604 = vmatprep.subr.bf16.mxu0 0
        %605 = vmatpush1.bf16.msra.mxu0 0
        %606 = vmatprep.subr.bf16.mxu0 0
        %607 = vmatpush1.bf16.msra.mxu0 0
        %608 = vmatprep.subr.bf16.mxu0 0
        %609 = vmatpush1.bf16.msra.mxu0 0
        %610 = vmatprep.subr.bf16.mxu0 0
        %611 = vmatpush1.bf16.msra.mxu0 0
        %612 = vmatprep.subr.bf16.mxu0 0
        %613 = vmatpush1.bf16.msra.mxu0 0
        %614 = vmatprep.subr.bf16.mxu0 0
        %615 = vmatpush1.bf16.msra.mxu0 0
        %616 = vmatprep.subr.bf16.mxu0 0
        %617 = vmatpush1.bf16.msra.mxu0 0
        %618 = vmatprep.subr.bf16.mxu0 0
        %619 = vmatpush1.bf16.msra.mxu0 0
        %620 = vmatprep.mubr.bf16.mxu0 0
        %621 = vmatmul.mubr.bf16.gmra.mrb[0].mxu0 %v583
        %v622 = vpop.f32.mrb[0].mxu0
        %v623 = vadd.f32 0.0, %v622
        %v624 = vpop.f32.mrb[0].mxu0
        %v625 = vpop.f32.mrb[0].mxu0
        %v626 = vadd.f32 0.0, %v625
        %v627 = vpop.f32.mrb[0].mxu0
        %628 = vmatprep.mubr.bf16.mxu0 0
        %629 = vmatmul.mubr.bf16.gmra.mrb[0].mxu0 %v586
        %v630 = vpop.f32.mrb[0].mxu0
        %v631 = vadd.f32 0.0, %v630
        %v632 = vpop.f32.mrb[0].mxu0
        %v633 = vpop.f32.mrb[0].mxu0
        %v634 = vadd.f32 0.0, %v633
        %v635 = vpop.f32.mrb[0].mxu0
        %636 = vdwg.mxu0
        %v637 = vld [vmem:[%s386] sm:$0xff]
        %v638 = vld [vmem:[%s386 + $0x8] sm:$0xff]
        %v639 = vpack.c.bf16 %v626, %v623
        %641 = vrot.lane.b32.xlu0 %v639, 96
        %v642 = vpop.permute.xlu0 %641
        %vm643 = vcmask 31744
        %v645 = vsel %vm643, %v639, 0
        %v648 = vsel %vm643, %v642, 0
        %650 = vmatprep.subr.bf16.mxu0 0
        %651 = vmatpush1.bf16.xpose.msra.mxu0 %v648
        %652 = vmatprep.subr.bf16.mxu0 0
        %653 = vmatpush1.bf16.xpose.msra.mxu0 0
        %654 = vmatprep.subr.bf16.mxu0 0
        %655 = vmatpush1.bf16.xpose.msra.mxu0 0
        %656 = vmatprep.subr.bf16.mxu0 0
        %657 = vmatpush1.bf16.xpose.msra.mxu0 0
        %658 = vmatprep.subr.bf16.mxu0 0
        %659 = vmatpush1.bf16.xpose.msra.mxu0 0
        %660 = vmatprep.subr.bf16.mxu0 0
        %661 = vmatpush1.bf16.xpose.msra.mxu0 0
        %662 = vmatprep.subr.bf16.mxu0 0
        %663 = vmatpush1.bf16.xpose.msra.mxu0 0
        %664 = vmatprep.subr.bf16.mxu0 0
        %665 = vmatpush1.bf16.xpose.msra.mxu0 0
        %666 = vmatprep.subr.bf16.mxu0 0
        %667 = vmatpush1.bf16.xpose.msra.mxu0 0
        %668 = vmatprep.subr.bf16.mxu0 0
        %669 = vmatpush1.bf16.xpose.msra.mxu0 0
        %670 = vmatprep.subr.bf16.mxu0 0
        %671 = vmatpush1.bf16.xpose.msra.mxu0 0
        %672 = vmatprep.subr.bf16.mxu0 0
        %673 = vmatpush1.bf16.xpose.msra.mxu0 0
        %674 = vmatprep.subr.bf16.mxu0 0
        %675 = vmatpush1.bf16.xpose.msra.mxu0 0
        %676 = vmatprep.subr.bf16.mxu0 0
        %677 = vmatpush1.bf16.xpose.msra.mxu0 0
        %678 = vmatprep.subr.bf16.mxu0 0
        %679 = vmatpush1.bf16.xpose.msra.mxu0 0
        %680 = vmatprep.subr.bf16.mxu0 0
        %681 = vmatpush1.bf16.xpose.msra.mxu0 0
        %682 = vmatprep.mubr.bf16.mxu0 0
        %683 = vmatmul.mubr.bf16.gmra.mrb[0].mxu0 %v645
        %v684 = vpop.f32.mrb[0].mxu0
        %v685 = vadd.f32 %v637, %v684
        %v686 = vpop.f32.mrb[0].mxu0
        %v687 = vpop.f32.mrb[0].mxu0
        %v688 = vadd.f32 %v638, %v687
        %v689 = vpop.f32.mrb[0].mxu0
        %690 = vdwg.mxu0
        %vm691 = vcmask 130048
        %v692 = vsel %vm691, %v685, -inf
        %693 = vmax.xlane.f32.xlu0 %v692
        %v694 = vpop.xlane.xlu0 %693
        %v695 = vsel %vm691, %v688, -inf
        %696 = vmax.xlane.f32.xlu0 %v695
        %v697 = vpop.xlane.xlu0 %696
        %v698 = vsub.f32 %v685, %v694
        %v699 = vsub.f32 %v688, %v697
        %v700 = vmul.f32 %v698, 1.442695
        %v701 = vpow.pop %v700
        %v702 = vmul.f32 %v699, 1.442695
        %v703 = vpow.pop %v702
        %v704 = vsel %vm691, %v701, 0.0
        %705 = vadd.xlane.f32.xlu0 %v704
        %v706 = vpop.xlane.xlu0 %705
        %v707 = vsel %vm691, %v703, 0.0
        %708 = vadd.xlane.f32.xlu0 %v707
        %v709 = vpop.xlane.xlu0 %708
        %v710 = vrcp.pop %v706
        %v711 = vrcp.pop %v709
        %v712 = vmul.f32 %v701, %v710
        %v713 = vmul.f32 %v703, %v711
        %v714 = vpack.c.bf16 %v713, %v712
        %715 = vrot.lane.b32.xlu0 %v639, 64
        %v716 = vpop.permute.xlu0 %715
        %v719 = vsel %vm691, %v714, 0
        %721 = vmatprep.subr.bf16.mxu0 0
        %722 = vmatpush1.bf16.msra.mxu0 %v716
        %723 = vmatprep.subr.bf16.mxu0 0
        %724 = vmatpush1.bf16.msra.mxu0 0
        %725 = vmatprep.subr.bf16.mxu0 0
        %726 = vmatpush1.bf16.msra.mxu0 0
        %727 = vmatprep.subr.bf16.mxu0 0
        %728 = vmatpush1.bf16.msra.mxu0 0
        %729 = vmatprep.subr.bf16.mxu0 0
        %730 = vmatpush1.bf16.msra.mxu0 0
        %731 = vmatprep.subr.bf16.mxu0 0
        %732 = vmatpush1.bf16.msra.mxu0 0
        %733 = vmatprep.subr.bf16.mxu0 0
        %734 = vmatpush1.bf16.msra.mxu0 0
        %735 = vmatprep.subr.bf16.mxu0 0
        %736 = vmatpush1.bf16.msra.mxu0 0
        %737 = vmatprep.subr.bf16.mxu0 0
        %738 = vmatpush1.bf16.msra.mxu0 0
        %739 = vmatprep.subr.bf16.mxu0 0
        %740 = vmatpush1.bf16.msra.mxu0 0
        %741 = vmatprep.subr.bf16.mxu0 0
        %742 = vmatpush1.bf16.msra.mxu0 0
        %743 = vmatprep.subr.bf16.mxu0 0
        %744 = vmatpush1.bf16.msra.mxu0 0
        %745 = vmatprep.subr.bf16.mxu0 0
        %746 = vmatpush1.bf16.msra.mxu0 0
        %747 = vmatprep.subr.bf16.mxu0 0
        %748 = vmatpush1.bf16.msra.mxu0 0
        %749 = vmatprep.subr.bf16.mxu0 0
        %750 = vmatpush1.bf16.msra.mxu0 0
        %751 = vmatprep.subr.bf16.mxu0 0
        %752 = vmatpush1.bf16.msra.mxu0 0
        %753 = vmatprep.mubr.bf16.mxu0 0
        %754 = vmatmul.mubr.bf16.gmra.mrb[0].mxu0 %v719
        %v755 = vpop.f32.mrb[0].mxu0
        %v756 = vadd.f32 0.0, %v755
        %v757 = vpop.f32.mrb[0].mxu0
        %v758 = vpop.f32.mrb[0].mxu0
        %v759 = vadd.f32 0.0, %v758
        %v760 = vpop.f32.mrb[0].mxu0
        %761 = vdwg.mxu0
        %762 = vrot.lane.b32.xlu0 %v639, 124
        %v763 = vpop.permute.xlu0 %762
        %764 = vrot.lane.b32.xlu0 %v639, 92
        %v765 = vpop.permute.xlu0 %764
        %v767 = vsel %vm643, %v763, 0
        %v770 = vsel %vm643, %v765, 0
        %772 = vmatprep.subr.bf16.mxu0 0
        %773 = vmatpush1.bf16.xpose.msra.mxu0 %v770
        %774 = vmatprep.subr.bf16.mxu0 0
        %775 = vmatpush1.bf16.xpose.msra.mxu0 0
        %776 = vmatprep.subr.bf16.mxu0 0
        %777 = vmatpush1.bf16.xpose.msra.mxu0 0
        %778 = vmatprep.subr.bf16.mxu0 0
        %779 = vmatpush1.bf16.xpose.msra.mxu0 0
        %780 = vmatprep.subr.bf16.mxu0 0
        %781 = vmatpush1.bf16.xpose.msra.mxu0 0
        %782 = vmatprep.subr.bf16.mxu0 0
        %783 = vmatpush1.bf16.xpose.msra.mxu0 0
        %784 = vmatprep.subr.bf16.mxu0 0
        %785 = vmatpush1.bf16.xpose.msra.mxu0 0
        %786 = vmatprep.subr.bf16.mxu0 0
        %787 = vmatpush1.bf16.xpose.msra.mxu0 0
        %788 = vmatprep.subr.bf16.mxu0 0
        %789 = vmatpush1.bf16.xpose.msra.mxu0 0
        %790 = vmatprep.subr.bf16.mxu0 0
        %791 = vmatpush1.bf16.xpose.msra.mxu0 0
        %792 = vmatprep.subr.bf16.mxu0 0
        %793 = vmatpush1.bf16.xpose.msra.mxu0 0
        %794 = vmatprep.subr.bf16.mxu0 0
        %795 = vmatpush1.bf16.xpose.msra.mxu0 0
        %796 = vmatprep.subr.bf16.mxu0 0
        %797 = vmatpush1.bf16.xpose.msra.mxu0 0
        %798 = vmatprep.subr.bf16.mxu0 0
        %799 = vmatpush1.bf16.xpose.msra.mxu0 0
        %800 = vmatprep.subr.bf16.mxu0 0
        %801 = vmatpush1.bf16.xpose.msra.mxu0 0
        %802 = vmatprep.subr.bf16.mxu0 0
        %803 = vmatpush1.bf16.xpose.msra.mxu0 0
        %804 = vmatprep.mubr.bf16.mxu0 0
        %805 = vmatmul.mubr.bf16.gmra.mrb[0].mxu0 %v767
        %v806 = vpop.f32.mrb[0].mxu0
        %v807 = vadd.f32 %v637, %v806
        %v808 = vpop.f32.mrb[0].mxu0
        %v809 = vpop.f32.mrb[0].mxu0
        %v810 = vadd.f32 %v638, %v809
        %v811 = vpop.f32.mrb[0].mxu0
        %812 = vdwg.mxu0
        %v813 = vsel %vm691, %v807, -inf
        %814 = vmax.xlane.f32.xlu0 %v813
        %v815 = vpop.xlane.xlu0 %814
        %v816 = vsel %vm691, %v810, -inf
        %817 = vmax.xlane.f32.xlu0 %v816
        %v818 = vpop.xlane.xlu0 %817
        %v819 = vsub.f32 %v807, %v815
        %v820 = vsub.f32 %v810, %v818
        %v821 = vmul.f32 %v819, 1.442695
        %v822 = vpow.pop %v821
        %v823 = vmul.f32 %v820, 1.442695
        %v824 = vpow.pop %v823
        %v825 = vsel %vm691, %v822, 0.0
        %826 = vadd.xlane.f32.xlu0 %v825
        %v827 = vpop.xlane.xlu0 %826
        %v828 = vsel %vm691, %v824, 0.0
        %829 = vadd.xlane.f32.xlu0 %v828
        %v830 = vpop.xlane.xlu0 %829
        %v831 = vrcp.pop %v827
        %v832 = vrcp.pop %v830
        %v833 = vmul.f32 %v822, %v831
        %v834 = vmul.f32 %v824, %v832
        %v835 = vpack.c.bf16 %v834, %v833
        %836 = vrot.lane.b32.xlu0 %v639, 60
        %v837 = vpop.permute.xlu0 %836
        %v840 = vsel %vm691, %v835, 0
        %842 = vmatprep.subr.bf16.mxu0 0
        %843 = vmatpush1.bf16.msra.mxu0 %v837
        %844 = vmatprep.subr.bf16.mxu0 0
        %845 = vmatpush1.bf16.msra.mxu0 0
        %846 = vmatprep.subr.bf16.mxu0 0
        %847 = vmatpush1.bf16.msra.mxu0 0
        %848 = vmatprep.subr.bf16.mxu0 0
        %849 = vmatpush1.bf16.msra.mxu0 0
        %850 = vmatprep.subr.bf16.mxu0 0
        %851 = vmatpush1.bf16.msra.mxu0 0
        %852 = vmatprep.subr.bf16.mxu0 0
        %853 = vmatpush1.bf16.msra.mxu0 0
        %854 = vmatprep.subr.bf16.mxu0 0
        %855 = vmatpush1.bf16.msra.mxu0 0
        %856 = vmatprep.subr.bf16.mxu0 0
        %857 = vmatpush1.bf16.msra.mxu0 0
        %858 = vmatprep.subr.bf16.mxu0 0
        %859 = vmatpush1.bf16.msra.mxu0 0
        %860 = vmatprep.subr.bf16.mxu0 0
        %861 = vmatpush1.bf16.msra.mxu0 0
        %862 = vmatprep.subr.bf16.mxu0 0
        %863 = vmatpush1.bf16.msra.mxu0 0
        %864 = vmatprep.subr.bf16.mxu0 0
        %865 = vmatpush1.bf16.msra.mxu0 0
        %866 = vmatprep.subr.bf16.mxu0 0
        %867 = vmatpush1.bf16.msra.mxu0 0
        %868 = vmatprep.subr.bf16.mxu0 0
        %869 = vmatpush1.bf16.msra.mxu0 0
        %870 = vmatprep.subr.bf16.mxu0 0
        %871 = vmatpush1.bf16.msra.mxu0 0
        %872 = vmatprep.subr.bf16.mxu0 0
        %873 = vmatpush1.bf16.msra.mxu0 0
        %874 = vmatprep.mubr.bf16.mxu0 0
        %875 = vmatmul.mubr.bf16.gmra.mrb[0].mxu0 %v840
        %v876 = vpop.f32.mrb[0].mxu0
        %v877 = vadd.f32 0.0, %v876
        %v878 = vpop.f32.mrb[0].mxu0
        %v879 = vpop.f32.mrb[0].mxu0
        %v880 = vadd.f32 0.0, %v879
        %v881 = vpop.f32.mrb[0].mxu0
        %882 = vdwg.mxu0
        %883 = vrot.lane.b32.xlu0 %v639, 120
        %v884 = vpop.permute.xlu0 %883
        %885 = vrot.lane.b32.xlu0 %v639, 88
        %v886 = vpop.permute.xlu0 %885
        %v888 = vsel %vm643, %v884, 0
        %v891 = vsel %vm643, %v886, 0
        %893 = vmatprep.subr.bf16.mxu0 0
        %894 = vmatpush1.bf16.xpose.msra.mxu0 %v891
        %895 = vmatprep.subr.bf16.mxu0 0
        %896 = vmatpush1.bf16.xpose.msra.mxu0 0
        %897 = vmatprep.subr.bf16.mxu0 0
        %898 = vmatpush1.bf16.xpose.msra.mxu0 0
        %899 = vmatprep.subr.bf16.mxu0 0
        %900 = vmatpush1.bf16.xpose.msra.mxu0 0
        %901 = vmatprep.subr.bf16.mxu0 0
        %902 = vmatpush1.bf16.xpose.msra.mxu0 0
        %903 = vmatprep.subr.bf16.mxu0 0
        %904 = vmatpush1.bf16.xpose.msra.mxu0 0
        %905 = vmatprep.subr.bf16.mxu0 0
        %906 = vmatpush1.bf16.xpose.msra.mxu0 0
        %907 = vmatprep.subr.bf16.mxu0 0
        %908 = vmatpush1.bf16.xpose.msra.mxu0 0
        %909 = vmatprep.subr.bf16.mxu0 0
        %910 = vmatpush1.bf16.xpose.msra.mxu0 0
        %911 = vmatprep.subr.bf16.mxu0 0
        %912 = vmatpush1.bf16.xpose.msra.mxu0 0
        %913 = vmatprep.subr.bf16.mxu0 0
        %914 = vmatpush1.bf16.xpose.msra.mxu0 0
        %915 = vmatprep.subr.bf16.mxu0 0
        %916 = vmatpush1.bf16.xpose.msra.mxu0 0
        %917 = vmatprep.subr.bf16.mxu0 0
        %918 = vmatpush1.bf16.xpose.msra.mxu0 0
        %919 = vmatprep.subr.bf16.mxu0 0
        %920 = vmatpush1.bf16.xpose.msra.mxu0 0
        %921 = vmatprep.subr.bf16.mxu0 0
        %922 = vmatpush1.bf16.xpose.msra.mxu0 0
        %923 = vmatprep.subr.bf16.mxu0 0
        %924 = vmatpush1.bf16.xpose.msra.mxu0 0
        %925 = vmatprep.mubr.bf16.mxu0 0
        %926 = vmatmul.mubr.bf16.gmra.mrb[0].mxu0 %v888
        %v927 = vpop.f32.mrb[0].mxu0
        %v928 = vadd.f32 %v637, %v927
        %v929 = vpop.f32.mrb[0].mxu0
        %v930 = vpop.f32.mrb[0].mxu0
        %v931 = vadd.f32 %v638, %v930
        %v932 = vpop.f32.mrb[0].mxu0
        %933 = vdwg.mxu0
        %v934 = vsel %vm691, %v928, -inf
        %935 = vmax.xlane.f32.xlu0 %v934
        %v936 = vpop.xlane.xlu0 %935
        %v937 = vsel %vm691, %v931, -inf
        %938 = vmax.xlane.f32.xlu0 %v937
        %v939 = vpop.xlane.xlu0 %938
        %v940 = vsub.f32 %v928, %v936
        %v941 = vsub.f32 %v931, %v939
        %v942 = vmul.f32 %v940, 1.442695
        %v943 = vpow.pop %v942
        %v944 = vmul.f32 %v941, 1.442695
        %v945 = vpow.pop %v944
        %v946 = vsel %vm691, %v943, 0.0
        %947 = vadd.xlane.f32.xlu0 %v946
        %v948 = vpop.xlane.xlu0 %947
        %v949 = vsel %vm691, %v945, 0.0
        %950 = vadd.xlane.f32.xlu0 %v949
        %v951 = vpop.xlane.xlu0 %950
        %v952 = vrcp.pop %v948
        %v953 = vrcp.pop %v951
        %v954 = vmul.f32 %v943, %v952
        %v955 = vmul.f32 %v945, %v953
        %v956 = vpack.c.bf16 %v955, %v954
        %957 = vrot.lane.b32.xlu0 %v639, 56
        %v958 = vpop.permute.xlu0 %957
        %v961 = vsel %vm691, %v956, 0
        %963 = vmatprep.subr.bf16.mxu0 0
        %964 = vmatpush1.bf16.msra.mxu0 %v958
        %965 = vmatprep.subr.bf16.mxu0 0
        %966 = vmatpush1.bf16.msra.mxu0 0
        %967 = vmatprep.subr.bf16.mxu0 0
        %968 = vmatpush1.bf16.msra.mxu0 0
        %969 = vmatprep.subr.bf16.mxu0 0
        %970 = vmatpush1.bf16.msra.mxu0 0
        %971 = vmatprep.subr.bf16.mxu0 0
        %972 = vmatpush1.bf16.msra.mxu0 0
        %973 = vmatprep.subr.bf16.mxu0 0
        %974 = vmatpush1.bf16.msra.mxu0 0
        %975 = vmatprep.subr.bf16.mxu0 0
        %976 = vmatpush1.bf16.msra.mxu0 0
        %977 = vmatprep.subr.bf16.mxu0 0
        %978 = vmatpush1.bf16.msra.mxu0 0
        %979 = vmatprep.subr.bf16.mxu0 0
        %980 = vmatpush1.bf16.msra.mxu0 0
        %981 = vmatprep.subr.bf16.mxu0 0
        %982 = vmatpush1.bf16.msra.mxu0 0
        %983 = vmatprep.subr.bf16.mxu0 0
        %984 = vmatpush1.bf16.msra.mxu0 0
        %985 = vmatprep.subr.bf16.mxu0 0
        %986 = vmatpush1.bf16.msra.mxu0 0
        %987 = vmatprep.subr.bf16.mxu0 0
        %988 = vmatpush1.bf16.msra.mxu0 0
        %989 = vmatprep.subr.bf16.mxu0 0
        %990 = vmatpush1.bf16.msra.mxu0 0
        %991 = vmatprep.subr.bf16.mxu0 0
        %992 = vmatpush1.bf16.msra.mxu0 0
        %993 = vmatprep.subr.bf16.mxu0 0
        %994 = vmatpush1.bf16.msra.mxu0 0
        %995 = vmatprep.mubr.bf16.mxu0 0
        %996 = vmatmul.mubr.bf16.gmra.mrb[0].mxu0 %v961
        %v997 = vpop.f32.mrb[0].mxu0
        %v998 = vadd.f32 0.0, %v997
        %v999 = vpop.f32.mrb[0].mxu0
        %v1000 = vpop.f32.mrb[0].mxu0
        %v1001 = vadd.f32 0.0, %v1000
        %v1002 = vpop.f32.mrb[0].mxu0
        %1003 = vdwg.mxu0
        %1004 = vrot.lane.b32.xlu0 %v639, 116
        %v1005 = vpop.permute.xlu0 %1004
        %1006 = vrot.lane.b32.xlu0 %v639, 84
        %v1007 = vpop.permute.xlu0 %1006
        %v1009 = vsel %vm643, %v1005, 0
        %v1012 = vsel %vm643, %v1007, 0
        %1014 = vmatprep.subr.bf16.mxu0 0
        %1015 = vmatpush1.bf16.xpose.msra.mxu0 %v1012
        %1016 = vmatprep.subr.bf16.mxu0 0
        %1017 = vmatpush1.bf16.xpose.msra.mxu0 0
        %1018 = vmatprep.subr.bf16.mxu0 0
        %1019 = vmatpush1.bf16.xpose.msra.mxu0 0
        %1020 = vmatprep.subr.bf16.mxu0 0
        %1021 = vmatpush1.bf16.xpose.msra.mxu0 0
        %1022 = vmatprep.subr.bf16.mxu0 0
        %1023 = vmatpush1.bf16.xpose.msra.mxu0 0
        %1024 = vmatprep.subr.bf16.mxu0 0
        %1025 = vmatpush1.bf16.xpose.msra.mxu0 0
        %1026 = vmatprep.subr.bf16.mxu0 0
        %1027 = vmatpush1.bf16.xpose.msra.mxu0 0
        %1028 = vmatprep.subr.bf16.mxu0 0
        %1029 = vmatpush1.bf16.xpose.msra.mxu0 0
        %1030 = vmatprep.subr.bf16.mxu0 0
        %1031 = vmatpush1.bf16.xpose.msra.mxu0 0
        %1032 = vmatprep.subr.bf16.mxu0 0
        %1033 = vmatpush1.bf16.xpose.msra.mxu0 0
        %1034 = vmatprep.subr.bf16.mxu0 0
        %1035 = vmatpush1.bf16.xpose.msra.mxu0 0
        %1036 = vmatprep.subr.bf16.mxu0 0
        %1037 = vmatpush1.bf16.xpose.msra.mxu0 0
        %1038 = vmatprep.subr.bf16.mxu0 0
        %1039 = vmatpush1.bf16.xpose.msra.mxu0 0
        %1040 = vmatprep.subr.bf16.mxu0 0
        %1041 = vmatpush1.bf16.xpose.msra.mxu0 0
        %1042 = vmatprep.subr.bf16.mxu0 0
        %1043 = vmatpush1.bf16.xpose.msra.mxu0 0
        %1044 = vmatprep.subr.bf16.mxu0 0
        %1045 = vmatpush1.bf16.xpose.msra.mxu0 0
        %1046 = vmatprep.mubr.bf16.mxu0 0
        %1047 = vmatmul.mubr.bf16.gmra.mrb[0].mxu0 %v1009
        %v1048 = vpop.f32.mrb[0].mxu0
        %v1049 = vadd.f32 %v637, %v1048
        %v1050 = vpop.f32.mrb[0].mxu0
        %v1051 = vpop.f32.mrb[0].mxu0
        %v1052 = vadd.f32 %v638, %v1051
        %v1053 = vpop.f32.mrb[0].mxu0
        %1054 = vdwg.mxu0
        %v1055 = vsel %vm691, %v1049, -inf
        %1056 = vmax.xlane.f32.xlu0 %v1055
        %v1057 = vpop.xlane.xlu0 %1056
        %v1058 = vsel %vm691, %v1052, -inf
        %1059 = vmax.xlane.f32.xlu0 %v1058
        %v1060 = vpop.xlane.xlu0 %1059
        %v1061 = vsub.f32 %v1049, %v1057
        %v1062 = vsub.f32 %v1052, %v1060
        %v1063 = vmul.f32 %v1061, 1.442695
        %v1064 = vpow.pop %v1063
        %v1065 = vmul.f32 %v1062, 1.442695
        %v1066 = vpow.pop %v1065
        %v1067 = vsel %vm691, %v1064, 0.0
        %1068 = vadd.xlane.f32.xlu0 %v1067
        %v1069 = vpop.xlane.xlu0 %1068
        %v1070 = vsel %vm691, %v1066, 0.0
        %1071 = vadd.xlane.f32.xlu0 %v1070
        %v1072 = vpop.xlane.xlu0 %1071
        %v1073 = vrcp.pop %v1069
        %v1074 = vrcp.pop %v1072
        %v1075 = vmul.f32 %v1064, %v1073
        %v1076 = vmul.f32 %v1066, %v1074
        %v1077 = vpack.c.bf16 %v1076, %v1075
        %1078 = vrot.lane.b32.xlu0 %v639, 52
        %v1079 = vpop.permute.xlu0 %1078
        %v1082 = vsel %vm691, %v1077, 0
        %1084 = vmatprep.subr.bf16.mxu0 0
        %1085 = vmatpush1.bf16.msra.mxu0 %v1079
        %1086 = vmatprep.subr.bf16.mxu0 0
        %1087 = vmatpush1.bf16.msra.mxu0 0
        %1088 = vmatprep.subr.bf16.mxu0 0
        %1089 = vmatpush1.bf16.msra.mxu0 0
        %1090 = vmatprep.subr.bf16.mxu0 0
        %1091 = vmatpush1.bf16.msra.mxu0 0
        %1092 = vmatprep.subr.bf16.mxu0 0
        %1093 = vmatpush1.bf16.msra.mxu0 0
        %1094 = vmatprep.subr.bf16.mxu0 0
        %1095 = vmatpush1.bf16.msra.mxu0 0
        %1096 = vmatprep.subr.bf16.mxu0 0
        %1097 = vmatpush1.bf16.msra.mxu0 0
        %1098 = vmatprep.subr.bf16.mxu0 0
        %1099 = vmatpush1.bf16.msra.mxu0 0
        %1100 = vmatprep.subr.bf16.mxu0 0
        %1101 = vmatpush1.bf16.msra.mxu0 0
        %1102 = vmatprep.subr.bf16.mxu0 0
        %1103 = vmatpush1.bf16.msra.mxu0 0
        %1104 = vmatprep.subr.bf16.mxu0 0
        %1105 = vmatpush1.bf16.msra.mxu0 0
        %1106 = vmatprep.subr.bf16.mxu0 0
        %1107 = vmatpush1.bf16.msra.mxu0 0
        %1108 = vmatprep.subr.bf16.mxu0 0
        %1109 = vmatpush1.bf16.msra.mxu0 0
        %1110 = vmatprep.subr.bf16.mxu0 0
        %1111 = vmatpush1.bf16.msra.mxu0 0
        %1112 = vmatprep.subr.bf16.mxu0 0
        %1113 = vmatpush1.bf16.msra.mxu0 0
        %1114 = vmatprep.subr.bf16.mxu0 0
        %1115 = vmatpush1.bf16.msra.mxu0 0
        %1116 = vmatprep.mubr.bf16.mxu0 0
        %1117 = vmatmul.mubr.bf16.gmra.mrb[0].mxu0 %v1082
        %v1118 = vpop.f32.mrb[0].mxu0
        %v1119 = vadd.f32 0.0, %v1118
        %v1120 = vpop.f32.mrb[0].mxu0
        %v1121 = vpop.f32.mrb[0].mxu0
        %v1122 = vadd.f32 0.0, %v1121
        %v1123 = vpop.f32.mrb[0].mxu0
        %1124 = vdwg.mxu0
        %1125 = vrot.lane.b32.xlu0 %v639, 112
        %v1126 = vpop.permute.xlu0 %1125
        %1127 = vrot.lane.b32.xlu0 %v639, 80
        %v1128 = vpop.permute.xlu0 %1127
        %v1130 = vsel %vm643, %v1126, 0
        %v1133 = vsel %vm643, %v1128, 0
        %1135 = vmatprep.subr.bf16.mxu0 0
        %1136 = vmatpush1.bf16.xpose.msra.mxu0 %v1133
        %1137 = vmatprep.subr.bf16.mxu0 0
        %1138 = vmatpush1.bf16.xpose.msra.mxu0 0
        %1139 = vmatprep.subr.bf16.mxu0 0
        %1140 = vmatpush1.bf16.xpose.msra.mxu0 0
        %1141 = vmatprep.subr.bf16.mxu0 0
        %1142 = vmatpush1.bf16.xpose.msra.mxu0 0
        %1143 = vmatprep.subr.bf16.mxu0 0
        %1144 = vmatpush1.bf16.xpose.msra.mxu0 0
        %1145 = vmatprep.subr.bf16.mxu0 0
        %1146 = vmatpush1.bf16.xpose.msra.mxu0 0
        %1147 = vmatprep.subr.bf16.mxu0 0
        %1148 = vmatpush1.bf16.xpose.msra.mxu0 0
        %1149 = vmatprep.subr.bf16.mxu0 0
        %1150 = vmatpush1.bf16.xpose.msra.mxu0 0
        %1151 = vmatprep.subr.bf16.mxu0 0
        %1152 = vmatpush1.bf16.xpose.msra.mxu0 0
        %1153 = vmatprep.subr.bf16.mxu0 0
        %1154 = vmatpush1.bf16.xpose.msra.mxu0 0
        %1155 = vmatprep.subr.bf16.mxu0 0
        %1156 = vmatpush1.bf16.xpose.msra.mxu0 0
        %1157 = vmatprep.subr.bf16.mxu0 0
        %1158 = vmatpush1.bf16.xpose.msra.mxu0 0
        %1159 = vmatprep.subr.bf16.mxu0 0
        %1160 = vmatpush1.bf16.xpose.msra.mxu0 0
        %1161 = vmatprep.subr.bf16.mxu0 0
        %1162 = vmatpush1.bf16.xpose.msra.mxu0 0
        %1163 = vmatprep.subr.bf16.mxu0 0
        %1164 = vmatpush1.bf16.xpose.msra.mxu0 0
        %1165 = vmatprep.subr.bf16.mxu0 0
        %1166 = vmatpush1.bf16.xpose.msra.mxu0 0
        %1167 = vmatprep.mubr.bf16.mxu0 0
        %1168 = vmatmul.mubr.bf16.gmra.mrb[0].mxu0 %v1130
        %v1169 = vpop.f32.mrb[0].mxu0
        %v1170 = vadd.f32 %v637, %v1169
        %v1171 = vpop.f32.mrb[0].mxu0
        %v1172 = vpop.f32.mrb[0].mxu0
        %v1173 = vadd.f32 %v638, %v1172
        %v1174 = vpop.f32.mrb[0].mxu0
        %1175 = vdwg.mxu0
        %v1176 = vsel %vm691, %v1170, -inf
        %1177 = vmax.xlane.f32.xlu0 %v1176
        %v1178 = vpop.xlane.xlu0 %1177
        %v1179 = vsel %vm691, %v1173, -inf
        %1180 = vmax.xlane.f32.xlu0 %v1179
        %v1181 = vpop.xlane.xlu0 %1180
        %v1182 = vsub.f32 %v1170, %v1178
        %v1183 = vsub.f32 %v1173, %v1181
        %v1184 = vmul.f32 %v1182, 1.442695
        %v1185 = vpow.pop %v1184
        %v1186 = vmul.f32 %v1183, 1.442695
        %v1187 = vpow.pop %v1186
        %v1188 = vsel %vm691, %v1185, 0.0
        %1189 = vadd.xlane.f32.xlu0 %v1188
        %v1190 = vpop.xlane.xlu0 %1189
        %v1191 = vsel %vm691, %v1187, 0.0
        %1192 = vadd.xlane.f32.xlu0 %v1191
        %v1193 = vpop.xlane.xlu0 %1192
        %v1194 = vrcp.pop %v1190
        %v1195 = vrcp.pop %v1193
        %v1196 = vmul.f32 %v1185, %v1194
        %v1197 = vmul.f32 %v1187, %v1195
        %v1198 = vpack.c.bf16 %v1197, %v1196
        %1199 = vrot.lane.b32.xlu0 %v639, 48
        %v1200 = vpop.permute.xlu0 %1199
        %v1203 = vsel %vm691, %v1198, 0
        %1205 = vmatprep.subr.bf16.mxu0 0
        %1206 = vmatpush1.bf16.msra.mxu0 %v1200
        %1207 = vmatprep.subr.bf16.mxu0 0
        %1208 = vmatpush1.bf16.msra.mxu0 0
        %1209 = vmatprep.subr.bf16.mxu0 0
        %1210 = vmatpush1.bf16.msra.mxu0 0
        %1211 = vmatprep.subr.bf16.mxu0 0
        %1212 = vmatpush1.bf16.msra.mxu0 0
        %1213 = vmatprep.subr.bf16.mxu0 0
        %1214 = vmatpush1.bf16.msra.mxu0 0
        %1215 = vmatprep.subr.bf16.mxu0 0
        %1216 = vmatpush1.bf16.msra.mxu0 0
        %1217 = vmatprep.subr.bf16.mxu0 0
        %1218 = vmatpush1.bf16.msra.mxu0 0
        %1219 = vmatprep.subr.bf16.mxu0 0
        %1220 = vmatpush1.bf16.msra.mxu0 0
        %1221 = vmatprep.subr.bf16.mxu0 0
        %1222 = vmatpush1.bf16.msra.mxu0 0
        %1223 = vmatprep.subr.bf16.mxu0 0
        %1224 = vmatpush1.bf16.msra.mxu0 0
        %1225 = vmatprep.subr.bf16.mxu0 0
        %1226 = vmatpush1.bf16.msra.mxu0 0
        %1227 = vmatprep.subr.bf16.mxu0 0
        %1228 = vmatpush1.bf16.msra.mxu0 0
        %1229 = vmatprep.subr.bf16.mxu0 0
        %1230 = vmatpush1.bf16.msra.mxu0 0
        %1231 = vmatprep.subr.bf16.mxu0 0
        %1232 = vmatpush1.bf16.msra.mxu0 0
        %1233 = vmatprep.subr.bf16.mxu0 0
        %1234 = vmatpush1.bf16.msra.mxu0 0
        %1235 = vmatprep.subr.bf16.mxu0 0
        %1236 = vmatpush1.bf16.msra.mxu0 0
        %1237 = vmatprep.mubr.bf16.mxu0 0
        %1238 = vmatmul.mubr.bf16.gmra.mrb[0].mxu0 %v1203
        %v1239 = vpop.f32.mrb[0].mxu0
        %v1240 = vadd.f32 0.0, %v1239
        %v1241 = vpop.f32.mrb[0].mxu0
        %v1242 = vpop.f32.mrb[0].mxu0
        %v1243 = vadd.f32 0.0, %v1242
        %v1244 = vpop.f32.mrb[0].mxu0
        %1245 = vdwg.mxu0
        %1246 = vrot.lane.b32.xlu0 %v639, 108
        %v1247 = vpop.permute.xlu0 %1246
        %1248 = vrot.lane.b32.xlu0 %v639, 76
        %v1249 = vpop.permute.xlu0 %1248
        %v1251 = vsel %vm643, %v1247, 0
        %v1254 = vsel %vm643, %v1249, 0
        %1256 = vmatprep.subr.bf16.mxu0 0
        %1257 = vmatpush1.bf16.xpose.msra.mxu0 %v1254
        %1258 = vmatprep.subr.bf16.mxu0 0
        %1259 = vmatpush1.bf16.xpose.msra.mxu0 0
        %1260 = vmatprep.subr.bf16.mxu0 0
        %1261 = vmatpush1.bf16.xpose.msra.mxu0 0
        %1262 = vmatprep.subr.bf16.mxu0 0
        %1263 = vmatpush1.bf16.xpose.msra.mxu0 0
        %1264 = vmatprep.subr.bf16.mxu0 0
        %1265 = vmatpush1.bf16.xpose.msra.mxu0 0
        %1266 = vmatprep.subr.bf16.mxu0 0
        %1267 = vmatpush1.bf16.xpose.msra.mxu0 0
        %1268 = vmatprep.subr.bf16.mxu0 0
        %1269 = vmatpush1.bf16.xpose.msra.mxu0 0
        %1270 = vmatprep.subr.bf16.mxu0 0
        %1271 = vmatpush1.bf16.xpose.msra.mxu0 0
        %1272 = vmatprep.subr.bf16.mxu0 0
        %1273 = vmatpush1.bf16.xpose.msra.mxu0 0
        %1274 = vmatprep.subr.bf16.mxu0 0
        %1275 = vmatpush1.bf16.xpose.msra.mxu0 0
        %1276 = vmatprep.subr.bf16.mxu0 0
        %1277 = vmatpush1.bf16.xpose.msra.mxu0 0
        %1278 = vmatprep.subr.bf16.mxu0 0
        %1279 = vmatpush1.bf16.xpose.msra.mxu0 0
        %1280 = vmatprep.subr.bf16.mxu0 0
        %1281 = vmatpush1.bf16.xpose.msra.mxu0 0
        %1282 = vmatprep.subr.bf16.mxu0 0
        %1283 = vmatpush1.bf16.xpose.msra.mxu0 0
        %1284 = vmatprep.subr.bf16.mxu0 0
        %1285 = vmatpush1.bf16.xpose.msra.mxu0 0
        %1286 = vmatprep.subr.bf16.mxu0 0
        %1287 = vmatpush1.bf16.xpose.msra.mxu0 0
        %1288 = vmatprep.mubr.bf16.mxu0 0
        %1289 = vmatmul.mubr.bf16.gmra.mrb[0].mxu0 %v1251
        %v1290 = vpop.f32.mrb[0].mxu0
        %v1291 = vadd.f32 %v637, %v1290
        %v1292 = vpop.f32.mrb[0].mxu0
        %v1293 = vpop.f32.mrb[0].mxu0
        %v1294 = vadd.f32 %v638, %v1293
        %v1295 = vpop.f32.mrb[0].mxu0
        %1296 = vdwg.mxu0
        %v1297 = vsel %vm691, %v1291, -inf
        %1298 = vmax.xlane.f32.xlu0 %v1297
        %v1299 = vpop.xlane.xlu0 %1298
        %v1300 = vsel %vm691, %v1294, -inf
        %1301 = vmax.xlane.f32.xlu0 %v1300
        %v1302 = vpop.xlane.xlu0 %1301
        %v1303 = vsub.f32 %v1291, %v1299
        %v1304 = vsub.f32 %v1294, %v1302
        %v1305 = vmul.f32 %v1303, 1.442695
        %v1306 = vpow.pop %v1305
        %v1307 = vmul.f32 %v1304, 1.442695
        %v1308 = vpow.pop %v1307
        %v1309 = vsel %vm691, %v1306, 0.0
        %1310 = vadd.xlane.f32.xlu0 %v1309
        %v1311 = vpop.xlane.xlu0 %1310
        %v1312 = vsel %vm691, %v1308, 0.0
        %1313 = vadd.xlane.f32.xlu0 %v1312
        %v1314 = vpop.xlane.xlu0 %1313
        %v1315 = vrcp.pop %v1311
        %v1316 = vrcp.pop %v1314
        %v1317 = vmul.f32 %v1306, %v1315
        %v1318 = vmul.f32 %v1308, %v1316
        %v1319 = vpack.c.bf16 %v1318, %v1317
        %1320 = vrot.lane.b32.xlu0 %v639, 44
        %v1321 = vpop.permute.xlu0 %1320
        %v1324 = vsel %vm691, %v1319, 0
        %1326 = vmatprep.subr.bf16.mxu0 0
        %1327 = vmatpush1.bf16.msra.mxu0 %v1321
        %1328 = vmatprep.subr.bf16.mxu0 0
        %1329 = vmatpush1.bf16.msra.mxu0 0
        %1330 = vmatprep.subr.bf16.mxu0 0
        %1331 = vmatpush1.bf16.msra.mxu0 0
        %1332 = vmatprep.subr.bf16.mxu0 0
        %1333 = vmatpush1.bf16.msra.mxu0 0
        %1334 = vmatprep.subr.bf16.mxu0 0
        %1335 = vmatpush1.bf16.msra.mxu0 0
        %1336 = vmatprep.subr.bf16.mxu0 0
        %1337 = vmatpush1.bf16.msra.mxu0 0
        %1338 = vmatprep.subr.bf16.mxu0 0
        %1339 = vmatpush1.bf16.msra.mxu0 0
        %1340 = vmatprep.subr.bf16.mxu0 0
        %1341 = vmatpush1.bf16.msra.mxu0 0
        %1342 = vmatprep.subr.bf16.mxu0 0
        %1343 = vmatpush1.bf16.msra.mxu0 0
        %1344 = vmatprep.subr.bf16.mxu0 0
        %1345 = vmatpush1.bf16.msra.mxu0 0
        %1346 = vmatprep.subr.bf16.mxu0 0
        %1347 = vmatpush1.bf16.msra.mxu0 0
        %1348 = vmatprep.subr.bf16.mxu0 0
        %1349 = vmatpush1.bf16.msra.mxu0 0
        %1350 = vmatprep.subr.bf16.mxu0 0
        %1351 = vmatpush1.bf16.msra.mxu0 0
        %1352 = vmatprep.subr.bf16.mxu0 0
        %1353 = vmatpush1.bf16.msra.mxu0 0
        %1354 = vmatprep.subr.bf16.mxu0 0
        %1355 = vmatpush1.bf16.msra.mxu0 0
        %1356 = vmatprep.subr.bf16.mxu0 0
        %1357 = vmatpush1.bf16.msra.mxu0 0
        %1358 = vmatprep.mubr.bf16.mxu0 0
        %1359 = vmatmul.mubr.bf16.gmra.mrb[0].mxu0 %v1324
        %v1360 = vpop.f32.mrb[0].mxu0
        %v1361 = vadd.f32 0.0, %v1360
        %v1362 = vpop.f32.mrb[0].mxu0
        %v1363 = vpop.f32.mrb[0].mxu0
        %v1364 = vadd.f32 0.0, %v1363
        %v1365 = vpop.f32.mrb[0].mxu0
        %1366 = vdwg.mxu0
        %1367 = vrot.lane.b32.xlu0 %v639, 104
        %v1368 = vpop.permute.xlu0 %1367
        %1369 = vrot.lane.b32.xlu0 %v639, 72
        %v1370 = vpop.permute.xlu0 %1369
        %v1372 = vsel %vm643, %v1368, 0
        %v1375 = vsel %vm643, %v1370, 0
        %1377 = vmatprep.subr.bf16.mxu0 0
        %1378 = vmatpush1.bf16.xpose.msra.mxu0 %v1375
        %1379 = vmatprep.subr.bf16.mxu0 0
        %1380 = vmatpush1.bf16.xpose.msra.mxu0 0
        %1381 = vmatprep.subr.bf16.mxu0 0
        %1382 = vmatpush1.bf16.xpose.msra.mxu0 0
        %1383 = vmatprep.subr.bf16.mxu0 0
        %1384 = vmatpush1.bf16.xpose.msra.mxu0 0
        %1385 = vmatprep.subr.bf16.mxu0 0
        %1386 = vmatpush1.bf16.xpose.msra.mxu0 0
        %1387 = vmatprep.subr.bf16.mxu0 0
        %1388 = vmatpush1.bf16.xpose.msra.mxu0 0
        %1389 = vmatprep.subr.bf16.mxu0 0
        %1390 = vmatpush1.bf16.xpose.msra.mxu0 0
        %1391 = vmatprep.subr.bf16.mxu0 0
        %1392 = vmatpush1.bf16.xpose.msra.mxu0 0
        %1393 = vmatprep.subr.bf16.mxu0 0
        %1394 = vmatpush1.bf16.xpose.msra.mxu0 0
        %1395 = vmatprep.subr.bf16.mxu0 0
        %1396 = vmatpush1.bf16.xpose.msra.mxu0 0
        %1397 = vmatprep.subr.bf16.mxu0 0
        %1398 = vmatpush1.bf16.xpose.msra.mxu0 0
        %1399 = vmatprep.subr.bf16.mxu0 0
        %1400 = vmatpush1.bf16.xpose.msra.mxu0 0
        %1401 = vmatprep.subr.bf16.mxu0 0
        %1402 = vmatpush1.bf16.xpose.msra.mxu0 0
        %1403 = vmatprep.subr.bf16.mxu0 0
        %1404 = vmatpush1.bf16.xpose.msra.mxu0 0
        %1405 = vmatprep.subr.bf16.mxu0 0
        %1406 = vmatpush1.bf16.xpose.msra.mxu0 0
        %1407 = vmatprep.subr.bf16.mxu0 0
        %1408 = vmatpush1.bf16.xpose.msra.mxu0 0
        %1409 = vmatprep.mubr.bf16.mxu0 0
        %1410 = vmatmul.mubr.bf16.gmra.mrb[0].mxu0 %v1372
        %v1411 = vpop.f32.mrb[0].mxu0
        %v1412 = vadd.f32 %v637, %v1411
        %v1413 = vpop.f32.mrb[0].mxu0
        %v1414 = vpop.f32.mrb[0].mxu0
        %v1415 = vadd.f32 %v638, %v1414
        %v1416 = vpop.f32.mrb[0].mxu0
        %1417 = vdwg.mxu0
        %v1418 = vsel %vm691, %v1412, -inf
        %1419 = vmax.xlane.f32.xlu0 %v1418
        %v1420 = vpop.xlane.xlu0 %1419
        %v1421 = vsel %vm691, %v1415, -inf
        %1422 = vmax.xlane.f32.xlu0 %v1421
        %v1423 = vpop.xlane.xlu0 %1422
        %v1424 = vsub.f32 %v1412, %v1420
        %v1425 = vsub.f32 %v1415, %v1423
        %v1426 = vmul.f32 %v1424, 1.442695
        %v1427 = vpow.pop %v1426
        %v1428 = vmul.f32 %v1425, 1.442695
        %v1429 = vpow.pop %v1428
        %v1430 = vsel %vm691, %v1427, 0.0
        %1431 = vadd.xlane.f32.xlu0 %v1430
        %v1432 = vpop.xlane.xlu0 %1431
        %v1433 = vsel %vm691, %v1429, 0.0
        %1434 = vadd.xlane.f32.xlu0 %v1433
        %v1435 = vpop.xlane.xlu0 %1434
        %v1436 = vrcp.pop %v1432
        %v1437 = vrcp.pop %v1435
        %v1438 = vmul.f32 %v1427, %v1436
        %v1439 = vmul.f32 %v1429, %v1437
        %v1440 = vpack.c.bf16 %v1439, %v1438
        %1441 = vrot.lane.b32.xlu0 %v639, 40
        %v1442 = vpop.permute.xlu0 %1441
        %v1445 = vsel %vm691, %v1440, 0
        %1447 = vmatprep.subr.bf16.mxu0 0
        %1448 = vmatpush1.bf16.msra.mxu0 %v1442
        %1449 = vmatprep.subr.bf16.mxu0 0
        %1450 = vmatpush1.bf16.msra.mxu0 0
        %1451 = vmatprep.subr.bf16.mxu0 0
        %1452 = vmatpush1.bf16.msra.mxu0 0
        %1453 = vmatprep.subr.bf16.mxu0 0
        %1454 = vmatpush1.bf16.msra.mxu0 0
        %1455 = vmatprep.subr.bf16.mxu0 0
        %1456 = vmatpush1.bf16.msra.mxu0 0
        %1457 = vmatprep.subr.bf16.mxu0 0
        %1458 = vmatpush1.bf16.msra.mxu0 0
        %1459 = vmatprep.subr.bf16.mxu0 0
        %1460 = vmatpush1.bf16.msra.mxu0 0
        %1461 = vmatprep.subr.bf16.mxu0 0
        %1462 = vmatpush1.bf16.msra.mxu0 0
        %1463 = vmatprep.subr.bf16.mxu0 0
        %1464 = vmatpush1.bf16.msra.mxu0 0
        %1465 = vmatprep.subr.bf16.mxu0 0
        %1466 = vmatpush1.bf16.msra.mxu0 0
        %1467 = vmatprep.subr.bf16.mxu0 0
        %1468 = vmatpush1.bf16.msra.mxu0 0
        %1469 = vmatprep.subr.bf16.mxu0 0
        %1470 = vmatpush1.bf16.msra.mxu0 0
        %1471 = vmatprep.subr.bf16.mxu0 0
        %1472 = vmatpush1.bf16.msra.mxu0 0
        %1473 = vmatprep.subr.bf16.mxu0 0
        %1474 = vmatpush1.bf16.msra.mxu0 0
        %1475 = vmatprep.subr.bf16.mxu0 0
        %1476 = vmatpush1.bf16.msra.mxu0 0
        %1477 = vmatprep.subr.bf16.mxu0 0
        %1478 = vmatpush1.bf16.msra.mxu0 0
        %1479 = vmatprep.mubr.bf16.mxu0 0
        %1480 = vmatmul.mubr.bf16.gmra.mrb[0].mxu0 %v1445
        %v1481 = vpop.f32.mrb[0].mxu0
        %v1482 = vadd.f32 0.0, %v1481
        %v1483 = vpop.f32.mrb[0].mxu0
        %v1484 = vpop.f32.mrb[0].mxu0
        %v1485 = vadd.f32 0.0, %v1484
        %v1486 = vpop.f32.mrb[0].mxu0
        %1487 = vdwg.mxu0
        %1488 = vrot.lane.b32.xlu0 %v639, 100
        %v1489 = vpop.permute.xlu0 %1488
        %1490 = vrot.lane.b32.xlu0 %v639, 68
        %v1491 = vpop.permute.xlu0 %1490
        %v1493 = vsel %vm643, %v1489, 0
        %v1496 = vsel %vm643, %v1491, 0
        %1498 = vmatprep.subr.bf16.mxu0 0
        %1499 = vmatpush1.bf16.xpose.msra.mxu0 %v1496
        %1500 = vmatprep.subr.bf16.mxu0 0
        %1501 = vmatpush1.bf16.xpose.msra.mxu0 0
        %1502 = vmatprep.subr.bf16.mxu0 0
        %1503 = vmatpush1.bf16.xpose.msra.mxu0 0
        %1504 = vmatprep.subr.bf16.mxu0 0
        %1505 = vmatpush1.bf16.xpose.msra.mxu0 0
        %1506 = vmatprep.subr.bf16.mxu0 0
        %1507 = vmatpush1.bf16.xpose.msra.mxu0 0
        %1508 = vmatprep.subr.bf16.mxu0 0
        %1509 = vmatpush1.bf16.xpose.msra.mxu0 0
        %1510 = vmatprep.subr.bf16.mxu0 0
        %1511 = vmatpush1.bf16.xpose.msra.mxu0 0
        %1512 = vmatprep.subr.bf16.mxu0 0
        %1513 = vmatpush1.bf16.xpose.msra.mxu0 0
        %1514 = vmatprep.subr.bf16.mxu0 0
        %1515 = vmatpush1.bf16.xpose.msra.mxu0 0
        %1516 = vmatprep.subr.bf16.mxu0 0
        %1517 = vmatpush1.bf16.xpose.msra.mxu0 0
        %1518 = vmatprep.subr.bf16.mxu0 0
        %1519 = vmatpush1.bf16.xpose.msra.mxu0 0
        %1520 = vmatprep.subr.bf16.mxu0 0
        %1521 = vmatpush1.bf16.xpose.msra.mxu0 0
        %1522 = vmatprep.subr.bf16.mxu0 0
        %1523 = vmatpush1.bf16.xpose.msra.mxu0 0
        %1524 = vmatprep.subr.bf16.mxu0 0
        %1525 = vmatpush1.bf16.xpose.msra.mxu0 0
        %1526 = vmatprep.subr.bf16.mxu0 0
        %1527 = vmatpush1.bf16.xpose.msra.mxu0 0
        %1528 = vmatprep.subr.bf16.mxu0 0
        %1529 = vmatpush1.bf16.xpose.msra.mxu0 0
        %1530 = vmatprep.mubr.bf16.mxu0 0
        %1531 = vmatmul.mubr.bf16.gmra.mrb[0].mxu0 %v1493
        %v1532 = vpop.f32.mrb[0].mxu0
        %v1533 = vadd.f32 %v637, %v1532
        %v1534 = vpop.f32.mrb[0].mxu0
        %v1535 = vpop.f32.mrb[0].mxu0
        %v1536 = vadd.f32 %v638, %v1535
        %v1537 = vpop.f32.mrb[0].mxu0
        %1538 = vdwg.mxu0
        %v1539 = vsel %vm691, %v1533, -inf
        %1540 = vmax.xlane.f32.xlu0 %v1539
        %v1541 = vpop.xlane.xlu0 %1540
        %v1542 = vsel %vm691, %v1536, -inf
        %1543 = vmax.xlane.f32.xlu0 %v1542
        %v1544 = vpop.xlane.xlu0 %1543
        %v1545 = vsub.f32 %v1533, %v1541
        %v1546 = vsub.f32 %v1536, %v1544
        %v1547 = vmul.f32 %v1545, 1.442695
        %v1548 = vpow.pop %v1547
        %v1549 = vmul.f32 %v1546, 1.442695
        %v1550 = vpow.pop %v1549
        %v1551 = vsel %vm691, %v1548, 0.0
        %1552 = vadd.xlane.f32.xlu0 %v1551
        %v1553 = vpop.xlane.xlu0 %1552
        %v1554 = vsel %vm691, %v1550, 0.0
        %1555 = vadd.xlane.f32.xlu0 %v1554
        %v1556 = vpop.xlane.xlu0 %1555
        %v1557 = vrcp.pop %v1553
        %v1558 = vrcp.pop %v1556
        %v1559 = vmul.f32 %v1548, %v1557
        %v1560 = vmul.f32 %v1550, %v1558
        %v1561 = vpack.c.bf16 %v1560, %v1559
        %1562 = vrot.lane.b32.xlu0 %v639, 36
        %v1563 = vpop.permute.xlu0 %1562
        %v1566 = vsel %vm691, %v1561, 0
        %1568 = vmatprep.subr.bf16.mxu0 0
        %1569 = vmatpush1.bf16.msra.mxu0 %v1563
        %1570 = vmatprep.subr.bf16.mxu0 0
        %1571 = vmatpush1.bf16.msra.mxu0 0
        %1572 = vmatprep.subr.bf16.mxu0 0
        %1573 = vmatpush1.bf16.msra.mxu0 0
        %1574 = vmatprep.subr.bf16.mxu0 0
        %1575 = vmatpush1.bf16.msra.mxu0 0
        %1576 = vmatprep.subr.bf16.mxu0 0
        %1577 = vmatpush1.bf16.msra.mxu0 0
        %1578 = vmatprep.subr.bf16.mxu0 0
        %1579 = vmatpush1.bf16.msra.mxu0 0
        %1580 = vmatprep.subr.bf16.mxu0 0
        %1581 = vmatpush1.bf16.msra.mxu0 0
        %1582 = vmatprep.subr.bf16.mxu0 0
        %1583 = vmatpush1.bf16.msra.mxu0 0
        %1584 = vmatprep.subr.bf16.mxu0 0
        %1585 = vmatpush1.bf16.msra.mxu0 0
        %1586 = vmatprep.subr.bf16.mxu0 0
        %1587 = vmatpush1.bf16.msra.mxu0 0
        %1588 = vmatprep.subr.bf16.mxu0 0
        %1589 = vmatpush1.bf16.msra.mxu0 0
        %1590 = vmatprep.subr.bf16.mxu0 0
        %1591 = vmatpush1.bf16.msra.mxu0 0
        %1592 = vmatprep.subr.bf16.mxu0 0
        %1593 = vmatpush1.bf16.msra.mxu0 0
        %1594 = vmatprep.subr.bf16.mxu0 0
        %1595 = vmatpush1.bf16.msra.mxu0 0
        %1596 = vmatprep.subr.bf16.mxu0 0
        %1597 = vmatpush1.bf16.msra.mxu0 0
        %1598 = vmatprep.subr.bf16.mxu0 0
        %1599 = vmatpush1.bf16.msra.mxu0 0
        %1600 = vmatprep.mubr.bf16.mxu0 0
        %1601 = vmatmul.mubr.bf16.gmra.mrb[0].mxu0 %v1566
        %v1602 = vpop.f32.mrb[0].mxu0
        %v1603 = vadd.f32 0.0, %v1602
        %v1604 = vpop.f32.mrb[0].mxu0
        %v1605 = vpop.f32.mrb[0].mxu0
        %v1606 = vadd.f32 0.0, %v1605
        %v1607 = vpop.f32.mrb[0].mxu0
        %1608 = vdwg.mxu0
        %1611 = vrot.lane.b32.xlu0 %v877, 4
        %v1612 = vpop.permute.xlu0 %1611
        %1613 = vrot.lane.b32.xlu0 %v880, 4
        %v1614 = vpop.permute.xlu0 %1613
        %1619 = vrot.lane.b32.xlu0 %v998, 8
        %v1620 = vpop.permute.xlu0 %1619
        %1621 = vrot.lane.b32.xlu0 %v1001, 8
        %v1622 = vpop.permute.xlu0 %1621
        %1627 = vrot.lane.b32.xlu0 %v1119, 12
        %v1628 = vpop.permute.xlu0 %1627
        %1629 = vrot.lane.b32.xlu0 %v1122, 12
        %v1630 = vpop.permute.xlu0 %1629
        %1635 = vrot.lane.b32.xlu0 %v1240, 16
        %v1636 = vpop.permute.xlu0 %1635
        %1637 = vrot.lane.b32.xlu0 %v1243, 16
        %v1638 = vpop.permute.xlu0 %1637
        %1643 = vrot.lane.b32.xlu0 %v1361, 20
        %v1644 = vpop.permute.xlu0 %1643
        %1645 = vrot.lane.b32.xlu0 %v1364, 20
        %v1646 = vpop.permute.xlu0 %1645
        %1651 = vrot.lane.b32.xlu0 %v1482, 24
        %v1652 = vpop.permute.xlu0 %1651
        %1653 = vrot.lane.b32.xlu0 %v1485, 24
        %v1654 = vpop.permute.xlu0 %1653
        %1659 = vrot.lane.b32.xlu0 %v1603, 28
        %v1660 = vpop.permute.xlu0 %1659
        %1661 = vrot.lane.b32.xlu0 %v1606, 28
        %v1662 = vpop.permute.xlu0 %1661
        %v1665 = vsel %vm643, %v756, %v1612
        %v1666 = vsel %vm643, %v759, %v1614
        %vm1667 = vcmask 64512
        %v1668 = vsel %vm1667, %v1665, %v1620
        %v1669 = vsel %vm1667, %v1666, %v1622
        %vm1670 = vcmask 97280
        %v1671 = vsel %vm1670, %v1668, %v1628
        %v1672 = vsel %vm1670, %v1669, %v1630
        %v1673 = vsel %vm691, %v1671, %v1636
        %v1674 = vsel %vm691, %v1672, %v1638
        %vm1675 = vcmask 162816
        %v1676 = vsel %vm1675, %v1673, %v1644
        %v1677 = vsel %vm1675, %v1674, %v1646
        %vm1678 = vcmask 195584
        %v1679 = vsel %vm1678, %v1676, %v1652
        %v1680 = vsel %vm1678, %v1677, %v1654
        %vm1681 = vcmask 228352
        %v1682 = vsel %vm1681, %v1679, %v1660
        %v1683 = vsel %vm1681, %v1680, %v1662
        %v1684 = vpack.c.bf16 %v634, %v631
        %1686 = vrot.lane.b32.xlu0 %v1684, 96
        %v1687 = vpop.permute.xlu0 %1686
        %v1689 = vsel %vm643, %v1684, 0
        %v1692 = vsel %vm643, %v1687, 0
        %1694 = vmatprep.subr.bf16.mxu0 0
        %1695 = vmatpush1.bf16.xpose.msra.mxu0 %v1692
        %1696 = vmatprep.subr.bf16.mxu0 0
        %1697 = vmatpush1.bf16.xpose.msra.mxu0 0
        %1698 = vmatprep.subr.bf16.mxu0 0
        %1699 = vmatpush1.bf16.xpose.msra.mxu0 0
        %1700 = vmatprep.subr.bf16.mxu0 0
        %1701 = vmatpush1.bf16.xpose.msra.mxu0 0
        %1702 = vmatprep.subr.bf16.mxu0 0
        %1703 = vmatpush1.bf16.xpose.msra.mxu0 0
        %1704 = vmatprep.subr.bf16.mxu0 0
        %1705 = vmatpush1.bf16.xpose.msra.mxu0 0
        %1706 = vmatprep.subr.bf16.mxu0 0
        %1707 = vmatpush1.bf16.xpose.msra.mxu0 0
        %1708 = vmatprep.subr.bf16.mxu0 0
        %1709 = vmatpush1.bf16.xpose.msra.mxu0 0
        %1710 = vmatprep.subr.bf16.mxu0 0
        %1711 = vmatpush1.bf16.xpose.msra.mxu0 0
        %1712 = vmatprep.subr.bf16.mxu0 0
        %1713 = vmatpush1.bf16.xpose.msra.mxu0 0
        %1714 = vmatprep.subr.bf16.mxu0 0
        %1715 = vmatpush1.bf16.xpose.msra.mxu0 0
        %1716 = vmatprep.subr.bf16.mxu0 0
        %1717 = vmatpush1.bf16.xpose.msra.mxu0 0
        %1718 = vmatprep.subr.bf16.mxu0 0
        %1719 = vmatpush1.bf16.xpose.msra.mxu0 0
        %1720 = vmatprep.subr.bf16.mxu0 0
        %1721 = vmatpush1.bf16.xpose.msra.mxu0 0
        %1722 = vmatprep.subr.bf16.mxu0 0
        %1723 = vmatpush1.bf16.xpose.msra.mxu0 0
        %1724 = vmatprep.subr.bf16.mxu0 0
        %1725 = vmatpush1.bf16.xpose.msra.mxu0 0
        %1726 = vmatprep.mubr.bf16.mxu0 0
        %1727 = vmatmul.mubr.bf16.gmra.mrb[0].mxu0 %v1689
        %v1728 = vpop.f32.mrb[0].mxu0
        %v1729 = vadd.f32 %v637, %v1728
        %v1730 = vpop.f32.mrb[0].mxu0
        %v1731 = vpop.f32.mrb[0].mxu0
        %v1732 = vadd.f32 %v638, %v1731
        %v1733 = vpop.f32.mrb[0].mxu0
        %1734 = vdwg.mxu0
        %v1735 = vsel %vm691, %v1729, -inf
        %1736 = vmax.xlane.f32.xlu0 %v1735
        %v1737 = vpop.xlane.xlu0 %1736
        %v1738 = vsel %vm691, %v1732, -inf
        %1739 = vmax.xlane.f32.xlu0 %v1738
        %v1740 = vpop.xlane.xlu0 %1739
        %v1741 = vsub.f32 %v1729, %v1737
        %v1742 = vsub.f32 %v1732, %v1740
        %v1743 = vmul.f32 %v1741, 1.442695
        %v1744 = vpow.pop %v1743
        %v1745 = vmul.f32 %v1742, 1.442695
        %v1746 = vpow.pop %v1745
        %v1747 = vsel %vm691, %v1744, 0.0
        %1748 = vadd.xlane.f32.xlu0 %v1747
        %v1749 = vpop.xlane.xlu0 %1748
        %v1750 = vsel %vm691, %v1746, 0.0
        %1751 = vadd.xlane.f32.xlu0 %v1750
        %v1752 = vpop.xlane.xlu0 %1751
        %v1753 = vrcp.pop %v1749
        %v1754 = vrcp.pop %v1752
        %v1755 = vmul.f32 %v1744, %v1753
        %v1756 = vmul.f32 %v1746, %v1754
        %v1757 = vpack.c.bf16 %v1756, %v1755
        %1758 = vrot.lane.b32.xlu0 %v1684, 64
        %v1759 = vpop.permute.xlu0 %1758
        %v1762 = vsel %vm691, %v1757, 0
        %1764 = vmatprep.subr.bf16.mxu0 0
        %1765 = vmatpush1.bf16.msra.mxu0 %v1759
        %1766 = vmatprep.subr.bf16.mxu0 0
        %1767 = vmatpush1.bf16.msra.mxu0 0
        %1768 = vmatprep.subr.bf16.mxu0 0
        %1769 = vmatpush1.bf16.msra.mxu0 0
        %1770 = vmatprep.subr.bf16.mxu0 0
        %1771 = vmatpush1.bf16.msra.mxu0 0
        %1772 = vmatprep.subr.bf16.mxu0 0
        %1773 = vmatpush1.bf16.msra.mxu0 0
        %1774 = vmatprep.subr.bf16.mxu0 0
        %1775 = vmatpush1.bf16.msra.mxu0 0
        %1776 = vmatprep.subr.bf16.mxu0 0
        %1777 = vmatpush1.bf16.msra.mxu0 0
        %1778 = vmatprep.subr.bf16.mxu0 0
        %1779 = vmatpush1.bf16.msra.mxu0 0
        %1780 = vmatprep.subr.bf16.mxu0 0
        %1781 = vmatpush1.bf16.msra.mxu0 0
        %1782 = vmatprep.subr.bf16.mxu0 0
        %1783 = vmatpush1.bf16.msra.mxu0 0
        %1784 = vmatprep.subr.bf16.mxu0 0
        %1785 = vmatpush1.bf16.msra.mxu0 0
        %1786 = vmatprep.subr.bf16.mxu0 0
        %1787 = vmatpush1.bf16.msra.mxu0 0
        %1788 = vmatprep.subr.bf16.mxu0 0
        %1789 = vmatpush1.bf16.msra.mxu0 0
        %1790 = vmatprep.subr.bf16.mxu0 0
        %1791 = vmatpush1.bf16.msra.mxu0 0
        %1792 = vmatprep.subr.bf16.mxu0 0
        %1793 = vmatpush1.bf16.msra.mxu0 0
        %1794 = vmatprep.subr.bf16.mxu0 0
        %1795 = vmatpush1.bf16.msra.mxu0 0
        %1796 = vmatprep.mubr.bf16.mxu0 0
        %1797 = vmatmul.mubr.bf16.gmra.mrb[0].mxu0 %v1762
        %v1798 = vpop.f32.mrb[0].mxu0
        %v1799 = vadd.f32 0.0, %v1798
        %v1800 = vpop.f32.mrb[0].mxu0
        %v1801 = vpop.f32.mrb[0].mxu0
        %v1802 = vadd.f32 0.0, %v1801
        %v1803 = vpop.f32.mrb[0].mxu0
        %1804 = vdwg.mxu0
        %1805 = vrot.lane.b32.xlu0 %v1684, 124
        %v1806 = vpop.permute.xlu0 %1805
        %1807 = vrot.lane.b32.xlu0 %v1684, 92
        %v1808 = vpop.permute.xlu0 %1807
        %v1810 = vsel %vm643, %v1806, 0
        %v1813 = vsel %vm643, %v1808, 0
        %1815 = vmatprep.subr.bf16.mxu0 0
        %1816 = vmatpush1.bf16.xpose.msra.mxu0 %v1813
        %1817 = vmatprep.subr.bf16.mxu0 0
        %1818 = vmatpush1.bf16.xpose.msra.mxu0 0
        %1819 = vmatprep.subr.bf16.mxu0 0
        %1820 = vmatpush1.bf16.xpose.msra.mxu0 0
        %1821 = vmatprep.subr.bf16.mxu0 0
        %1822 = vmatpush1.bf16.xpose.msra.mxu0 0
        %1823 = vmatprep.subr.bf16.mxu0 0
        %1824 = vmatpush1.bf16.xpose.msra.mxu0 0
        %1825 = vmatprep.subr.bf16.mxu0 0
        %1826 = vmatpush1.bf16.xpose.msra.mxu0 0
        %1827 = vmatprep.subr.bf16.mxu0 0
        %1828 = vmatpush1.bf16.xpose.msra.mxu0 0
        %1829 = vmatprep.subr.bf16.mxu0 0
        %1830 = vmatpush1.bf16.xpose.msra.mxu0 0
        %1831 = vmatprep.subr.bf16.mxu0 0
        %1832 = vmatpush1.bf16.xpose.msra.mxu0 0
        %1833 = vmatprep.subr.bf16.mxu0 0
        %1834 = vmatpush1.bf16.xpose.msra.mxu0 0
        %1835 = vmatprep.subr.bf16.mxu0 0
        %1836 = vmatpush1.bf16.xpose.msra.mxu0 0
        %1837 = vmatprep.subr.bf16.mxu0 0
        %1838 = vmatpush1.bf16.xpose.msra.mxu0 0
        %1839 = vmatprep.subr.bf16.mxu0 0
        %1840 = vmatpush1.bf16.xpose.msra.mxu0 0
        %1841 = vmatprep.subr.bf16.mxu0 0
        %1842 = vmatpush1.bf16.xpose.msra.mxu0 0
        %1843 = vmatprep.subr.bf16.mxu0 0
        %1844 = vmatpush1.bf16.xpose.msra.mxu0 0
        %1845 = vmatprep.subr.bf16.mxu0 0
        %1846 = vmatpush1.bf16.xpose.msra.mxu0 0
        %1847 = vmatprep.mubr.bf16.mxu0 0
        %1848 = vmatmul.mubr.bf16.gmra.mrb[0].mxu0 %v1810
        %v1849 = vpop.f32.mrb[0].mxu0
        %v1850 = vadd.f32 %v637, %v1849
        %v1851 = vpop.f32.mrb[0].mxu0
        %v1852 = vpop.f32.mrb[0].mxu0
        %v1853 = vadd.f32 %v638, %v1852
        %v1854 = vpop.f32.mrb[0].mxu0
        %1855 = vdwg.mxu0
        %v1856 = vsel %vm691, %v1850, -inf
        %1857 = vmax.xlane.f32.xlu0 %v1856
        %v1858 = vpop.xlane.xlu0 %1857
        %v1859 = vsel %vm691, %v1853, -inf
        %1860 = vmax.xlane.f32.xlu0 %v1859
        %v1861 = vpop.xlane.xlu0 %1860
        %v1862 = vsub.f32 %v1850, %v1858
        %v1863 = vsub.f32 %v1853, %v1861
        %v1864 = vmul.f32 %v1862, 1.442695
        %v1865 = vpow.pop %v1864
        %v1866 = vmul.f32 %v1863, 1.442695
        %v1867 = vpow.pop %v1866
        %v1868 = vsel %vm691, %v1865, 0.0
        %1869 = vadd.xlane.f32.xlu0 %v1868
        %v1870 = vpop.xlane.xlu0 %1869
        %v1871 = vsel %vm691, %v1867, 0.0
        %1872 = vadd.xlane.f32.xlu0 %v1871
        %v1873 = vpop.xlane.xlu0 %1872
        %v1874 = vrcp.pop %v1870
        %v1875 = vrcp.pop %v1873
        %v1876 = vmul.f32 %v1865, %v1874
        %v1877 = vmul.f32 %v1867, %v1875
        %v1878 = vpack.c.bf16 %v1877, %v1876
        %1879 = vrot.lane.b32.xlu0 %v1684, 60
        %v1880 = vpop.permute.xlu0 %1879
        %v1883 = vsel %vm691, %v1878, 0
        %1885 = vmatprep.subr.bf16.mxu0 0
        %1886 = vmatpush1.bf16.msra.mxu0 %v1880
        %1887 = vmatprep.subr.bf16.mxu0 0
        %1888 = vmatpush1.bf16.msra.mxu0 0
        %1889 = vmatprep.subr.bf16.mxu0 0
        %1890 = vmatpush1.bf16.msra.mxu0 0
        %1891 = vmatprep.subr.bf16.mxu0 0
        %1892 = vmatpush1.bf16.msra.mxu0 0
        %1893 = vmatprep.subr.bf16.mxu0 0
        %1894 = vmatpush1.bf16.msra.mxu0 0
        %1895 = vmatprep.subr.bf16.mxu0 0
        %1896 = vmatpush1.bf16.msra.mxu0 0
        %1897 = vmatprep.subr.bf16.mxu0 0
        %1898 = vmatpush1.bf16.msra.mxu0 0
        %1899 = vmatprep.subr.bf16.mxu0 0
        %1900 = vmatpush1.bf16.msra.mxu0 0
        %1901 = vmatprep.subr.bf16.mxu0 0
        %1902 = vmatpush1.bf16.msra.mxu0 0
        %1903 = vmatprep.subr.bf16.mxu0 0
        %1904 = vmatpush1.bf16.msra.mxu0 0
        %1905 = vmatprep.subr.bf16.mxu0 0
        %1906 = vmatpush1.bf16.msra.mxu0 0
        %1907 = vmatprep.subr.bf16.mxu0 0
        %1908 = vmatpush1.bf16.msra.mxu0 0
        %1909 = vmatprep.subr.bf16.mxu0 0
        %1910 = vmatpush1.bf16.msra.mxu0 0
        %1911 = vmatprep.subr.bf16.mxu0 0
        %1912 = vmatpush1.bf16.msra.mxu0 0
        %1913 = vmatprep.subr.bf16.mxu0 0
        %1914 = vmatpush1.bf16.msra.mxu0 0
        %1915 = vmatprep.subr.bf16.mxu0 0
        %1916 = vmatpush1.bf16.msra.mxu0 0
        %1917 = vmatprep.mubr.bf16.mxu0 0
        %1918 = vmatmul.mubr.bf16.gmra.mrb[0].mxu0 %v1883
        %v1919 = vpop.f32.mrb[0].mxu0
        %v1920 = vadd.f32 0.0, %v1919
        %v1921 = vpop.f32.mrb[0].mxu0
        %v1922 = vpop.f32.mrb[0].mxu0
        %v1923 = vadd.f32 0.0, %v1922
        %v1924 = vpop.f32.mrb[0].mxu0
        %1925 = vdwg.mxu0
        %1926 = vrot.lane.b32.xlu0 %v1684, 120
        %v1927 = vpop.permute.xlu0 %1926
        %1928 = vrot.lane.b32.xlu0 %v1684, 88
        %v1929 = vpop.permute.xlu0 %1928
        %v1931 = vsel %vm643, %v1927, 0
        %v1934 = vsel %vm643, %v1929, 0
        %1936 = vmatprep.subr.bf16.mxu0 0
        %1937 = vmatpush1.bf16.xpose.msra.mxu0 %v1934
        %1938 = vmatprep.subr.bf16.mxu0 0
        %1939 = vmatpush1.bf16.xpose.msra.mxu0 0
        %1940 = vmatprep.subr.bf16.mxu0 0
        %1941 = vmatpush1.bf16.xpose.msra.mxu0 0
        %1942 = vmatprep.subr.bf16.mxu0 0
        %1943 = vmatpush1.bf16.xpose.msra.mxu0 0
        %1944 = vmatprep.subr.bf16.mxu0 0
        %1945 = vmatpush1.bf16.xpose.msra.mxu0 0
        %1946 = vmatprep.subr.bf16.mxu0 0
        %1947 = vmatpush1.bf16.xpose.msra.mxu0 0
        %1948 = vmatprep.subr.bf16.mxu0 0
        %1949 = vmatpush1.bf16.xpose.msra.mxu0 0
        %1950 = vmatprep.subr.bf16.mxu0 0
        %1951 = vmatpush1.bf16.xpose.msra.mxu0 0
        %1952 = vmatprep.subr.bf16.mxu0 0
        %1953 = vmatpush1.bf16.xpose.msra.mxu0 0
        %1954 = vmatprep.subr.bf16.mxu0 0
        %1955 = vmatpush1.bf16.xpose.msra.mxu0 0
        %1956 = vmatprep.subr.bf16.mxu0 0
        %1957 = vmatpush1.bf16.xpose.msra.mxu0 0
        %1958 = vmatprep.subr.bf16.mxu0 0
        %1959 = vmatpush1.bf16.xpose.msra.mxu0 0
        %1960 = vmatprep.subr.bf16.mxu0 0
        %1961 = vmatpush1.bf16.xpose.msra.mxu0 0
        %1962 = vmatprep.subr.bf16.mxu0 0
        %1963 = vmatpush1.bf16.xpose.msra.mxu0 0
        %1964 = vmatprep.subr.bf16.mxu0 0
        %1965 = vmatpush1.bf16.xpose.msra.mxu0 0
        %1966 = vmatprep.subr.bf16.mxu0 0
        %1967 = vmatpush1.bf16.xpose.msra.mxu0 0
        %1968 = vmatprep.mubr.bf16.mxu0 0
        %1969 = vmatmul.mubr.bf16.gmra.mrb[0].mxu0 %v1931
        %v1970 = vpop.f32.mrb[0].mxu0
        %v1971 = vadd.f32 %v637, %v1970
        %v1972 = vpop.f32.mrb[0].mxu0
        %v1973 = vpop.f32.mrb[0].mxu0
        %v1974 = vadd.f32 %v638, %v1973
        %v1975 = vpop.f32.mrb[0].mxu0
        %1976 = vdwg.mxu0
        %v1977 = vsel %vm691, %v1971, -inf
        %1978 = vmax.xlane.f32.xlu0 %v1977
        %v1979 = vpop.xlane.xlu0 %1978
        %v1980 = vsel %vm691, %v1974, -inf
        %1981 = vmax.xlane.f32.xlu0 %v1980
        %v1982 = vpop.xlane.xlu0 %1981
        %v1983 = vsub.f32 %v1971, %v1979
        %v1984 = vsub.f32 %v1974, %v1982
        %v1985 = vmul.f32 %v1983, 1.442695
        %v1986 = vpow.pop %v1985
        %v1987 = vmul.f32 %v1984, 1.442695
        %v1988 = vpow.pop %v1987
        %v1989 = vsel %vm691, %v1986, 0.0
        %1990 = vadd.xlane.f32.xlu0 %v1989
        %v1991 = vpop.xlane.xlu0 %1990
        %v1992 = vsel %vm691, %v1988, 0.0
        %1993 = vadd.xlane.f32.xlu0 %v1992
        %v1994 = vpop.xlane.xlu0 %1993
        %v1995 = vrcp.pop %v1991
        %v1996 = vrcp.pop %v1994
        %v1997 = vmul.f32 %v1986, %v1995
        %v1998 = vmul.f32 %v1988, %v1996
        %v1999 = vpack.c.bf16 %v1998, %v1997
        %2000 = vrot.lane.b32.xlu0 %v1684, 56
        %v2001 = vpop.permute.xlu0 %2000
        %v2004 = vsel %vm691, %v1999, 0
        %2006 = vmatprep.subr.bf16.mxu0 0
        %2007 = vmatpush1.bf16.msra.mxu0 %v2001
        %2008 = vmatprep.subr.bf16.mxu0 0
        %2009 = vmatpush1.bf16.msra.mxu0 0
        %2010 = vmatprep.subr.bf16.mxu0 0
        %2011 = vmatpush1.bf16.msra.mxu0 0
        %2012 = vmatprep.subr.bf16.mxu0 0
        %2013 = vmatpush1.bf16.msra.mxu0 0
        %2014 = vmatprep.subr.bf16.mxu0 0
        %2015 = vmatpush1.bf16.msra.mxu0 0
        %2016 = vmatprep.subr.bf16.mxu0 0
        %2017 = vmatpush1.bf16.msra.mxu0 0
        %2018 = vmatprep.subr.bf16.mxu0 0
        %2019 = vmatpush1.bf16.msra.mxu0 0
        %2020 = vmatprep.subr.bf16.mxu0 0
        %2021 = vmatpush1.bf16.msra.mxu0 0
        %2022 = vmatprep.subr.bf16.mxu0 0
        %2023 = vmatpush1.bf16.msra.mxu0 0
        %2024 = vmatprep.subr.bf16.mxu0 0
        %2025 = vmatpush1.bf16.msra.mxu0 0
        %2026 = vmatprep.subr.bf16.mxu0 0
        %2027 = vmatpush1.bf16.msra.mxu0 0
        %2028 = vmatprep.subr.bf16.mxu0 0
        %2029 = vmatpush1.bf16.msra.mxu0 0
        %2030 = vmatprep.subr.bf16.mxu0 0
        %2031 = vmatpush1.bf16.msra.mxu0 0
        %2032 = vmatprep.subr.bf16.mxu0 0
        %2033 = vmatpush1.bf16.msra.mxu0 0
        %2034 = vmatprep.subr.bf16.mxu0 0
        %2035 = vmatpush1.bf16.msra.mxu0 0
        %2036 = vmatprep.subr.bf16.mxu0 0
        %2037 = vmatpush1.bf16.msra.mxu0 0
        %2038 = vmatprep.mubr.bf16.mxu0 0
        %2039 = vmatmul.mubr.bf16.gmra.mrb[0].mxu0 %v2004
        %v2040 = vpop.f32.mrb[0].mxu0
        %v2041 = vadd.f32 0.0, %v2040
        %v2042 = vpop.f32.mrb[0].mxu0
        %v2043 = vpop.f32.mrb[0].mxu0
        %v2044 = vadd.f32 0.0, %v2043
        %v2045 = vpop.f32.mrb[0].mxu0
        %2046 = vdwg.mxu0
        %2047 = vrot.lane.b32.xlu0 %v1684, 116
        %v2048 = vpop.permute.xlu0 %2047
        %2049 = vrot.lane.b32.xlu0 %v1684, 84
        %v2050 = vpop.permute.xlu0 %2049
        %v2052 = vsel %vm643, %v2048, 0
        %v2055 = vsel %vm643, %v2050, 0
        %2057 = vmatprep.subr.bf16.mxu0 0
        %2058 = vmatpush1.bf16.xpose.msra.mxu0 %v2055
        %2059 = vmatprep.subr.bf16.mxu0 0
        %2060 = vmatpush1.bf16.xpose.msra.mxu0 0
        %2061 = vmatprep.subr.bf16.mxu0 0
        %2062 = vmatpush1.bf16.xpose.msra.mxu0 0
        %2063 = vmatprep.subr.bf16.mxu0 0
        %2064 = vmatpush1.bf16.xpose.msra.mxu0 0
        %2065 = vmatprep.subr.bf16.mxu0 0
        %2066 = vmatpush1.bf16.xpose.msra.mxu0 0
        %2067 = vmatprep.subr.bf16.mxu0 0
        %2068 = vmatpush1.bf16.xpose.msra.mxu0 0
        %2069 = vmatprep.subr.bf16.mxu0 0
        %2070 = vmatpush1.bf16.xpose.msra.mxu0 0
        %2071 = vmatprep.subr.bf16.mxu0 0
        %2072 = vmatpush1.bf16.xpose.msra.mxu0 0
        %2073 = vmatprep.subr.bf16.mxu0 0
        %2074 = vmatpush1.bf16.xpose.msra.mxu0 0
        %2075 = vmatprep.subr.bf16.mxu0 0
        %2076 = vmatpush1.bf16.xpose.msra.mxu0 0
        %2077 = vmatprep.subr.bf16.mxu0 0
        %2078 = vmatpush1.bf16.xpose.msra.mxu0 0
        %2079 = vmatprep.subr.bf16.mxu0 0
        %2080 = vmatpush1.bf16.xpose.msra.mxu0 0
        %2081 = vmatprep.subr.bf16.mxu0 0
        %2082 = vmatpush1.bf16.xpose.msra.mxu0 0
        %2083 = vmatprep.subr.bf16.mxu0 0
        %2084 = vmatpush1.bf16.xpose.msra.mxu0 0
        %2085 = vmatprep.subr.bf16.mxu0 0
        %2086 = vmatpush1.bf16.xpose.msra.mxu0 0
        %2087 = vmatprep.subr.bf16.mxu0 0
        %2088 = vmatpush1.bf16.xpose.msra.mxu0 0
        %2089 = vmatprep.mubr.bf16.mxu0 0
        %2090 = vmatmul.mubr.bf16.gmra.mrb[0].mxu0 %v2052
        %v2091 = vpop.f32.mrb[0].mxu0
        %v2092 = vadd.f32 %v637, %v2091
        %v2093 = vpop.f32.mrb[0].mxu0
        %v2094 = vpop.f32.mrb[0].mxu0
        %v2095 = vadd.f32 %v638, %v2094
        %v2096 = vpop.f32.mrb[0].mxu0
        %2097 = vdwg.mxu0
        %v2098 = vsel %vm691, %v2092, -inf
        %2099 = vmax.xlane.f32.xlu0 %v2098
        %v2100 = vpop.xlane.xlu0 %2099
        %v2101 = vsel %vm691, %v2095, -inf
        %2102 = vmax.xlane.f32.xlu0 %v2101
        %v2103 = vpop.xlane.xlu0 %2102
        %v2104 = vsub.f32 %v2092, %v2100
        %v2105 = vsub.f32 %v2095, %v2103
        %v2106 = vmul.f32 %v2104, 1.442695
        %v2107 = vpow.pop %v2106
        %v2108 = vmul.f32 %v2105, 1.442695
        %v2109 = vpow.pop %v2108
        %v2110 = vsel %vm691, %v2107, 0.0
        %2111 = vadd.xlane.f32.xlu0 %v2110
        %v2112 = vpop.xlane.xlu0 %2111
        %v2113 = vsel %vm691, %v2109, 0.0
        %2114 = vadd.xlane.f32.xlu0 %v2113
        %v2115 = vpop.xlane.xlu0 %2114
        %v2116 = vrcp.pop %v2112
        %v2117 = vrcp.pop %v2115
        %v2118 = vmul.f32 %v2107, %v2116
        %v2119 = vmul.f32 %v2109, %v2117
        %v2120 = vpack.c.bf16 %v2119, %v2118
        %2121 = vrot.lane.b32.xlu0 %v1684, 52
        %v2122 = vpop.permute.xlu0 %2121
        %v2125 = vsel %vm691, %v2120, 0
        %2127 = vmatprep.subr.bf16.mxu0 0
        %2128 = vmatpush1.bf16.msra.mxu0 %v2122
        %2129 = vmatprep.subr.bf16.mxu0 0
        %2130 = vmatpush1.bf16.msra.mxu0 0
        %2131 = vmatprep.subr.bf16.mxu0 0
        %2132 = vmatpush1.bf16.msra.mxu0 0
        %2133 = vmatprep.subr.bf16.mxu0 0
        %2134 = vmatpush1.bf16.msra.mxu0 0
        %2135 = vmatprep.subr.bf16.mxu0 0
        %2136 = vmatpush1.bf16.msra.mxu0 0
        %2137 = vmatprep.subr.bf16.mxu0 0
        %2138 = vmatpush1.bf16.msra.mxu0 0
        %2139 = vmatprep.subr.bf16.mxu0 0
        %2140 = vmatpush1.bf16.msra.mxu0 0
        %2141 = vmatprep.subr.bf16.mxu0 0
        %2142 = vmatpush1.bf16.msra.mxu0 0
        %2143 = vmatprep.subr.bf16.mxu0 0
        %2144 = vmatpush1.bf16.msra.mxu0 0
        %2145 = vmatprep.subr.bf16.mxu0 0
        %2146 = vmatpush1.bf16.msra.mxu0 0
        %2147 = vmatprep.subr.bf16.mxu0 0
        %2148 = vmatpush1.bf16.msra.mxu0 0
        %2149 = vmatprep.subr.bf16.mxu0 0
        %2150 = vmatpush1.bf16.msra.mxu0 0
        %2151 = vmatprep.subr.bf16.mxu0 0
        %2152 = vmatpush1.bf16.msra.mxu0 0
        %2153 = vmatprep.subr.bf16.mxu0 0
        %2154 = vmatpush1.bf16.msra.mxu0 0
        %2155 = vmatprep.subr.bf16.mxu0 0
        %2156 = vmatpush1.bf16.msra.mxu0 0
        %2157 = vmatprep.subr.bf16.mxu0 0
        %2158 = vmatpush1.bf16.msra.mxu0 0
        %2159 = vmatprep.mubr.bf16.mxu0 0
        %2160 = vmatmul.mubr.bf16.gmra.mrb[0].mxu0 %v2125
        %v2161 = vpop.f32.mrb[0].mxu0
        %v2162 = vadd.f32 0.0, %v2161
        %v2163 = vpop.f32.mrb[0].mxu0
        %v2164 = vpop.f32.mrb[0].mxu0
        %v2165 = vadd.f32 0.0, %v2164
        %v2166 = vpop.f32.mrb[0].mxu0
        %2167 = vdwg.mxu0
        %2168 = vrot.lane.b32.xlu0 %v1684, 112
        %v2169 = vpop.permute.xlu0 %2168
        %2170 = vrot.lane.b32.xlu0 %v1684, 80
        %v2171 = vpop.permute.xlu0 %2170
        %v2173 = vsel %vm643, %v2169, 0
        %v2176 = vsel %vm643, %v2171, 0
        %2178 = vmatprep.subr.bf16.mxu0 0
        %2179 = vmatpush1.bf16.xpose.msra.mxu0 %v2176
        %2180 = vmatprep.subr.bf16.mxu0 0
        %2181 = vmatpush1.bf16.xpose.msra.mxu0 0
        %2182 = vmatprep.subr.bf16.mxu0 0
        %2183 = vmatpush1.bf16.xpose.msra.mxu0 0
        %2184 = vmatprep.subr.bf16.mxu0 0
        %2185 = vmatpush1.bf16.xpose.msra.mxu0 0
        %2186 = vmatprep.subr.bf16.mxu0 0
        %2187 = vmatpush1.bf16.xpose.msra.mxu0 0
        %2188 = vmatprep.subr.bf16.mxu0 0
        %2189 = vmatpush1.bf16.xpose.msra.mxu0 0
        %2190 = vmatprep.subr.bf16.mxu0 0
        %2191 = vmatpush1.bf16.xpose.msra.mxu0 0
        %2192 = vmatprep.subr.bf16.mxu0 0
        %2193 = vmatpush1.bf16.xpose.msra.mxu0 0
        %2194 = vmatprep.subr.bf16.mxu0 0
        %2195 = vmatpush1.bf16.xpose.msra.mxu0 0
        %2196 = vmatprep.subr.bf16.mxu0 0
        %2197 = vmatpush1.bf16.xpose.msra.mxu0 0
        %2198 = vmatprep.subr.bf16.mxu0 0
        %2199 = vmatpush1.bf16.xpose.msra.mxu0 0
        %2200 = vmatprep.subr.bf16.mxu0 0
        %2201 = vmatpush1.bf16.xpose.msra.mxu0 0
        %2202 = vmatprep.subr.bf16.mxu0 0
        %2203 = vmatpush1.bf16.xpose.msra.mxu0 0
        %2204 = vmatprep.subr.bf16.mxu0 0
        %2205 = vmatpush1.bf16.xpose.msra.mxu0 0
        %2206 = vmatprep.subr.bf16.mxu0 0
        %2207 = vmatpush1.bf16.xpose.msra.mxu0 0
        %2208 = vmatprep.subr.bf16.mxu0 0
        %2209 = vmatpush1.bf16.xpose.msra.mxu0 0
        %2210 = vmatprep.mubr.bf16.mxu0 0
        %2211 = vmatmul.mubr.bf16.gmra.mrb[0].mxu0 %v2173
        %v2212 = vpop.f32.mrb[0].mxu0
        %v2213 = vadd.f32 %v637, %v2212
        %v2214 = vpop.f32.mrb[0].mxu0
        %v2215 = vpop.f32.mrb[0].mxu0
        %v2216 = vadd.f32 %v638, %v2215
        %v2217 = vpop.f32.mrb[0].mxu0
        %2218 = vdwg.mxu0
        %v2219 = vsel %vm691, %v2213, -inf
        %2220 = vmax.xlane.f32.xlu0 %v2219
        %v2221 = vpop.xlane.xlu0 %2220
        %v2222 = vsel %vm691, %v2216, -inf
        %2223 = vmax.xlane.f32.xlu0 %v2222
        %v2224 = vpop.xlane.xlu0 %2223
        %v2225 = vsub.f32 %v2213, %v2221
        %v2226 = vsub.f32 %v2216, %v2224
        %v2227 = vmul.f32 %v2225, 1.442695
        %v2228 = vpow.pop %v2227
        %v2229 = vmul.f32 %v2226, 1.442695
        %v2230 = vpow.pop %v2229
        %v2231 = vsel %vm691, %v2228, 0.0
        %2232 = vadd.xlane.f32.xlu0 %v2231
        %v2233 = vpop.xlane.xlu0 %2232
        %v2234 = vsel %vm691, %v2230, 0.0
        %2235 = vadd.xlane.f32.xlu0 %v2234
        %v2236 = vpop.xlane.xlu0 %2235
        %v2237 = vrcp.pop %v2233
        %v2238 = vrcp.pop %v2236
        %v2239 = vmul.f32 %v2228, %v2237
        %v2240 = vmul.f32 %v2230, %v2238
        %v2241 = vpack.c.bf16 %v2240, %v2239
        %2242 = vrot.lane.b32.xlu0 %v1684, 48
        %v2243 = vpop.permute.xlu0 %2242
        %v2246 = vsel %vm691, %v2241, 0
        %2248 = vmatprep.subr.bf16.mxu0 0
        %2249 = vmatpush1.bf16.msra.mxu0 %v2243
        %2250 = vmatprep.subr.bf16.mxu0 0
        %2251 = vmatpush1.bf16.msra.mxu0 0
        %2252 = vmatprep.subr.bf16.mxu0 0
        %2253 = vmatpush1.bf16.msra.mxu0 0
        %2254 = vmatprep.subr.bf16.mxu0 0
        %2255 = vmatpush1.bf16.msra.mxu0 0
        %2256 = vmatprep.subr.bf16.mxu0 0
        %2257 = vmatpush1.bf16.msra.mxu0 0
        %2258 = vmatprep.subr.bf16.mxu0 0
        %2259 = vmatpush1.bf16.msra.mxu0 0
        %2260 = vmatprep.subr.bf16.mxu0 0
        %2261 = vmatpush1.bf16.msra.mxu0 0
        %2262 = vmatprep.subr.bf16.mxu0 0
        %2263 = vmatpush1.bf16.msra.mxu0 0
        %2264 = vmatprep.subr.bf16.mxu0 0
        %2265 = vmatpush1.bf16.msra.mxu0 0
        %2266 = vmatprep.subr.bf16.mxu0 0
        %2267 = vmatpush1.bf16.msra.mxu0 0
        %2268 = vmatprep.subr.bf16.mxu0 0
        %2269 = vmatpush1.bf16.msra.mxu0 0
        %2270 = vmatprep.subr.bf16.mxu0 0
        %2271 = vmatpush1.bf16.msra.mxu0 0
        %2272 = vmatprep.subr.bf16.mxu0 0
        %2273 = vmatpush1.bf16.msra.mxu0 0
        %2274 = vmatprep.subr.bf16.mxu0 0
        %2275 = vmatpush1.bf16.msra.mxu0 0
        %2276 = vmatprep.subr.bf16.mxu0 0
        %2277 = vmatpush1.bf16.msra.mxu0 0
        %2278 = vmatprep.subr.bf16.mxu0 0
        %2279 = vmatpush1.bf16.msra.mxu0 0
        %2280 = vmatprep.mubr.bf16.mxu0 0
        %2281 = vmatmul.mubr.bf16.gmra.mrb[0].mxu0 %v2246
        %v2282 = vpop.f32.mrb[0].mxu0
        %v2283 = vadd.f32 0.0, %v2282
        %v2284 = vpop.f32.mrb[0].mxu0
        %v2285 = vpop.f32.mrb[0].mxu0
        %v2286 = vadd.f32 0.0, %v2285
        %v2287 = vpop.f32.mrb[0].mxu0
        %2288 = vdwg.mxu0
        %2289 = vrot.lane.b32.xlu0 %v1684, 108
        %v2290 = vpop.permute.xlu0 %2289
        %2291 = vrot.lane.b32.xlu0 %v1684, 76
        %v2292 = vpop.permute.xlu0 %2291
        %v2294 = vsel %vm643, %v2290, 0
        %v2297 = vsel %vm643, %v2292, 0
        %2299 = vmatprep.subr.bf16.mxu0 0
        %2300 = vmatpush1.bf16.xpose.msra.mxu0 %v2297
        %2301 = vmatprep.subr.bf16.mxu0 0
        %2302 = vmatpush1.bf16.xpose.msra.mxu0 0
        %2303 = vmatprep.subr.bf16.mxu0 0
        %2304 = vmatpush1.bf16.xpose.msra.mxu0 0
        %2305 = vmatprep.subr.bf16.mxu0 0
        %2306 = vmatpush1.bf16.xpose.msra.mxu0 0
        %2307 = vmatprep.subr.bf16.mxu0 0
        %2308 = vmatpush1.bf16.xpose.msra.mxu0 0
        %2309 = vmatprep.subr.bf16.mxu0 0
        %2310 = vmatpush1.bf16.xpose.msra.mxu0 0
        %2311 = vmatprep.subr.bf16.mxu0 0
        %2312 = vmatpush1.bf16.xpose.msra.mxu0 0
        %2313 = vmatprep.subr.bf16.mxu0 0
        %2314 = vmatpush1.bf16.xpose.msra.mxu0 0
        %2315 = vmatprep.subr.bf16.mxu0 0
        %2316 = vmatpush1.bf16.xpose.msra.mxu0 0
        %2317 = vmatprep.subr.bf16.mxu0 0
        %2318 = vmatpush1.bf16.xpose.msra.mxu0 0
        %2319 = vmatprep.subr.bf16.mxu0 0
        %2320 = vmatpush1.bf16.xpose.msra.mxu0 0
        %2321 = vmatprep.subr.bf16.mxu0 0
        %2322 = vmatpush1.bf16.xpose.msra.mxu0 0
        %2323 = vmatprep.subr.bf16.mxu0 0
        %2324 = vmatpush1.bf16.xpose.msra.mxu0 0
        %2325 = vmatprep.subr.bf16.mxu0 0
        %2326 = vmatpush1.bf16.xpose.msra.mxu0 0
        %2327 = vmatprep.subr.bf16.mxu0 0
        %2328 = vmatpush1.bf16.xpose.msra.mxu0 0
        %2329 = vmatprep.subr.bf16.mxu0 0
        %2330 = vmatpush1.bf16.xpose.msra.mxu0 0
        %2331 = vmatprep.mubr.bf16.mxu0 0
        %2332 = vmatmul.mubr.bf16.gmra.mrb[0].mxu0 %v2294
        %v2333 = vpop.f32.mrb[0].mxu0
        %v2334 = vadd.f32 %v637, %v2333
        %v2335 = vpop.f32.mrb[0].mxu0
        %v2336 = vpop.f32.mrb[0].mxu0
        %v2337 = vadd.f32 %v638, %v2336
        %v2338 = vpop.f32.mrb[0].mxu0
        %2339 = vdwg.mxu0
        %v2340 = vsel %vm691, %v2334, -inf
        %2341 = vmax.xlane.f32.xlu0 %v2340
        %v2342 = vpop.xlane.xlu0 %2341
        %v2343 = vsel %vm691, %v2337, -inf
        %2344 = vmax.xlane.f32.xlu0 %v2343
        %v2345 = vpop.xlane.xlu0 %2344
        %v2346 = vsub.f32 %v2334, %v2342
        %v2347 = vsub.f32 %v2337, %v2345
        %v2348 = vmul.f32 %v2346, 1.442695
        %v2349 = vpow.pop %v2348
        %v2350 = vmul.f32 %v2347, 1.442695
        %v2351 = vpow.pop %v2350
        %v2352 = vsel %vm691, %v2349, 0.0
        %2353 = vadd.xlane.f32.xlu0 %v2352
        %v2354 = vpop.xlane.xlu0 %2353
        %v2355 = vsel %vm691, %v2351, 0.0
        %2356 = vadd.xlane.f32.xlu0 %v2355
        %v2357 = vpop.xlane.xlu0 %2356
        %v2358 = vrcp.pop %v2354
        %v2359 = vrcp.pop %v2357
        %v2360 = vmul.f32 %v2349, %v2358
        %v2361 = vmul.f32 %v2351, %v2359
        %v2362 = vpack.c.bf16 %v2361, %v2360
        %2363 = vrot.lane.b32.xlu0 %v1684, 44
        %v2364 = vpop.permute.xlu0 %2363
        %v2367 = vsel %vm691, %v2362, 0
        %2369 = vmatprep.subr.bf16.mxu0 0
        %2370 = vmatpush1.bf16.msra.mxu0 %v2364
        %2371 = vmatprep.subr.bf16.mxu0 0
        %2372 = vmatpush1.bf16.msra.mxu0 0
        %2373 = vmatprep.subr.bf16.mxu0 0
        %2374 = vmatpush1.bf16.msra.mxu0 0
        %2375 = vmatprep.subr.bf16.mxu0 0
        %2376 = vmatpush1.bf16.msra.mxu0 0
        %2377 = vmatprep.subr.bf16.mxu0 0
        %2378 = vmatpush1.bf16.msra.mxu0 0
        %2379 = vmatprep.subr.bf16.mxu0 0
        %2380 = vmatpush1.bf16.msra.mxu0 0
        %2381 = vmatprep.subr.bf16.mxu0 0
        %2382 = vmatpush1.bf16.msra.mxu0 0
        %2383 = vmatprep.subr.bf16.mxu0 0
        %2384 = vmatpush1.bf16.msra.mxu0 0
        %2385 = vmatprep.subr.bf16.mxu0 0
        %2386 = vmatpush1.bf16.msra.mxu0 0
        %2387 = vmatprep.subr.bf16.mxu0 0
        %2388 = vmatpush1.bf16.msra.mxu0 0
        %2389 = vmatprep.subr.bf16.mxu0 0
        %2390 = vmatpush1.bf16.msra.mxu0 0
        %2391 = vmatprep.subr.bf16.mxu0 0
        %2392 = vmatpush1.bf16.msra.mxu0 0
        %2393 = vmatprep.subr.bf16.mxu0 0
        %2394 = vmatpush1.bf16.msra.mxu0 0
        %2395 = vmatprep.subr.bf16.mxu0 0
        %2396 = vmatpush1.bf16.msra.mxu0 0
        %2397 = vmatprep.subr.bf16.mxu0 0
        %2398 = vmatpush1.bf16.msra.mxu0 0
        %2399 = vmatprep.subr.bf16.mxu0 0
        %2400 = vmatpush1.bf16.msra.mxu0 0
        %2401 = vmatprep.mubr.bf16.mxu0 0
        %2402 = vmatmul.mubr.bf16.gmra.mrb[0].mxu0 %v2367
        %v2403 = vpop.f32.mrb[0].mxu0
        %v2404 = vadd.f32 0.0, %v2403
        %v2405 = vpop.f32.mrb[0].mxu0
        %v2406 = vpop.f32.mrb[0].mxu0
        %v2407 = vadd.f32 0.0, %v2406
        %v2408 = vpop.f32.mrb[0].mxu0
        %2409 = vdwg.mxu0
        %2410 = vrot.lane.b32.xlu0 %v1684, 104
        %v2411 = vpop.permute.xlu0 %2410
        %2412 = vrot.lane.b32.xlu0 %v1684, 72
        %v2413 = vpop.permute.xlu0 %2412
        %v2415 = vsel %vm643, %v2411, 0
        %v2418 = vsel %vm643, %v2413, 0
        %2420 = vmatprep.subr.bf16.mxu0 0
        %2421 = vmatpush1.bf16.xpose.msra.mxu0 %v2418
        %2422 = vmatprep.subr.bf16.mxu0 0
        %2423 = vmatpush1.bf16.xpose.msra.mxu0 0
        %2424 = vmatprep.subr.bf16.mxu0 0
        %2425 = vmatpush1.bf16.xpose.msra.mxu0 0
        %2426 = vmatprep.subr.bf16.mxu0 0
        %2427 = vmatpush1.bf16.xpose.msra.mxu0 0
        %2428 = vmatprep.subr.bf16.mxu0 0
        %2429 = vmatpush1.bf16.xpose.msra.mxu0 0
        %2430 = vmatprep.subr.bf16.mxu0 0
        %2431 = vmatpush1.bf16.xpose.msra.mxu0 0
        %2432 = vmatprep.subr.bf16.mxu0 0
        %2433 = vmatpush1.bf16.xpose.msra.mxu0 0
        %2434 = vmatprep.subr.bf16.mxu0 0
        %2435 = vmatpush1.bf16.xpose.msra.mxu0 0
        %2436 = vmatprep.subr.bf16.mxu0 0
        %2437 = vmatpush1.bf16.xpose.msra.mxu0 0
        %2438 = vmatprep.subr.bf16.mxu0 0
        %2439 = vmatpush1.bf16.xpose.msra.mxu0 0
        %2440 = vmatprep.subr.bf16.mxu0 0
        %2441 = vmatpush1.bf16.xpose.msra.mxu0 0
        %2442 = vmatprep.subr.bf16.mxu0 0
        %2443 = vmatpush1.bf16.xpose.msra.mxu0 0
        %2444 = vmatprep.subr.bf16.mxu0 0
        %2445 = vmatpush1.bf16.xpose.msra.mxu0 0
        %2446 = vmatprep.subr.bf16.mxu0 0
        %2447 = vmatpush1.bf16.xpose.msra.mxu0 0
        %2448 = vmatprep.subr.bf16.mxu0 0
        %2449 = vmatpush1.bf16.xpose.msra.mxu0 0
        %2450 = vmatprep.subr.bf16.mxu0 0
        %2451 = vmatpush1.bf16.xpose.msra.mxu0 0
        %2452 = vmatprep.mubr.bf16.mxu0 0
        %2453 = vmatmul.mubr.bf16.gmra.mrb[0].mxu0 %v2415
        %v2454 = vpop.f32.mrb[0].mxu0
        %v2455 = vadd.f32 %v637, %v2454
        %v2456 = vpop.f32.mrb[0].mxu0
        %v2457 = vpop.f32.mrb[0].mxu0
        %v2458 = vadd.f32 %v638, %v2457
        %v2459 = vpop.f32.mrb[0].mxu0
        %2460 = vdwg.mxu0
        %v2461 = vsel %vm691, %v2455, -inf
        %2462 = vmax.xlane.f32.xlu0 %v2461
        %v2463 = vpop.xlane.xlu0 %2462
        %v2464 = vsel %vm691, %v2458, -inf
        %2465 = vmax.xlane.f32.xlu0 %v2464
        %v2466 = vpop.xlane.xlu0 %2465
        %v2467 = vsub.f32 %v2455, %v2463
        %v2468 = vsub.f32 %v2458, %v2466
        %v2469 = vmul.f32 %v2467, 1.442695
        %v2470 = vpow.pop %v2469
        %v2471 = vmul.f32 %v2468, 1.442695
        %v2472 = vpow.pop %v2471
        %v2473 = vsel %vm691, %v2470, 0.0
        %2474 = vadd.xlane.f32.xlu0 %v2473
        %v2475 = vpop.xlane.xlu0 %2474
        %v2476 = vsel %vm691, %v2472, 0.0
        %2477 = vadd.xlane.f32.xlu0 %v2476
        %v2478 = vpop.xlane.xlu0 %2477
        %v2479 = vrcp.pop %v2475
        %v2480 = vrcp.pop %v2478
        %v2481 = vmul.f32 %v2470, %v2479
        %v2482 = vmul.f32 %v2472, %v2480
        %v2483 = vpack.c.bf16 %v2482, %v2481
        %2484 = vrot.lane.b32.xlu0 %v1684, 40
        %v2485 = vpop.permute.xlu0 %2484
        %v2488 = vsel %vm691, %v2483, 0
        %2490 = vmatprep.subr.bf16.mxu0 0
        %2491 = vmatpush1.bf16.msra.mxu0 %v2485
        %2492 = vmatprep.subr.bf16.mxu0 0
        %2493 = vmatpush1.bf16.msra.mxu0 0
        %2494 = vmatprep.subr.bf16.mxu0 0
        %2495 = vmatpush1.bf16.msra.mxu0 0
        %2496 = vmatprep.subr.bf16.mxu0 0
        %2497 = vmatpush1.bf16.msra.mxu0 0
        %2498 = vmatprep.subr.bf16.mxu0 0
        %2499 = vmatpush1.bf16.msra.mxu0 0
        %2500 = vmatprep.subr.bf16.mxu0 0
        %2501 = vmatpush1.bf16.msra.mxu0 0
        %2502 = vmatprep.subr.bf16.mxu0 0
        %2503 = vmatpush1.bf16.msra.mxu0 0
        %2504 = vmatprep.subr.bf16.mxu0 0
        %2505 = vmatpush1.bf16.msra.mxu0 0
        %2506 = vmatprep.subr.bf16.mxu0 0
        %2507 = vmatpush1.bf16.msra.mxu0 0
        %2508 = vmatprep.subr.bf16.mxu0 0
        %2509 = vmatpush1.bf16.msra.mxu0 0
        %2510 = vmatprep.subr.bf16.mxu0 0
        %2511 = vmatpush1.bf16.msra.mxu0 0
        %2512 = vmatprep.subr.bf16.mxu0 0
        %2513 = vmatpush1.bf16.msra.mxu0 0
        %2514 = vmatprep.subr.bf16.mxu0 0
        %2515 = vmatpush1.bf16.msra.mxu0 0
        %2516 = vmatprep.subr.bf16.mxu0 0
        %2517 = vmatpush1.bf16.msra.mxu0 0
        %2518 = vmatprep.subr.bf16.mxu0 0
        %2519 = vmatpush1.bf16.msra.mxu0 0
        %2520 = vmatprep.subr.bf16.mxu0 0
        %2521 = vmatpush1.bf16.msra.mxu0 0
        %2522 = vmatprep.mubr.bf16.mxu0 0
        %2523 = vmatmul.mubr.bf16.gmra.mrb[0].mxu0 %v2488
        %v2524 = vpop.f32.mrb[0].mxu0
        %v2525 = vadd.f32 0.0, %v2524
        %v2526 = vpop.f32.mrb[0].mxu0
        %v2527 = vpop.f32.mrb[0].mxu0
        %v2528 = vadd.f32 0.0, %v2527
        %v2529 = vpop.f32.mrb[0].mxu0
        %2530 = vdwg.mxu0
        %2531 = vrot.lane.b32.xlu0 %v1684, 100
        %v2532 = vpop.permute.xlu0 %2531
        %2533 = vrot.lane.b32.xlu0 %v1684, 68
        %v2534 = vpop.permute.xlu0 %2533
        %v2536 = vsel %vm643, %v2532, 0
        %v2539 = vsel %vm643, %v2534, 0
        %2541 = vmatprep.subr.bf16.mxu0 0
        %2542 = vmatpush1.bf16.xpose.msra.mxu0 %v2539
        %2543 = vmatprep.subr.bf16.mxu0 0
        %2544 = vmatpush1.bf16.xpose.msra.mxu0 0
        %2545 = vmatprep.subr.bf16.mxu0 0
        %2546 = vmatpush1.bf16.xpose.msra.mxu0 0
        %2547 = vmatprep.subr.bf16.mxu0 0
        %2548 = vmatpush1.bf16.xpose.msra.mxu0 0
        %2549 = vmatprep.subr.bf16.mxu0 0
        %2550 = vmatpush1.bf16.xpose.msra.mxu0 0
        %2551 = vmatprep.subr.bf16.mxu0 0
        %2552 = vmatpush1.bf16.xpose.msra.mxu0 0
        %2553 = vmatprep.subr.bf16.mxu0 0
        %2554 = vmatpush1.bf16.xpose.msra.mxu0 0
        %2555 = vmatprep.subr.bf16.mxu0 0
        %2556 = vmatpush1.bf16.xpose.msra.mxu0 0
        %2557 = vmatprep.subr.bf16.mxu0 0
        %2558 = vmatpush1.bf16.xpose.msra.mxu0 0
        %2559 = vmatprep.subr.bf16.mxu0 0
        %2560 = vmatpush1.bf16.xpose.msra.mxu0 0
        %2561 = vmatprep.subr.bf16.mxu0 0
        %2562 = vmatpush1.bf16.xpose.msra.mxu0 0
        %2563 = vmatprep.subr.bf16.mxu0 0
        %2564 = vmatpush1.bf16.xpose.msra.mxu0 0
        %2565 = vmatprep.subr.bf16.mxu0 0
        %2566 = vmatpush1.bf16.xpose.msra.mxu0 0
        %2567 = vmatprep.subr.bf16.mxu0 0
        %2568 = vmatpush1.bf16.xpose.msra.mxu0 0
        %2569 = vmatprep.subr.bf16.mxu0 0
        %2570 = vmatpush1.bf16.xpose.msra.mxu0 0
        %2571 = vmatprep.subr.bf16.mxu0 0
        %2572 = vmatpush1.bf16.xpose.msra.mxu0 0
        %2573 = vmatprep.mubr.bf16.mxu0 0
        %2574 = vmatmul.mubr.bf16.gmra.mrb[0].mxu0 %v2536
        %v2575 = vpop.f32.mrb[0].mxu0
        %v2576 = vadd.f32 %v637, %v2575
        %v2577 = vpop.f32.mrb[0].mxu0
        %v2578 = vpop.f32.mrb[0].mxu0
        %v2579 = vadd.f32 %v638, %v2578
        %v2580 = vpop.f32.mrb[0].mxu0
        %2581 = vdwg.mxu0
        %v2582 = vsel %vm691, %v2576, -inf
        %2583 = vmax.xlane.f32.xlu0 %v2582
        %v2584 = vpop.xlane.xlu0 %2583
        %v2585 = vsel %vm691, %v2579, -inf
        %2586 = vmax.xlane.f32.xlu0 %v2585
        %v2587 = vpop.xlane.xlu0 %2586
        %v2588 = vsub.f32 %v2576, %v2584
        %v2589 = vsub.f32 %v2579, %v2587
        %v2590 = vmul.f32 %v2588, 1.442695
        %v2591 = vpow.pop %v2590
        %v2592 = vmul.f32 %v2589, 1.442695
        %v2593 = vpow.pop %v2592
        %v2594 = vsel %vm691, %v2591, 0.0
        %2595 = vadd.xlane.f32.xlu0 %v2594
        %v2596 = vpop.xlane.xlu0 %2595
        %v2597 = vsel %vm691, %v2593, 0.0
        %2598 = vadd.xlane.f32.xlu0 %v2597
        %v2599 = vpop.xlane.xlu0 %2598
        %v2600 = vrcp.pop %v2596
        %v2601 = vrcp.pop %v2599
        %v2602 = vmul.f32 %v2591, %v2600
        %v2603 = vmul.f32 %v2593, %v2601
        %v2604 = vpack.c.bf16 %v2603, %v2602
        %2605 = vrot.lane.b32.xlu0 %v1684, 36
        %v2606 = vpop.permute.xlu0 %2605
        %v2609 = vsel %vm691, %v2604, 0
        %2611 = vmatprep.subr.bf16.mxu0 0
        %2612 = vmatpush1.bf16.msra.mxu0 %v2606
        %2613 = vmatprep.subr.bf16.mxu0 0
        %2614 = vmatpush1.bf16.msra.mxu0 0
        %2615 = vmatprep.subr.bf16.mxu0 0
        %2616 = vmatpush1.bf16.msra.mxu0 0
        %2617 = vmatprep.subr.bf16.mxu0 0
        %2618 = vmatpush1.bf16.msra.mxu0 0
        %2619 = vmatprep.subr.bf16.mxu0 0
        %2620 = vmatpush1.bf16.msra.mxu0 0
        %2621 = vmatprep.subr.bf16.mxu0 0
        %2622 = vmatpush1.bf16.msra.mxu0 0
        %2623 = vmatprep.subr.bf16.mxu0 0
        %2624 = vmatpush1.bf16.msra.mxu0 0
        %2625 = vmatprep.subr.bf16.mxu0 0
        %2626 = vmatpush1.bf16.msra.mxu0 0
        %2627 = vmatprep.subr.bf16.mxu0 0
        %2628 = vmatpush1.bf16.msra.mxu0 0
        %2629 = vmatprep.subr.bf16.mxu0 0
        %2630 = vmatpush1.bf16.msra.mxu0 0
        %2631 = vmatprep.subr.bf16.mxu0 0
        %2632 = vmatpush1.bf16.msra.mxu0 0
        %2633 = vmatprep.subr.bf16.mxu0 0
        %2634 = vmatpush1.bf16.msra.mxu0 0
        %2635 = vmatprep.subr.bf16.mxu0 0
        %2636 = vmatpush1.bf16.msra.mxu0 0
        %2637 = vmatprep.subr.bf16.mxu0 0
        %2638 = vmatpush1.bf16.msra.mxu0 0
        %2639 = vmatprep.subr.bf16.mxu0 0
        %2640 = vmatpush1.bf16.msra.mxu0 0
        %2641 = vmatprep.subr.bf16.mxu0 0
        %2642 = vmatpush1.bf16.msra.mxu0 0
        %2643 = vmatprep.mubr.bf16.mxu0 0
        %2644 = vmatmul.mubr.bf16.gmra.mrb[0].mxu0 %v2609
        %v2645 = vpop.f32.mrb[0].mxu0
        %v2646 = vadd.f32 0.0, %v2645
        %v2647 = vpop.f32.mrb[0].mxu0
        %v2648 = vpop.f32.mrb[0].mxu0
        %v2649 = vadd.f32 0.0, %v2648
        %v2650 = vpop.f32.mrb[0].mxu0
        %2651 = vdwg.mxu0
        %2654 = vrot.lane.b32.xlu0 %v1920, 4
        %v2655 = vpop.permute.xlu0 %2654
        %2656 = vrot.lane.b32.xlu0 %v1923, 4
        %v2657 = vpop.permute.xlu0 %2656
        %2662 = vrot.lane.b32.xlu0 %v2041, 8
        %v2663 = vpop.permute.xlu0 %2662
        %2664 = vrot.lane.b32.xlu0 %v2044, 8
        %v2665 = vpop.permute.xlu0 %2664
        %2670 = vrot.lane.b32.xlu0 %v2162, 12
        %v2671 = vpop.permute.xlu0 %2670
        %2672 = vrot.lane.b32.xlu0 %v2165, 12
        %v2673 = vpop.permute.xlu0 %2672
        %2678 = vrot.lane.b32.xlu0 %v2283, 16
        %v2679 = vpop.permute.xlu0 %2678
        %2680 = vrot.lane.b32.xlu0 %v2286, 16
        %v2681 = vpop.permute.xlu0 %2680
        %2686 = vrot.lane.b32.xlu0 %v2404, 20
        %v2687 = vpop.permute.xlu0 %2686
        %2688 = vrot.lane.b32.xlu0 %v2407, 20
        %v2689 = vpop.permute.xlu0 %2688
        %2694 = vrot.lane.b32.xlu0 %v2525, 24
        %v2695 = vpop.permute.xlu0 %2694
        %2696 = vrot.lane.b32.xlu0 %v2528, 24
        %v2697 = vpop.permute.xlu0 %2696
        %2702 = vrot.lane.b32.xlu0 %v2646, 28
        %v2703 = vpop.permute.xlu0 %2702
        %2704 = vrot.lane.b32.xlu0 %v2649, 28
        %v2705 = vpop.permute.xlu0 %2704
        %v2708 = vsel %vm643, %v1799, %v2655
        %v2709 = vsel %vm643, %v1802, %v2657
        %v2710 = vsel %vm1667, %v2708, %v2663
        %v2711 = vsel %vm1667, %v2709, %v2665
        %v2712 = vsel %vm1670, %v2710, %v2671
        %v2713 = vsel %vm1670, %v2711, %v2673
        %v2714 = vsel %vm691, %v2712, %v2679
        %v2715 = vsel %vm691, %v2713, %v2681
        %v2716 = vsel %vm1675, %v2714, %v2687
        %v2717 = vsel %vm1675, %v2715, %v2689
        %v2718 = vsel %vm1678, %v2716, %v2695
        %v2719 = vsel %vm1678, %v2717, %v2697
        %v2720 = vsel %vm1681, %v2718, %v2703
        %v2721 = vsel %vm1681, %v2719, %v2705
        %v2722 = vpack.c.bf16 %v1683, %v1682
        %v2723 = vpack.c.bf16 %v2721, %v2720
        %v2724 = vld [vmem:[%s368] sm:$0xf]
        %v2725 = vld [vmem:[%s368 + $0x4] sm:$0xf]
        %v2726 = vld [vmem:[%s368 + $0x8] sm:$0xf]
        %v2727 = vld [vmem:[%s368 + $0xc] sm:$0xf]
        %v2732 = vunpack.c.l.b16 %v2724
        %v2733 = vunpack.c.l.b16 %v2725
        %v2734 = vunpack.c.l.b16 %v2726
        %v2735 = vunpack.c.l.b16 %v2727
        %v2736 = vpack.c.b16 %v2733, %v2732
        %v2737 = vpack.c.b16 %v2735, %v2734
        %v2741 = vsel %vm494, %v2722, 0
        %v2744 = vsel %vm494, %v2723, 0
        %2746 = vmatprep.subr.bf16.mxu0 0
        %2747 = vmatpush1.bf16.msra.mxu0 %v2736
        %2748 = vmatprep.subr.bf16.mxu0 0
        %2749 = vmatpush1.bf16.msra.mxu0 %v2737
        %2750 = vmatprep.subr.bf16.mxu0 0
        %2751 = vmatpush1.bf16.msra.mxu0 0
        %2752 = vmatprep.subr.bf16.mxu0 0
        %2753 = vmatpush1.bf16.msra.mxu0 0
        %2754 = vmatprep.subr.bf16.mxu0 0
        %2755 = vmatpush1.bf16.msra.mxu0 0
        %2756 = vmatprep.subr.bf16.mxu0 0
        %2757 = vmatpush1.bf16.msra.mxu0 0
        %2758 = vmatprep.subr.bf16.mxu0 0
        %2759 = vmatpush1.bf16.msra.mxu0 0
        %2760 = vmatprep.subr.bf16.mxu0 0
        %2761 = vmatpush1.bf16.msra.mxu0 0
        %2762 = vmatprep.subr.bf16.mxu0 0
        %2763 = vmatpush1.bf16.msra.mxu0 0
        %2764 = vmatprep.subr.bf16.mxu0 0
        %2765 = vmatpush1.bf16.msra.mxu0 0
        %2766 = vmatprep.subr.bf16.mxu0 0
        %2767 = vmatpush1.bf16.msra.mxu0 0
        %2768 = vmatprep.subr.bf16.mxu0 0
        %2769 = vmatpush1.bf16.msra.mxu0 0
        %2770 = vmatprep.subr.bf16.mxu0 0
        %2771 = vmatpush1.bf16.msra.mxu0 0
        %2772 = vmatprep.subr.bf16.mxu0 0
        %2773 = vmatpush1.bf16.msra.mxu0 0
        %2774 = vmatprep.subr.bf16.mxu0 0
        %2775 = vmatpush1.bf16.msra.mxu0 0
        %2776 = vmatprep.subr.bf16.mxu0 0
        %2777 = vmatpush1.bf16.msra.mxu0 0
        %2778 = vmatprep.mubr.bf16.mxu0 0
        %2779 = vmatmul.mubr.bf16.gmra.mrb[0].mxu0 %v2741
        %v2780 = vpop.f32.mrb[0].mxu0
        %v2781 = vadd.f32 0.0, %v2780
        %v2782 = vpop.f32.mrb[0].mxu0
        %v2783 = vpop.f32.mrb[0].mxu0
        %v2784 = vadd.f32 0.0, %v2783
        %v2785 = vpop.f32.mrb[0].mxu0
        %2786 = vmatprep.mubr.bf16.mxu0 0
        %2787 = vmatmul.mubr.bf16.gmra.mrb[0].mxu0 %v2744
        %v2788 = vpop.f32.mrb[0].mxu0
        %v2789 = vadd.f32 0.0, %v2788
        %v2790 = vpop.f32.mrb[0].mxu0
        %v2791 = vpop.f32.mrb[0].mxu0
        %v2792 = vadd.f32 0.0, %v2791
        %v2793 = vpop.f32.mrb[0].mxu0
        %2794 = vdwg.mxu0
        %v2795 = vadd.f32 %v483, %v2781
        %v2796 = vadd.f32 %v484, %v2784
        %v2797 = vadd.f32 %v485, %v2789
        %v2798 = vadd.f32 %v486, %v2792
        %v2799 = vlaneseq
        %v2800 = vshrl.u32 %v2799, 7
        %v2801 = vsub.s32 0, %v2800
        %v2802 = vrot.slane %v489, %v2801
        %v2803 = vadd.f32 %v2795, %v2802
        %v2804 = vadd.f32 %v2796, %v2802
        %v2805 = vadd.f32 %v2797, %v2802
        %v2806 = vadd.f32 %v2798, %v2802
        %v2807 = vsel %vm494, %v2803, 0.0
        %2808 = vadd.xlane.f32.xlu0 %v2807
        %v2809 = vpop.xlane.xlu0 %2808
        %v2810 = vsel %vm494, %v2804, 0.0
        %2811 = vadd.xlane.f32.xlu0 %v2810
        %v2812 = vpop.xlane.xlu0 %2811
        %v2813 = vsel %vm494, %v2805, 0.0
        %2814 = vadd.xlane.f32.xlu0 %v2813
        %v2815 = vpop.xlane.xlu0 %2814
        %v2816 = vsel %vm494, %v2806, 0.0
        %2817 = vadd.xlane.f32.xlu0 %v2816
        %v2818 = vpop.xlane.xlu0 %2817
        %v2819 = vmul.f32 %v2809, %v507
        %v2820 = vmul.f32 %v2812, %v507
        %v2821 = vmul.f32 %v2815, %v507
        %v2822 = vmul.f32 %v2818, %v507
        %v2823 = vsub.f32 %v2803, %v2819
        %v2824 = vsub.f32 %v2804, %v2820
        %v2825 = vsub.f32 %v2805, %v2821
        %v2826 = vsub.f32 %v2806, %v2822
        %v2827 = vmul.f32 %v2823, %v2823
        %v2828 = vmul.f32 %v2824, %v2824
        %v2829 = vmul.f32 %v2825, %v2825
        %v2830 = vmul.f32 %v2826, %v2826
        %v2831 = vsel %vm494, %v2827, 0.0
        %2832 = vadd.xlane.f32.xlu0 %v2831
        %v2833 = vpop.xlane.xlu0 %2832
        %v2834 = vsel %vm494, %v2828, 0.0
        %2835 = vadd.xlane.f32.xlu0 %v2834
        %v2836 = vpop.xlane.xlu0 %2835
        %v2837 = vsel %vm494, %v2829, 0.0
        %2838 = vadd.xlane.f32.xlu0 %v2837
        %v2839 = vpop.xlane.xlu0 %2838
        %v2840 = vsel %vm494, %v2830, 0.0
        %2841 = vadd.xlane.f32.xlu0 %v2840
        %v2842 = vpop.xlane.xlu0 %2841
        %v2843 = vmul.f32 %v2833, %v507
        %v2844 = vmul.f32 %v2836, %v507
        %v2845 = vmul.f32 %v2839, %v507
        %v2846 = vmul.f32 %v2842, %v507
        %v2847 = vadd.f32 %v2843, 1e-05
        %v2848 = vadd.f32 %v2844, 1e-05
        %v2849 = vadd.f32 %v2845, 1e-05
        %v2850 = vadd.f32 %v2846, 1e-05
        %v2851 = vrsqrt.pop %v2847
        %v2852 = vrsqrt.pop %v2848
        %v2853 = vrsqrt.pop %v2849
        %v2854 = vrsqrt.pop %v2850
        %v2855 = vmul.f32 %v2823, %v2851
        %v2856 = vmul.f32 %v2824, %v2852
        %v2857 = vmul.f32 %v2825, %v2853
        %v2858 = vmul.f32 %v2826, %v2854
        %v2859 = vlaneseq
        %v2860 = vshrl.u32 %v2859, 7
        %v2861 = vsub.s32 0, %v2860
        %v2862 = vrot.slane %v490, %v2861
        %v2863 = vmul.f32 %v2855, %v2862
        %v2864 = vmul.f32 %v2856, %v2862
        %v2865 = vmul.f32 %v2857, %v2862
        %v2866 = vmul.f32 %v2858, %v2862
        %v2867 = vlaneseq
        %v2868 = vshrl.u32 %v2867, 7
        %v2869 = vsub.s32 0, %v2868
        %v2870 = vrot.slane %v491, %v2869
        %v2871 = vadd.f32 %v2863, %v2870
        %v2872 = vadd.f32 %v2864, %v2870
        %v2873 = vadd.f32 %v2865, %v2870
        %v2874 = vadd.f32 %v2866, %v2870
        %v2875 = vpack.c.bf16 %v2872, %v2871
        %v2876 = vpack.c.bf16 %v2874, %v2873
        %v2877 = vld [vmem:[%s377] sm:$0xf]
        %v2878 = vld [vmem:[%s377 + $0x4] sm:$0xf]
        %v2879 = vld [vmem:[%s377 + $0x8] sm:$0xf]
        %v2880 = vld [vmem:[%s377 + $0xc] sm:$0xf]
        %v2881 = vlaneseq
        %v2882 = vshrl.u32 %v2881, 7
        %v2883 = vsub.s32 0, %v2882
        %v2884 = vrot.slane %v492, %v2883
        %v2889 = vunpack.c.l.b16 %v2877
        %v2890 = vunpack.c.l.b16 %v2878
        %v2891 = vunpack.c.l.b16 %v2879
        %v2892 = vunpack.c.l.b16 %v2880
        %v2893 = vpack.c.b16 %v2890, %v2889
        %v2894 = vpack.c.b16 %v2892, %v2891
        %v2898 = vsel %vm494, %v2875, 0
        %v2901 = vsel %vm494, %v2876, 0
        %2903 = vmatprep.subr.bf16.mxu0 0
        %2904 = vmatpush1.bf16.msra.mxu0 %v2893
        %2905 = vmatprep.subr.bf16.mxu0 0
        %2906 = vmatpush1.bf16.msra.mxu0 %v2894
        %2907 = vmatprep.subr.bf16.mxu0 0
        %2908 = vmatpush1.bf16.msra.mxu0 0
        %2909 = vmatprep.subr.bf16.mxu0 0
        %2910 = vmatpush1.bf16.msra.mxu0 0
        %2911 = vmatprep.subr.bf16.mxu0 0
        %2912 = vmatpush1.bf16.msra.mxu0 0
        %2913 = vmatprep.subr.bf16.mxu0 0
        %2914 = vmatpush1.bf16.msra.mxu0 0
        %2915 = vmatprep.subr.bf16.mxu0 0
        %2916 = vmatpush1.bf16.msra.mxu0 0
        %2917 = vmatprep.subr.bf16.mxu0 0
        %2918 = vmatpush1.bf16.msra.mxu0 0
        %2919 = vmatprep.subr.bf16.mxu0 0
        %2920 = vmatpush1.bf16.msra.mxu0 0
        %2921 = vmatprep.subr.bf16.mxu0 0
        %2922 = vmatpush1.bf16.msra.mxu0 0
        %2923 = vmatprep.subr.bf16.mxu0 0
        %2924 = vmatpush1.bf16.msra.mxu0 0
        %2925 = vmatprep.subr.bf16.mxu0 0
        %2926 = vmatpush1.bf16.msra.mxu0 0
        %2927 = vmatprep.subr.bf16.mxu0 0
        %2928 = vmatpush1.bf16.msra.mxu0 0
        %2929 = vmatprep.subr.bf16.mxu0 0
        %2930 = vmatpush1.bf16.msra.mxu0 0
        %2931 = vmatprep.subr.bf16.mxu0 0
        %2932 = vmatpush1.bf16.msra.mxu0 0
        %2933 = vmatprep.subr.bf16.mxu0 0
        %2934 = vmatpush1.bf16.msra.mxu0 0
        %2935 = vmatprep.mubr.bf16.mxu0 0
        %2936 = vmatmul.mubr.bf16.gmra.mrb[0].mxu0 %v2898
        %v2937 = vpop.f32.mrb[0].mxu0
        %v2938 = vadd.f32 %v2884, %v2937
        %v2939 = vpop.f32.mrb[0].mxu0
        %v2940 = vpop.f32.mrb[0].mxu0
        %v2941 = vadd.f32 %v2884, %v2940
        %v2942 = vpop.f32.mrb[0].mxu0
        %2943 = vmatprep.mubr.bf16.mxu0 0
        %2944 = vmatmul.mubr.bf16.gmra.mrb[0].mxu0 %v2901
        %v2945 = vpop.f32.mrb[0].mxu0
        %v2946 = vadd.f32 %v2884, %v2945
        %v2947 = vpop.f32.mrb[0].mxu0
        %v2948 = vpop.f32.mrb[0].mxu0
        %v2949 = vadd.f32 %v2884, %v2948
        %v2950 = vpop.f32.mrb[0].mxu0
        %2951 = vdwg.mxu0
        %v2952 = vmul.f32 %v2938, 0.5
        %v2953 = vmul.f32 %v2941, 0.5
        %v2954 = vmul.f32 %v2946, 0.5
        %v2955 = vmul.f32 %v2949, 0.5
        %v2956 = vmul.f32 %v2938, 0.044715
        %v2957 = vmul.f32 %v2941, 0.044715
        %v2958 = vmul.f32 %v2946, 0.044715
        %v2959 = vmul.f32 %v2949, 0.044715
        %v2960 = vmul.f32 %v2956, %v2938
        %v2961 = vmul.f32 %v2957, %v2941
        %v2962 = vmul.f32 %v2958, %v2946
        %v2963 = vmul.f32 %v2959, %v2949
        %v2964 = vmul.f32 %v2960, %v2938
        %v2965 = vmul.f32 %v2961, %v2941
        %v2966 = vmul.f32 %v2962, %v2946
        %v2967 = vmul.f32 %v2963, %v2949
        %v2968 = vadd.f32 %v2938, %v2964
        %v2969 = vadd.f32 %v2941, %v2965
        %v2970 = vadd.f32 %v2946, %v2966
        %v2971 = vadd.f32 %v2949, %v2967
        %v2972 = vmul.f32 %v2968, 0.7978846
        %v2973 = vmul.f32 %v2969, 0.7978846
        %v2974 = vmul.f32 %v2970, 0.7978846
        %v2975 = vmul.f32 %v2971, 0.7978846
        %v2976 = vtanh.pop %v2972
        %v2977 = vtanh.pop %v2973
        %v2978 = vtanh.pop %v2974
        %v2979 = vtanh.pop %v2975
        %v2980 = vadd.f32 %v2976, 1.0
        %v2981 = vadd.f32 %v2977, 1.0
        %v2982 = vadd.f32 %v2978, 1.0
        %v2983 = vadd.f32 %v2979, 1.0
        %v2984 = vmul.f32 %v2952, %v2980
        %v2985 = vmul.f32 %v2953, %v2981
        %v2986 = vmul.f32 %v2954, %v2982
        %v2987 = vmul.f32 %v2955, %v2983
        %v2988 = vpack.c.bf16 %v2985, %v2984
        %v2989 = vpack.c.bf16 %v2987, %v2986
        %v2990 = vld [vmem:[%s463] sm:$0xf]
        %v2991 = vld [vmem:[%s463 + $0x4] sm:$0xf]
        %v2992 = vld [vmem:[%s463 + $0x8] sm:$0xf]
        %v2993 = vld [vmem:[%s463 + $0xc] sm:$0xf]
        %v2994 = vld [vmem:[%s463 + $0x10] sm:$0xf]
        %v2995 = vld [vmem:[%s463 + $0x14] sm:$0xf]
        %v2996 = vld [vmem:[%s463 + $0x18] sm:$0xf]
        %v2997 = vld [vmem:[%s463 + $0x1c] sm:$0xf]
        %v3006 = vunpack.c.l.b16 %v2990
        %v3007 = vunpack.c.l.b16 %v2991
        %v3008 = vunpack.c.l.b16 %v2992
        %v3009 = vunpack.c.l.b16 %v2993
        %v3010 = vunpack.c.l.b16 %v2994
        %v3011 = vunpack.c.l.b16 %v2995
        %v3012 = vunpack.c.l.b16 %v2996
        %v3013 = vunpack.c.l.b16 %v2997
        %v3014 = vpack.c.b16 %v3007, %v3006
        %v3015 = vpack.c.b16 %v3009, %v3008
        %v3016 = vpack.c.b16 %v3011, %v3010
        %v3017 = vpack.c.b16 %v3013, %v3012
        %vm3022 = vcmask 523264
        %v3024 = vsel %vm3022, %v2988, 0
        %v3027 = vsel %vm3022, %v2989, 0
        %3029 = vmatprep.subr.bf16.mxu0 0
        %3030 = vmatpush1.bf16.msra.mxu0 %v3014
        %3031 = vmatprep.subr.bf16.mxu0 0
        %3032 = vmatpush1.bf16.msra.mxu0 %v3015
        %3033 = vmatprep.subr.bf16.mxu0 0
        %3034 = vmatpush1.bf16.msra.mxu0 %v3016
        %3035 = vmatprep.subr.bf16.mxu0 0
        %3036 = vmatpush1.bf16.msra.mxu0 %v3017
        %3037 = vmatprep.subr.bf16.mxu0 0
        %3038 = vmatpush1.bf16.msra.mxu0 0
        %3039 = vmatprep.subr.bf16.mxu0 0
        %3040 = vmatpush1.bf16.msra.mxu0 0
        %3041 = vmatprep.subr.bf16.mxu0 0
        %3042 = vmatpush1.bf16.msra.mxu0 0
        %3043 = vmatprep.subr.bf16.mxu0 0
        %3044 = vmatpush1.bf16.msra.mxu0 0
        %3045 = vmatprep.subr.bf16.mxu0 0
        %3046 = vmatpush1.bf16.msra.mxu0 0
        %3047 = vmatprep.subr.bf16.mxu0 0
        %3048 = vmatpush1.bf16.msra.mxu0 0
        %3049 = vmatprep.subr.bf16.mxu0 0
        %3050 = vmatpush1.bf16.msra.mxu0 0
        %3051 = vmatprep.subr.bf16.mxu0 0
        %3052 = vmatpush1.bf16.msra.mxu0 0
        %3053 = vmatprep.subr.bf16.mxu0 0
        %3054 = vmatpush1.bf16.msra.mxu0 0
        %3055 = vmatprep.subr.bf16.mxu0 0
        %3056 = vmatpush1.bf16.msra.mxu0 0
        %3057 = vmatprep.subr.bf16.mxu0 0
        %3058 = vmatpush1.bf16.msra.mxu0 0
        %3059 = vmatprep.subr.bf16.mxu0 0
        %3060 = vmatpush1.bf16.msra.mxu0 0
        %3061 = vmatprep.mubr.bf16.mxu0 0
        %3062 = vmatmul.mubr.bf16.gmra.mrb[0].mxu0 %v3024
        %v3063 = vpop.f32.mrb[0].mxu0
        %v3064 = vadd.f32 0.0, %v3063
        %v3065 = vpop.f32.mrb[0].mxu0
        %v3066 = vpop.f32.mrb[0].mxu0
        %v3067 = vadd.f32 0.0, %v3066
        %v3068 = vpop.f32.mrb[0].mxu0
        %3069 = vmatprep.mubr.bf16.mxu0 0
        %3070 = vmatmul.mubr.bf16.gmra.mrb[0].mxu0 %v3027
        %v3071 = vpop.f32.mrb[0].mxu0
        %v3072 = vadd.f32 0.0, %v3071
        %v3073 = vpop.f32.mrb[0].mxu0
        %v3074 = vpop.f32.mrb[0].mxu0
        %v3075 = vadd.f32 0.0, %v3074
        %v3076 = vpop.f32.mrb[0].mxu0
        %3077 = vdwg.mxu0
        %v3078 = vadd.f32 %v2803, %v3064
        %v3079 = vadd.f32 %v2804, %v3067
        %v3080 = vadd.f32 %v2805, %v3072
        %v3081 = vadd.f32 %v2806, %v3075
        %v3082 = vlaneseq
        %v3083 = vshrl.u32 %v3082, 7
        %v3084 = vsub.s32 0, %v3083
        %v3085 = vrot.slane %v493, %v3084
        %v3086 = vadd.f32 %v3078, %v3085
        %v3087 = vadd.f32 %v3079, %v3085
        %v3088 = vadd.f32 %v3080, %v3085
        %v3089 = vadd.f32 %v3081, %v3085
        %3090 = vst.msk [vmem:[#allocation2] sm:$0xff] %vm494, %v3086
        %3091 = vst.msk [vmem:[#allocation2 + $0x8] sm:$0xff] %vm494, %v3087
        %3092 = vst.msk [vmem:[#allocation2 + $0x10] sm:$0xff] %vm494, %v3088
        %3093 = vst.msk [vmem:[#allocation2 + $0x18] sm:$0xff] %vm494, %v3089
        %p3094 = scmp.eq.s32.totalorder %s32, 1
        // Predicated region
        $region65: #{tpu_custom_call.1} parent=47 // pred_check
          %p3095 = pneg %p3094
        $region66: #{tpu_custom_call.1} parent=47 // pred_check_branch
          %3097 = sbr.rel (%p3095) target = $region68
        $region67: #{tpu_custom_call.1} parent=47 // pred_region
          %3098 = vst.msk [vmem:[%s446] sm:$0xff] %vm494, %v3086
          %3099 = vst.msk [vmem:[%s446 + $0x8] sm:$0xff] %vm494, %v3087
          %3100 = vst.msk [vmem:[%s446 + $0x10] sm:$0xff] %vm494, %v3088
          %3101 = vst.msk [vmem:[%s446 + $0x18] sm:$0xff] %vm494, %v3089
        $region68: #{tpu_custom_call.1} parent=47 // pred_fallthru
          _
        %s3102 = sand.u32 %s229, 1
        %s3103 = scalar_lea.sflag [#allocation5], %s3102
        %s3104 = sand.u32 %s229, 1
        %s3105 = smul.addr %s3104, 32
        %s3106 = scalar_lea.vmem [#allocation9], %s3105
        // Predicated region
        $region69: #{tpu_custom_call.1} parent=47 // pred_check
          %p3107 = pneg %p239
        $region70: #{tpu_custom_call.1} parent=47 // pred_check_branch
          %3109 = sbr.rel (%p3107) target = $region72
        $region71: #{tpu_custom_call.1} parent=47 // pred_region
          %s3110 = smul.u32 2, %s31
          %s3112 = ssub.s32 512, 512
          %3113 = vsyncadd %s3103, %s3112
          %s3114 = smul.addr %s3110, 2
          %s3115 = smul.addr %s3114, 128
          %s3116 = scalar_lea.hbm %s7, %s3115
          %s3117 = sshll.u32 %s3106, 4
          %s3118 = int_to_ptr.vmem [resolvable:$true] %s3117
          %3123 = dma.vmem_to_hbm [thread:$0]  %s3118, 512, %s3116, %s3103, 128, 128, 8
        $region72: #{tpu_custom_call.1} parent=47 // pred_fallthru
          _
      $region48: #{tpu_custom_call.1} parent=5 // pred_fallthru
        _
      %p3124 = scmp.le.s32.totalorder 2, %s22
      // Predicated region
      $region73: #{tpu_custom_call.1} parent=5 // pred_check
        %p3125 = pneg %p3124
      $region74: #{tpu_custom_call.1} parent=5 // pred_check_branch
        %3127 = sbr.rel (%p3125) target = $region76
      $region75: #{tpu_custom_call.1} parent=5 // pred_region
        %s3128 = ssub.s32 %s22, 2
        // Predicated region
        $region77: #{tpu_custom_call.1} parent=75 // pred_check
          %p3129 = pneg %p245
        $region78: #{tpu_custom_call.1} parent=75 // pred_check_branch
          %3131 = sbr.rel (%p3129) target = $region80
        $region79: #{tpu_custom_call.1} parent=75 // pred_region
          %s3132 = sand.u32 %s230, 1
          %s3133 = scalar_lea.sflag [#allocation5], %s3132
          %s3134 = sand.u32 %s230, 1
          %s3135 = smul.addr %s3134, 32
          %s3136 = scalar_lea.vmem [#allocation9], %s3135
          %3137 = dma.done %s3133, 512
        $region80: #{tpu_custom_call.1} parent=75 // pred_fallthru
          _
      $region76: #{tpu_custom_call.1} parent=5 // pred_fallthru
        _
    $region6: #{tpu_custom_call.1} parent=1 // loop_footer
      %s26 = sadd.s32 1, %s22
    $region7: #{tpu_custom_call.1} parent=1 // loop_footer_branch
      %21 = sbr.rel target = $region3
    $region8: #{tpu_custom_call.1} parent=1 // loop_exit
      _
    %3138 = vsyncpa [#allocation4], 1
    %s3139 = scalar_lea.sflag [#allocation4], 1
    %3140 = vsyncpa %s3139, 1
    %3141 = vsyncpa [#allocation7], 1
    %s3142 = scalar_lea.sflag [#allocation7], 1
    %3143 = vsyncpa %s3142, 1
    %3144 = vsyncpa [#allocation5], 1
    %s3145 = scalar_lea.sflag [#allocation5], 1
    %3146 = vsyncpa %s3145, 1

</llo_original>
